<compile_context>
chip_gen: v7x
topology: tpu7x:2x2x1
jax: 0.10.0
libtpu: 0.0.40
codegen_flags: <defaults>
</compile_context>

<pallas_src>
import jax
import jax.numpy as jnp
from jax.experimental import pallas as pl
from jax.experimental.pallas import tpu as pltpu


def gmu_kernel(vis4_ref, skel_ref,
               wvp_ref, wsp_ref,
               bv_ref, bs_ref, bp_ref,
               wf_ref, bf_ref,
               out_ref, acc_ref):
    """Grid = (batch tiles [parallel], channel tiles [arbitrary/reduction]).

    vis4_ref : [bt, ct, P]   streamed channel-tile of the visual feature map
    acc_ref  : [bt, hid+1]   running  vis @ [wv | wpv]  accumulator (f32)
    """
    k = pl.program_id(1)
    hid = bv_ref.shape[-1]                                   # 128

    @pl.when(k == 0)
    def _init():
        acc_ref[...] = jnp.zeros_like(acc_ref)

    # AvgPool3d((T,W,H)) for this channel tile: sum over the P = T*W*H lane
    # axis, then apply the 1/P mean scale once to the pooled [bt, ct] result.
    inv_pool = 1.0 / float(vis4_ref.shape[-1])
    vis_part = jnp.sum(vis4_ref[...], axis=-1) * inv_pool    # [bt, ct]

    # Fused vis_redu + ponderation(vis half): one MXU pass per channel tile,
    # accumulated across the channel grid axis (P3 accumulator pattern).
    acc_ref[...] += jnp.dot(vis_part, wvp_ref[...],
                            preferred_element_type=jnp.float32)  # [bt, hid+1]

    @pl.when(k == pl.num_programs(1) - 1)
    def _finalize():
        skel = skel_ref[...]                                 # [bt, 256]
        # Fused skel_redu + ponderation(skel half).
        t_s = jnp.dot(skel, wsp_ref[...],
                      preferred_element_type=jnp.float32)    # [bt, hid+1]
        acc_v = acc_ref[...]                                 # [bt, hid+1]

        # ponderation: Linear(2048+256 -> 1) on cat([vis, skel], 1) + Sigmoid.
        z = jax.nn.sigmoid(acc_v[:, hid:hid + 1] + t_s[:, hid:hid + 1]
                           + bp_ref[...])                    # [bt, 1]
        # vis_redu / skel_redu: Linear + ReLU (Dropout2d = identity at eval).
        vis_r = jnp.maximum(acc_v[:, :hid] + bv_ref[...], 0.0)   # [bt, 128]
        skel_r = jnp.maximum(t_s[:, :hid] + bs_ref[...], 0.0)    # [bt, 128]

        h = z * skel_r + (1.0 - z) * vis_r                   # [bt, 128]

        # final_pred: Linear(128 -> num_classes), lane-padded to 128 columns.
        out_ref[...] = (jnp.dot(h, wf_ref[...],
                                preferred_element_type=jnp.float32)
                        + bf_ref[...])


def gmu_forward(vis_out4, skel_feat, fused, *, ct=512):
    """vis_out4: [B, 2048, T, W, H] (torch NCDHW), skel_feat: [B, 256]."""
    B, C, T, W, H = vis_out4.shape
    P = T * W * H
    # Free view (no data movement, no HBM transpose): NCDHW -> [B, C, T*W*H].
    vis4 = vis_out4.reshape(B, C, P)

    Ds = skel_feat.shape[1]                      # 256
    hid = fused["bv"].shape[-1]                  # 128
    ncp = fused["wf"].shape[-1]                  # num_classes padded to x128
    num_classes = fused["num_classes"]

    # Batch tile: whole batch when small, otherwise 8-sample (sublane-multiple)
    # tiles so the double-buffered vis4 working set stays bounded on v7x/v5e.
    bt = B if B <= 8 else 8
    assert B % bt == 0, "pad the batch to a multiple of 8 for large B"
    if C % ct != 0:
        ct = C
    assert ct % 8 == 0

    grid = (B // bt, C // ct)                    # (parallel, reduction)

    in_specs = [
        pl.BlockSpec((bt, ct, P), lambda b, k: (b, k, 0)),     # vis4 (streamed)
        pl.BlockSpec((bt, Ds), lambda b, k: (b, 0)),           # skel
        pl.BlockSpec((ct, hid + 1), lambda b, k: (k, 0)),      # [wv | wpv]
        pl.BlockSpec((Ds, hid + 1), lambda b, k: (0, 0)),      # [ws | wps]
        pl.BlockSpec((1, hid), lambda b, k: (0, 0)),           # bv
        pl.BlockSpec((1, hid), lambda b, k: (0, 0)),           # bs
        pl.BlockSpec((1, 1), lambda b, k: (0, 0)),             # bp
        pl.BlockSpec((hid, ncp), lambda b, k: (0, 0)),         # wf (padded)
        pl.BlockSpec((1, ncp), lambda b, k: (0, 0)),           # bf (padded)
    ]
    out_specs = pl.BlockSpec((bt, ncp), lambda b, k: (b, 0))

    out = pl.pallas_call(
        gmu_kernel,
        out_shape=jax.ShapeDtypeStruct((B, ncp), jnp.float32),
        grid=grid,
        in_specs=in_specs,
        out_specs=out_specs,
        scratch_shapes=[pltpu.VMEM((bt, hid + 1), jnp.float32)],
        compiler_params=pltpu.CompilerParams(
            dimension_semantics=("parallel", "arbitrary"),
            vmem_limit_bytes=32 * 1024 * 1024),
    )(vis4, skel_feat,
      fused["wvp"], fused["wsp"],
      fused["bv"], fused["bs"], fused["bp"],
      fused["wf"], fused["bf"])

    return out[:, :num_classes]


def make_params(key, num_classes=60):
    """Deterministic PyTorch-style Linear init (U(-1/sqrt(fan_in), +))."""
    ks = jax.random.split(key, 8)

    def lin(kw, kb, fan_in, fan_out):
        bound = 1.0 / float(fan_in) ** 0.5
        w = jax.random.uniform(kw, (fan_in, fan_out), jnp.float32, -bound, bound)
        b = jax.random.uniform(kb, (1, fan_out), jnp.float32, -bound, bound)
        return w, b

    # ponderation: Linear(2048 + 256, 1); split the weight along the cat axis
    # (torch input order is cat([vis, skel], 1)).
    wp, bp = lin(ks[0], ks[1], 2048 + 256, 1)
    wpv, wps = wp[:2048], wp[2048:]
    ws, bs = lin(ks[2], ks[3], 256, 128)            # skel_redu
    wv, bv = lin(ks[4], ks[5], 2048, 128)           # vis_redu
    wf, bf = lin(ks[6], ks[7], 128, num_classes)    # final_pred
    return dict(wpv=wpv, wps=wps, bp=bp, ws=ws, bs=bs,
                wv=wv, bv=bv, wf=wf, bf=bf)


def fuse_params(params):
    """Kernel-ready parameters: fuse the N=1 ponderation weight into the
    reduction weights (one matmul per input) and lane-pad the classifier."""
    num_classes = params["wf"].shape[1]
    ncp = ((num_classes + 127) // 128) * 128
    return dict(
        wvp=jnp.concatenate([params["wv"], params["wpv"]], axis=1),  # [2048,129]
        wsp=jnp.concatenate([params["ws"], params["wps"]], axis=1),  # [256,129]
        bv=params["bv"], bs=params["bs"], bp=params["bp"],
        wf=jnp.pad(params["wf"], ((0, 0), (0, ncp - num_classes))),
        bf=jnp.pad(params["bf"], ((0, 0), (0, ncp - num_classes))),
        num_classes=num_classes,
    )


def gmu_reference(vis_out4, skel_feat, params):
    """Pure-JAX reference of the same math, for a correctness check."""
    B, C = vis_out4.shape[0], vis_out4.shape[1]
    vis = jnp.mean(vis_out4.reshape(B, C, -1), axis=-1)          # [B, 2048]
    z = jax.nn.sigmoid(vis @ params["wpv"] + skel_feat @ params["wps"]
                       + params["bp"])
    skel_r = jax.nn.relu(skel_feat @ params["ws"] + params["bs"])
    vis_r = jax.nn.relu(vis @ params["wv"] + params["bv"])
    h = z * skel_r + (1.0 - z) * vis_r
    return h @ params["wf"] + params["bf"]


if __name__ == "__main__":
    B, num_classes = 2, 60
    key = jax.random.PRNGKey(0)
    k_vis, k_skel, k_par = jax.random.split(key, 3)

    # Synthetic backbone outputs (the CNN backbones themselves are external).
    vis_out4 = jax.random.normal(k_vis, (B, 2048, 8, 7, 7), jnp.float32)
    skel_feat = jax.random.normal(k_skel, (B, 256), jnp.float32)
    params = make_params(k_par, num_classes)
    fused = fuse_params(params)

    pred = gmu_forward(vis_out4, skel_feat, fused)
    pred = jax.block_until_ready(pred)

    ref = gmu_reference(vis_out4, skel_feat, params)
    assert pred.shape == (B, num_classes)
    assert jnp.allclose(pred, ref, atol=2e-4, rtol=2e-4), \
        float(jnp.max(jnp.abs(pred - ref)))
    print("KERNEL_OK")
</pallas_src>

<mosaic_0001>
module attributes {stable_mosaic.version = 11 : i64} {
  func.func @gmu_kernel(%arg0: i32, %arg1: i32, %arg2: memref<2x512x392xf32, #tpu.memory_space<vmem>>, %arg3: memref<2x256xf32, #tpu.memory_space<vmem>>, %arg4: memref<512x129xf32, #tpu.memory_space<vmem>>, %arg5: memref<256x129xf32, #tpu.memory_space<vmem>>, %arg6: memref<1x128xf32, #tpu.memory_space<vmem>>, %arg7: memref<1x128xf32, #tpu.memory_space<vmem>>, %arg8: memref<1x1xf32, #tpu.memory_space<vmem>>, %arg9: memref<128x128xf32, #tpu.memory_space<vmem>>, %arg10: memref<1x128xf32, #tpu.memory_space<vmem>>, %arg11: memref<2x128xf32, #tpu.memory_space<vmem>>, %arg12: memref<2x129xf32, #tpu.memory_space<vmem>>) attributes {dimension_semantics = [#tpu.dimension_semantics<parallel>, #tpu.dimension_semantics<arbitrary>], iteration_bounds = array<i64: 1, 4>, scalar_prefetch = 0 : i64, scratch_operands = 1 : i64, tpu.core_type = #tpu.core_type<tc>, window_params = [{transform_indices = @transform_0, window_bounds = array<i64: 2, 512, 392>}, {transform_indices = @transform_1, window_bounds = array<i64: 2, 256>}, {transform_indices = @transform_2, window_bounds = array<i64: 512, 129>}, {pipeline_mode = #tpu.pipeline_mode<synchronous>, transform_indices = @transform_3, window_bounds = array<i64: 256, 129>}, {pipeline_mode = #tpu.pipeline_mode<synchronous>, transform_indices = @transform_4, window_bounds = array<i64: 1, 128>}, {pipeline_mode = #tpu.pipeline_mode<synchronous>, transform_indices = @transform_5, window_bounds = array<i64: 1, 128>}, {pipeline_mode = #tpu.pipeline_mode<synchronous>, transform_indices = @transform_6, window_bounds = array<i64: 1, 1>}, {pipeline_mode = #tpu.pipeline_mode<synchronous>, transform_indices = @transform_7, window_bounds = array<i64: 128, 128>}, {pipeline_mode = #tpu.pipeline_mode<synchronous>, transform_indices = @transform_8, window_bounds = array<i64: 1, 128>}, {transform_indices = @transform_9, window_bounds = array<i64: 2, 128>}]} {
    %c0_i32 = arith.constant 0 : i32
    %0 = arith.cmpi eq, %arg1, %c0_i32 : i32
    %1 = arith.extui %0 : i1 to i32
    %c0_i32_0 = arith.constant 0 : i32
    %2 = arith.cmpi ne, %1, %c0_i32_0 : i32
    scf.if %2 {
      %cst_12 = arith.constant 0.000000e+00 : f32
      %15 = vector.broadcast %cst_12 : f32 to vector<2x129xf32>
      %c0_13 = arith.constant 0 : index
      %c0_14 = arith.constant 0 : index
      %16 = vector.load %arg12[%c0_13, %c0_14] : memref<2x129xf32, #tpu.memory_space<vmem>>, vector<2x129xf32>
      tpu.vector_store %arg12[%c0_13, %c0_14], %15 {strides = array<i32>} : memref<2x129xf32, #tpu.memory_space<vmem>>, vector<2x129xf32>,
    } else {
    }
    %c0 = arith.constant 0 : index
    %c0_1 = arith.constant 0 : index
    %c0_2 = arith.constant 0 : index
    %3 = vector.load %arg2[%c0, %c0_1, %c0_2] : memref<2x512x392xf32, #tpu.memory_space<vmem>>, vector<2x512x392xf32>
    %cst = arith.constant dense<0.000000e+00> : vector<2x512xf32>
    %4 = vector.multi_reduction <add>, %3, %cst [2] : vector<2x512x392xf32> to vector<2x512xf32>
    %cst_3 = arith.constant 0.00255102036 : f32
    %5 = vector.broadcast %cst_3 : f32 to vector<2x512xf32>
    %6 = arith.mulf %4, %5 : vector<2x512xf32>
    %c0_4 = arith.constant 0 : index
    %c0_5 = arith.constant 0 : index
    %7 = vector.load %arg12[%c0_4, %c0_5] : memref<2x129xf32, #tpu.memory_space<vmem>>, vector<2x129xf32>
    %c0_6 = arith.constant 0 : index
    %c0_7 = arith.constant 0 : index
    %8 = vector.load %arg4[%c0_6, %c0_7] : memref<512x129xf32, #tpu.memory_space<vmem>>, vector<512x129xf32>
    %cst_8 = arith.constant dense<0.000000e+00> : vector<2x129xf32>
    %9 = tpu.matmul %6, %8, %cst_8 {dimension_numbers = #tpu.dot_dimension_numbers<[1], [0], [0], [1], [0, 0, 1, 1], [], []>} : vector<2x512xf32>, vector<512x129xf32>, vector<2x129xf32> -> vector<2x129xf32>
    %10 = arith.addf %7, %9 : vector<2x129xf32>
    %c0_9 = arith.constant 0 : index
    %c0_10 = arith.constant 0 : index
    %11 = vector.load %arg12[%c0_9, %c0_10] : memref<2x129xf32, #tpu.memory_space<vmem>>, vector<2x129xf32>
    tpu.vector_store %arg12[%c0_9, %c0_10], %10 {strides = array<i32>} : memref<2x129xf32, #tpu.memory_space<vmem>>, vector<2x129xf32>,
    %c3_i32 = arith.constant 3 : i32
    %12 = arith.cmpi eq, %arg1, %c3_i32 : i32
    %13 = arith.extui %12 : i1 to i32
    %c0_i32_11 = arith.constant 0 : i32
    %14 = arith.cmpi ne, %13, %c0_i32_11 : i32
    scf.if %14 {
      %c0_12 = arith.constant 0 : index
      %c0_13 = arith.constant 0 : index
      %15 = vector.load %arg3[%c0_12, %c0_13] : memref<2x256xf32, #tpu.memory_space<vmem>>, vector<2x256xf32>
      %c0_14 = arith.constant 0 : index
      %c0_15 = arith.constant 0 : index
      %16 = vector.load %arg5[%c0_14, %c0_15] : memref<256x129xf32, #tpu.memory_space<vmem>>, vector<256x129xf32>
      %cst_16 = arith.constant dense<0.000000e+00> : vector<2x129xf32>
      %17 = tpu.matmul %15, %16, %cst_16 {dimension_numbers = #tpu.dot_dimension_numbers<[1], [0], [0], [1], [0, 0, 1, 1], [], []>} : vector<2x256xf32>, vector<256x129xf32>, vector<2x129xf32> -> vector<2x129xf32>
      %c0_17 = arith.constant 0 : index
      %c0_18 = arith.constant 0 : index
      %18 = vector.load %arg12[%c0_17, %c0_18] : memref<2x129xf32, #tpu.memory_space<vmem>>, vector<2x129xf32>
      %19 = vector.extract_strided_slice %18 {offsets = [0, 128], sizes = [2, 1], strides = [1, 1]} : vector<2x129xf32> to vector<2x1xf32>
      %20 = vector.extract_strided_slice %17 {offsets = [0, 128], sizes = [2, 1], strides = [1, 1]} : vector<2x129xf32> to vector<2x1xf32>
      %21 = arith.addf %19, %20 : vector<2x1xf32>
      %c0_19 = arith.constant 0 : index
      %c0_20 = arith.constant 0 : index
      %22 = vector.load %arg8[%c0_19, %c0_20] : memref<1x1xf32, #tpu.memory_space<vmem>>, vector<1x1xf32>
      %23 = vector.broadcast %22 : vector<1x1xf32> to vector<2x1xf32>
      %24 = arith.addf %21, %23 : vector<2x1xf32>
      %25 = arith.negf %24 : vector<2x1xf32>
      %26 = math.exp %25 : vector<2x1xf32>
      %cst_21 = arith.constant 1.000000e+00 : f32
      %27 = vector.broadcast %cst_21 : f32 to vector<2x1xf32>
      %28 = arith.addf %27, %26 : vector<2x1xf32>
      %29 = arith.divf %27, %28 : vector<2x1xf32>
      %30 = vector.extract_strided_slice %18 {offsets = [0, 0], sizes = [2, 128], strides = [1, 1]} : vector<2x129xf32> to vector<2x128xf32>
      %c0_22 = arith.constant 0 : index
      %c0_23 = arith.constant 0 : index
      %31 = vector.load %arg6[%c0_22, %c0_23] : memref<1x128xf32, #tpu.memory_space<vmem>>, vector<1x128xf32>
      %32 = vector.broadcast %31 : vector<1x128xf32> to vector<2x128xf32>
      %33 = arith.addf %30, %32 : vector<2x128xf32>
      %cst_24 = arith.constant 0.000000e+00 : f32
      %34 = vector.broadcast %cst_24 : f32 to vector<2x128xf32>
      %35 = arith.maximumf %33, %34 : vector<2x128xf32>
      %36 = vector.extract_strided_slice %17 {offsets = [0, 0], sizes = [2, 128], strides = [1, 1]} : vector<2x129xf32> to vector<2x128xf32>
      %c0_25 = arith.constant 0 : index
      %c0_26 = arith.constant 0 : index
      %37 = vector.load %arg7[%c0_25, %c0_26] : memref<1x128xf32, #tpu.memory_space<vmem>>, vector<1x128xf32>
      %38 = vector.broadcast %37 : vector<1x128xf32> to vector<2x128xf32>
      %39 = arith.addf %36, %38 : vector<2x128xf32>
      %cst_27 = arith.constant 0.000000e+00 : f32
      %40 = vector.broadcast %cst_27 : f32 to vector<2x128xf32>
      %41 = arith.maximumf %39, %40 : vector<2x128xf32>
      %42 = vector.broadcast %29 : vector<2x1xf32> to vector<2x128xf32>
      %43 = arith.mulf %42, %41 : vector<2x128xf32>
      %cst_28 = arith.constant 1.000000e+00 : f32
      %44 = vector.broadcast %cst_28 : f32 to vector<2x1xf32>
      %45 = arith.subf %44, %29 : vector<2x1xf32>
      %46 = vector.broadcast %45 : vector<2x1xf32> to vector<2x128xf32>
      %47 = arith.mulf %46, %35 : vector<2x128xf32>
      %48 = arith.addf %43, %47 : vector<2x128xf32>
      %c0_29 = arith.constant 0 : index
      %c0_30 = arith.constant 0 : index
      %49 = vector.load %arg9[%c0_29, %c0_30] : memref<128x128xf32, #tpu.memory_space<vmem>>, vector<128x128xf32>
      %cst_31 = arith.constant dense<0.000000e+00> : vector<2x128xf32>
      %50 = tpu.matmul %48, %49, %cst_31 {dimension_numbers = #tpu.dot_dimension_numbers<[1], [0], [0], [1], [0, 0, 1, 1], [], []>} : vector<2x128xf32>, vector<128x128xf32>, vector<2x128xf32> -> vector<2x128xf32>
      %c0_32 = arith.constant 0 : index
      %c0_33 = arith.constant 0 : index
      %51 = vector.load %arg10[%c0_32, %c0_33] : memref<1x128xf32, #tpu.memory_space<vmem>>, vector<1x128xf32>
      %52 = vector.broadcast %51 : vector<1x128xf32> to vector<2x128xf32>
      %53 = arith.addf %50, %52 : vector<2x128xf32>
      %c0_34 = arith.constant 0 : index
      %c0_35 = arith.constant 0 : index
      %54 = vector.load %arg11[%c0_34, %c0_35] : memref<2x128xf32, #tpu.memory_space<vmem>>, vector<2x128xf32>
      tpu.vector_store %arg11[%c0_34, %c0_35], %53 {strides = array<i32>} : memref<2x128xf32, #tpu.memory_space<vmem>>, vector<2x128xf32>,
    } else {
    }
    return
  }
  func.func @transform_0(%arg0: i32, %arg1: i32) -> (i32, i32, i32) {
    %c0_i32 = arith.constant 0 : i32
    %c0_i32_0 = arith.constant 0 : i32
    return %arg0, %arg1, %c0_i32 : i32, i32, i32
  }
  func.func @transform_1(%arg0: i32, %arg1: i32) -> (i32, i32) {
    %c0_i32 = arith.constant 0 : i32
    %c0_i32_0 = arith.constant 0 : i32
    return %arg0, %c0_i32 : i32, i32
  }
  func.func @transform_2(%arg0: i32, %arg1: i32) -> (i32, i32) {
    %c0_i32 = arith.constant 0 : i32
    %c0_i32_0 = arith.constant 0 : i32
    return %arg1, %c0_i32 : i32, i32
  }
  func.func @transform_3(%arg0: i32, %arg1: i32) -> (i32, i32) {
    %c0_i32 = arith.constant 0 : i32
    %c0_i32_0 = arith.constant 0 : i32
    %c0_i32_1 = arith.constant 0 : i32
    return %c0_i32, %c0_i32_0 : i32, i32
  }
  func.func @transform_4(%arg0: i32, %arg1: i32) -> (i32, i32) {
    %c0_i32 = arith.constant 0 : i32
    %c0_i32_0 = arith.constant 0 : i32
    %c0_i32_1 = arith.constant 0 : i32
    return %c0_i32, %c0_i32_0 : i32, i32
  }
  func.func @transform_5(%arg0: i32, %arg1: i32) -> (i32, i32) {
    %c0_i32 = arith.constant 0 : i32
    %c0_i32_0 = arith.constant 0 : i32
    %c0_i32_1 = arith.constant 0 : i32
    return %c0_i32, %c0_i32_0 : i32, i32
  }
  func.func @transform_6(%arg0: i32, %arg1: i32) -> (i32, i32) {
    %c0_i32 = arith.constant 0 : i32
    %c0_i32_0 = arith.constant 0 : i32
    %c0_i32_1 = arith.constant 0 : i32
    return %c0_i32, %c0_i32_0 : i32, i32
  }
  func.func @transform_7(%arg0: i32, %arg1: i32) -> (i32, i32) {
    %c0_i32 = arith.constant 0 : i32
    %c0_i32_0 = arith.constant 0 : i32
    %c0_i32_1 = arith.constant 0 : i32
    return %c0_i32, %c0_i32_0 : i32, i32
  }
  func.func @transform_8(%arg0: i32, %arg1: i32) -> (i32, i32) {
    %c0_i32 = arith.constant 0 : i32
    %c0_i32_0 = arith.constant 0 : i32
    %c0_i32_1 = arith.constant 0 : i32
    return %c0_i32, %c0_i32_0 : i32, i32
  }
  func.func @transform_9(%arg0: i32, %arg1: i32) -> (i32, i32) {
    %c0_i32 = arith.constant 0 : i32
    %c0_i32_0 = arith.constant 0 : i32
    return %arg0, %c0_i32 : i32, i32
  }
}

</mosaic_0001>

<llo_original>
// kernel: tpu_custom_call.1
$region0: #{tpu_custom_call.1}
  #allocation0 [shape = 'u32[]', space=smem, size = 0x4, offset = 0x4, fixed_abs, tag = 'smem constant byte address 0x4 - core index']
  #allocation1 [shape = 'u32[144,128]{1,0:T(1,128)}', space=vmem, size = 0x12000, scoped, tag = 'internal scratch']
  #allocation2 [shape = 'f32[2,129]{1,0:T(2,128)}', space=vmem, size = 0x800, scoped, tag = 'scratch operand']
  #allocation3 [shape = 'f32[1,1]{1,0:T(1,128)S(1)}', space=vmem, size = 0x200, scoped, tag = 'scoped memory for tpu_custom_call.1']
  %s0 = inlined_call_operand.vmem [shape: f32[2,2048,392], index: 0, kind: input, shape index: {}]
  %s1 = inlined_call_operand.vmem [shape: f32[2,256], index: 1, kind: input, shape index: {}]
  %s2 = inlined_call_operand.vmem [shape: f32[2048,129], index: 2, kind: input, shape index: {}]
  %s3 = inlined_call_operand.vmem [shape: f32[256,129], index: 3, kind: input, shape index: {}]
  %s4 = inlined_call_operand.vmem [shape: f32[1,128], index: 4, kind: input, shape index: {}]
  %s5 = inlined_call_operand.vmem [shape: f32[1,128], index: 5, kind: input, shape index: {}]
  %s6 = inlined_call_operand.<no memory space> [shape: f32[1,1], index: 6, kind: input, shape index: {}]
  %s7 = inlined_call_operand.vmem [shape: f32[128,128], index: 7, kind: input, shape index: {}]
  %s8 = inlined_call_operand.vmem [shape: f32[1,128], index: 8, kind: input, shape index: {}]
  %s9 = inlined_call_operand.hbm [shape: f32[2,128], index: 9, kind: output, shape index: {}]
  %s10 = sld [smem:[#allocation0]]
  $region100: #{tpu_custom_call.1} parent=0
    _
  %s12 = ssub.s32 1, %s10
  %s13 = scalar_select 0, %s12, %s10
  %v14 = vstv %s6
  %15 = vst [vmem:[#allocation3] sm:$0x1] %v14
  $region1: #{tpu_custom_call.1} parent=0
    #allocation4 [shape = 'u8[4194304]{0}', space=vmem, size = 0x400000, scoped, tag = 'input window, operand 0']
    #allocation5 [shape = 'u8[1024]{0}', space=vmem, size = 0x400, scoped, tag = 'output window, operand 0, single buffered']
    #allocation6 [shape = 's32[2]{0}', space=sflag, size = 0x8, scoped, tag = 'scoped memory for tpu_custom_call.1']
    %16 = vsyncpa [#allocation6], 0
    loop: start=0, step=1, limit=6
    $region2: #{tpu_custom_call.1} parent=1 // loop_pre_header
      _
    $region3: #{tpu_custom_call.1} parent=1 // loop_header
      %s18 = sphi 0, %s22
      %p19 = scmp.ge.s32.totalorder %s18, 6
      %s25 = sphi 0, %s37
      %s26 = sphi 0, %s33
      %s27 = sphi 0, %s25
      %s28 = sphi 0, %s26
      %s29 = sphi 0, %s27
      %s30 = sphi 0, %s28
      %s42 = sphi 0, %s44
      %s45 = sphi 0, %s42
      %s46 = sphi 0, %s45
      %s62 = sphi 0, %s46
      %s68 = sphi 0, %s70
      %s71 = sphi 0, %s68
      %s72 = sphi 0, %s71
      %s88 = sphi 0, %s72
      %s94 = sphi 0, %s96
      %s97 = sphi 0, %s94
      %s98 = sphi 0, %s97
      %s114 = sphi 0, %s98
      %s118 = sphi 0, %s118
      %s120 = sphi 0, %s118
      %s121 = sphi 0, %s120
      %s135 = sphi 0, %s121
      %s139 = sphi 0, %s139
      %s141 = sphi 0, %s139
      %s142 = sphi 0, %s141
      %s156 = sphi 0, %s142
      %s160 = sphi 0, %s160
      %s162 = sphi 0, %s160
      %s163 = sphi 0, %s162
      %s177 = sphi 0, %s163
      %s181 = sphi 0, %s181
      %s183 = sphi 0, %s181
      %s184 = sphi 0, %s183
      %s198 = sphi 0, %s184
      %s202 = sphi 0, %s202
      %s204 = sphi 0, %s202
      %s205 = sphi 0, %s204
      %s219 = sphi 0, %s205
      %s223 = sphi 0, %s223
      %s225 = sphi 0, %s223
      %s226 = sphi 0, %s225
      %s240 = sphi 0, %s226
      %s246 = sphi 0, %s248
      %s249 = sphi 0, %s246
      %s250 = sphi 0, %s249
      %s266 = sphi 0, %s250
    $region4: #{tpu_custom_call.1} parent=1 // loop_header_branch
      %21 = sbr.rel (%p19) target = $region8
    $region5: #{tpu_custom_call.1} parent=1 // loop_body
      %s23 = ssub.s32 %s18, 1
      %s24 = ssub.s32 %s18, 2
      %s31 = sadd.s32 1, %s26
      %p32 = scmp.ge.s32.totalorder %s31, 4
      %s33 = scalar_select %p32, 0, %s31
      %s34 = sadd.s32 1, %s25
      %s35 = scalar_select %p32, %s34, %s25
      %p36 = scmp.ge.s32.totalorder %s35, 1
      %s37 = scalar_select %p36, 0, %s35
      %s38 = ssub.s32 %s25, %s37
      %s39 = ssub.s32 %s26, %s33
      %s40 = sor.u32 %s38, %s39
      %p41 = scmp.eq.s32.totalorder %s40, 0
      %s43 = sadd.s32 %s42, 1
      %s44 = scalar_select %p41, %s42, %s43
      %p47 = pneg %p41
      %p48 = scmp.eq.s32.totalorder %s18, 3
      %p49 = por %p47, %p48
      %p50 = scmp.ne.s32.totalorder %s42, %s45
      %p51 = scmp.eq.s32.totalorder %s18, 0
      %p52 = por %p50, %p51
      %p53 = scmp.ne.s32.totalorder %s42, %s45
      %p54 = scmp.eq.s32.totalorder %s23, 3
      %p55 = por %p53, %p54
      %p56 = scmp.ne.s32.totalorder %s45, %s46
      %p57 = scmp.eq.s32.totalorder %s23, 0
      %p58 = por %p56, %p57
      %p59 = scmp.ne.s32.totalorder %s45, %s46
      %p60 = scmp.eq.s32.totalorder %s24, 3
      %p61 = por %p59, %p60
      %p63 = scmp.ne.s32.totalorder %s46, %s62
      %p64 = scmp.eq.s32.totalorder %s24, 0
      %p65 = por %p63, %p64
      %s66 = ssub.s32 %s25, %s37
      %p67 = scmp.eq.s32.totalorder %s66, 0
      %s69 = sadd.s32 %s68, 1
      %s70 = scalar_select %p67, %s68, %s69
      %p73 = pneg %p67
      %p74 = scmp.eq.s32.totalorder %s18, 3
      %p75 = por %p73, %p74
      %p76 = scmp.ne.s32.totalorder %s68, %s71
      %p77 = scmp.eq.s32.totalorder %s18, 0
      %p78 = por %p76, %p77
      %p79 = scmp.ne.s32.totalorder %s68, %s71
      %p80 = scmp.eq.s32.totalorder %s23, 3
      %p81 = por %p79, %p80
      %p82 = scmp.ne.s32.totalorder %s71, %s72
      %p83 = scmp.eq.s32.totalorder %s23, 0
      %p84 = por %p82, %p83
      %p85 = scmp.ne.s32.totalorder %s71, %s72
      %p86 = scmp.eq.s32.totalorder %s24, 3
      %p87 = por %p85, %p86
      %p89 = scmp.ne.s32.totalorder %s72, %s88
      %p90 = scmp.eq.s32.totalorder %s24, 0
      %p91 = por %p89, %p90
      %s92 = ssub.s32 %s26, %s33
      %p93 = scmp.eq.s32.totalorder %s92, 0
      %s95 = sadd.s32 %s94, 1
      %s96 = scalar_select %p93, %s94, %s95
      %p99 = pneg %p93
      %p100 = scmp.eq.s32.totalorder %s18, 3
      %p101 = por %p99, %p100
      %p102 = scmp.ne.s32.totalorder %s94, %s97
      %p103 = scmp.eq.s32.totalorder %s18, 0
      %p104 = por %p102, %p103
      %p105 = scmp.ne.s32.totalorder %s94, %s97
      %p106 = scmp.eq.s32.totalorder %s23, 3
      %p107 = por %p105, %p106
      %p108 = scmp.ne.s32.totalorder %s97, %s98
      %p109 = scmp.eq.s32.totalorder %s23, 0
      %p110 = por %p108, %p109
      %p111 = scmp.ne.s32.totalorder %s97, %s98
      %p112 = scmp.eq.s32.totalorder %s24, 3
      %p113 = por %p111, %p112
      %p115 = scmp.ne.s32.totalorder %s98, %s114
      %p116 = scmp.eq.s32.totalorder %s24, 0
      %p117 = por %p115, %p116
      %s119 = sadd.s32 %s118, 1
      %p122 = scmp.eq.s32.totalorder %s18, 3
      %p123 = scmp.ne.s32.totalorder %s118, %s120
      %p124 = scmp.eq.s32.totalorder %s18, 0
      %p125 = por %p123, %p124
      %p126 = scmp.ne.s32.totalorder %s118, %s120
      %p127 = scmp.eq.s32.totalorder %s23, 3
      %p128 = por %p126, %p127
      %p129 = scmp.ne.s32.totalorder %s120, %s121
      %p130 = scmp.eq.s32.totalorder %s23, 0
      %p131 = por %p129, %p130
      %p132 = scmp.ne.s32.totalorder %s120, %s121
      %p133 = scmp.eq.s32.totalorder %s24, 3
      %p134 = por %p132, %p133
      %p136 = scmp.ne.s32.totalorder %s121, %s135
      %p137 = scmp.eq.s32.totalorder %s24, 0
      %p138 = por %p136, %p137
      %s140 = sadd.s32 %s139, 1
      %p143 = scmp.eq.s32.totalorder %s18, 3
      %p144 = scmp.ne.s32.totalorder %s139, %s141
      %p145 = scmp.eq.s32.totalorder %s18, 0
      %p146 = por %p144, %p145
      %p147 = scmp.ne.s32.totalorder %s139, %s141
      %p148 = scmp.eq.s32.totalorder %s23, 3
      %p149 = por %p147, %p148
      %p150 = scmp.ne.s32.totalorder %s141, %s142
      %p151 = scmp.eq.s32.totalorder %s23, 0
      %p152 = por %p150, %p151
      %p153 = scmp.ne.s32.totalorder %s141, %s142
      %p154 = scmp.eq.s32.totalorder %s24, 3
      %p155 = por %p153, %p154
      %p157 = scmp.ne.s32.totalorder %s142, %s156
      %p158 = scmp.eq.s32.totalorder %s24, 0
      %p159 = por %p157, %p158
      %s161 = sadd.s32 %s160, 1
      %p164 = scmp.eq.s32.totalorder %s18, 3
      %p165 = scmp.ne.s32.totalorder %s160, %s162
      %p166 = scmp.eq.s32.totalorder %s18, 0
      %p167 = por %p165, %p166
      %p168 = scmp.ne.s32.totalorder %s160, %s162
      %p169 = scmp.eq.s32.totalorder %s23, 3
      %p170 = por %p168, %p169
      %p171 = scmp.ne.s32.totalorder %s162, %s163
      %p172 = scmp.eq.s32.totalorder %s23, 0
      %p173 = por %p171, %p172
      %p174 = scmp.ne.s32.totalorder %s162, %s163
      %p175 = scmp.eq.s32.totalorder %s24, 3
      %p176 = por %p174, %p175
      %p178 = scmp.ne.s32.totalorder %s163, %s177
      %p179 = scmp.eq.s32.totalorder %s24, 0
      %p180 = por %p178, %p179
      %s182 = sadd.s32 %s181, 1
      %p185 = scmp.eq.s32.totalorder %s18, 3
      %p186 = scmp.ne.s32.totalorder %s181, %s183
      %p187 = scmp.eq.s32.totalorder %s18, 0
      %p188 = por %p186, %p187
      %p189 = scmp.ne.s32.totalorder %s181, %s183
      %p190 = scmp.eq.s32.totalorder %s23, 3
      %p191 = por %p189, %p190
      %p192 = scmp.ne.s32.totalorder %s183, %s184
      %p193 = scmp.eq.s32.totalorder %s23, 0
      %p194 = por %p192, %p193
      %p195 = scmp.ne.s32.totalorder %s183, %s184
      %p196 = scmp.eq.s32.totalorder %s24, 3
      %p197 = por %p195, %p196
      %p199 = scmp.ne.s32.totalorder %s184, %s198
      %p200 = scmp.eq.s32.totalorder %s24, 0
      %p201 = por %p199, %p200
      %s203 = sadd.s32 %s202, 1
      %p206 = scmp.eq.s32.totalorder %s18, 3
      %p207 = scmp.ne.s32.totalorder %s202, %s204
      %p208 = scmp.eq.s32.totalorder %s18, 0
      %p209 = por %p207, %p208
      %p210 = scmp.ne.s32.totalorder %s202, %s204
      %p211 = scmp.eq.s32.totalorder %s23, 3
      %p212 = por %p210, %p211
      %p213 = scmp.ne.s32.totalorder %s204, %s205
      %p214 = scmp.eq.s32.totalorder %s23, 0
      %p215 = por %p213, %p214
      %p216 = scmp.ne.s32.totalorder %s204, %s205
      %p217 = scmp.eq.s32.totalorder %s24, 3
      %p218 = por %p216, %p217
      %p220 = scmp.ne.s32.totalorder %s205, %s219
      %p221 = scmp.eq.s32.totalorder %s24, 0
      %p222 = por %p220, %p221
      %s224 = sadd.s32 %s223, 1
      %p227 = scmp.eq.s32.totalorder %s18, 3
      %p228 = scmp.ne.s32.totalorder %s223, %s225
      %p229 = scmp.eq.s32.totalorder %s18, 0
      %p230 = por %p228, %p229
      %p231 = scmp.ne.s32.totalorder %s223, %s225
      %p232 = scmp.eq.s32.totalorder %s23, 3
      %p233 = por %p231, %p232
      %p234 = scmp.ne.s32.totalorder %s225, %s226
      %p235 = scmp.eq.s32.totalorder %s23, 0
      %p236 = por %p234, %p235
      %p237 = scmp.ne.s32.totalorder %s225, %s226
      %p238 = scmp.eq.s32.totalorder %s24, 3
      %p239 = por %p237, %p238
      %p241 = scmp.ne.s32.totalorder %s226, %s240
      %p242 = scmp.eq.s32.totalorder %s24, 0
      %p243 = por %p241, %p242
      %s244 = ssub.s32 %s25, %s37
      %p245 = scmp.eq.s32.totalorder %s244, 0
      %s247 = sadd.s32 %s246, 1
      %s248 = scalar_select %p245, %s246, %s247
      %p251 = pneg %p245
      %p252 = scmp.eq.s32.totalorder %s18, 3
      %p253 = por %p251, %p252
      %p254 = scmp.ne.s32.totalorder %s246, %s249
      %p255 = scmp.eq.s32.totalorder %s18, 0
      %p256 = por %p254, %p255
      %p257 = scmp.ne.s32.totalorder %s246, %s249
      %p258 = scmp.eq.s32.totalorder %s23, 3
      %p259 = por %p257, %p258
      %p260 = scmp.ne.s32.totalorder %s249, %s250
      %p261 = scmp.eq.s32.totalorder %s23, 0
      %p262 = por %p260, %p261
      %p263 = scmp.ne.s32.totalorder %s249, %s250
      %p264 = scmp.eq.s32.totalorder %s24, 3
      %p265 = por %p263, %p264
      %p267 = scmp.ne.s32.totalorder %s250, %s266
      %p268 = scmp.eq.s32.totalorder %s24, 0
      %p269 = por %p267, %p268
      %p270 = scmp.le.s32.totalorder 1, %s18
      %p271 = scmp.lt.s32.totalorder %s18, 5
      %p272 = pnand %p270, %p271
      %p273 = pneg %p272
      // Predicated region
      $region9: #{tpu_custom_call.1} parent=5 // pred_check
        _
      $region10: #{tpu_custom_call.1} parent=5 // pred_check_branch
        %275 = sbr.rel (%p272) target = $region12
      $region11: #{tpu_custom_call.1} parent=5 // pred_region
        %s276 = ssub.s32 %s18, 1
        // Predicated region
        $region13: #{tpu_custom_call.1} parent=11 // pred_check
          %p277 = pneg %p84
        $region14: #{tpu_custom_call.1} parent=11 // pred_check_branch
          %279 = sbr.rel (%p277) target = $region16
        $region15: #{tpu_custom_call.1} parent=11 // pred_region
          %p280 = scmp.lt.s32.totalorder %s27, 0
          %s281 = scalar_select %p280, %s27, 0
          %s282 = smul.addr %s281, 2
          %s283 = smul.addr %s282, 2
          %s284 = scalar_lea.vmem %s1, %s283
        $region16: #{tpu_custom_call.1} parent=11 // pred_fallthru
          _
        // Predicated region
        $region17: #{tpu_custom_call.1} parent=11 // pred_check
          %p285 = pneg %p131
        $region18: #{tpu_custom_call.1} parent=11 // pred_check_branch
          %287 = sbr.rel (%p285) target = $region20
        $region19: #{tpu_custom_call.1} parent=11 // pred_region
          _
        $region20: #{tpu_custom_call.1} parent=11 // pred_fallthru
          _
        // Predicated region
        $region21: #{tpu_custom_call.1} parent=11 // pred_check
          %p288 = pneg %p152
        $region22: #{tpu_custom_call.1} parent=11 // pred_check_branch
          %290 = sbr.rel (%p288) target = $region24
        $region23: #{tpu_custom_call.1} parent=11 // pred_region
          _
        $region24: #{tpu_custom_call.1} parent=11 // pred_fallthru
          _
        // Predicated region
        $region25: #{tpu_custom_call.1} parent=11 // pred_check
          %p291 = pneg %p173
        $region26: #{tpu_custom_call.1} parent=11 // pred_check_branch
          %293 = sbr.rel (%p291) target = $region28
        $region27: #{tpu_custom_call.1} parent=11 // pred_region
          _
        $region28: #{tpu_custom_call.1} parent=11 // pred_fallthru
          _
        // Predicated region
        $region29: #{tpu_custom_call.1} parent=11 // pred_check
          %p294 = pneg %p194
        $region30: #{tpu_custom_call.1} parent=11 // pred_check_branch
          %296 = sbr.rel (%p294) target = $region32
        $region31: #{tpu_custom_call.1} parent=11 // pred_region
          _
        $region32: #{tpu_custom_call.1} parent=11 // pred_fallthru
          _
        // Predicated region
        $region33: #{tpu_custom_call.1} parent=11 // pred_check
          %p297 = pneg %p215
        $region34: #{tpu_custom_call.1} parent=11 // pred_check_branch
          %299 = sbr.rel (%p297) target = $region36
        $region35: #{tpu_custom_call.1} parent=11 // pred_region
          _
        $region36: #{tpu_custom_call.1} parent=11 // pred_fallthru
          _
        // Predicated region
        $region37: #{tpu_custom_call.1} parent=11 // pred_check
          %p300 = pneg %p236
        $region38: #{tpu_custom_call.1} parent=11 // pred_check_branch
          %302 = sbr.rel (%p300) target = $region40
        $region39: #{tpu_custom_call.1} parent=11 // pred_region
          _
        $region40: #{tpu_custom_call.1} parent=11 // pred_fallthru
          _
      $region12: #{tpu_custom_call.1} parent=5 // pred_fallthru
        _
      %p303 = scmp.lt.s32.totalorder %s18, 4
      // Predicated region
      $region41: #{tpu_custom_call.1} parent=5 // pred_check
        %p304 = pneg %p303
      $region42: #{tpu_custom_call.1} parent=5 // pred_check_branch
        %306 = sbr.rel (%p304) target = $region44
      $region43: #{tpu_custom_call.1} parent=5 // pred_region
        // Predicated region
        $region45: #{tpu_custom_call.1} parent=43 // pred_check
          %p307 = pneg %p52
        $region46: #{tpu_custom_call.1} parent=43 // pred_check_branch
          %309 = sbr.rel (%p307) target = $region48
        $region47: #{tpu_custom_call.1} parent=43 // pred_region
          %s310 = sand.u32 %s42, 1
          %s311 = sand.u32 %s42, 1
          %s312 = smul.addr %s311, 4096
          %s313 = scalar_lea.vmem [#allocation4], %s312
          %s314 = smul.u32 2, %s25
          %s315 = smul.u32 64, %s26
          %s316 = smul.addr %s315, 4
          %s317 = smul.addr %s314, 1024
          %s318 = sadd.s32 %s316, %s317
          %s319 = smul.addr %s318, 8
          %s320 = scalar_lea.vmem %s0, %s319
          // Predicated region
          $region49: #{tpu_custom_call.1} parent=47 // pred_check
            _
          $region50: #{tpu_custom_call.1} parent=47 // pred_check_branch
            %322 = sbr.rel (0) target = $region52
          $region51: #{tpu_custom_call.1} parent=47 // pred_region
            // Predicated region
            $region53: #{tpu_custom_call.1} parent=51 // pred_check
              _
            $region54: #{tpu_custom_call.1} parent=51 // pred_check_branch
              %324 = sbr.rel (0) target = $region56
            $region55: #{tpu_custom_call.1} parent=51 // pred_region
              loop: start=0, step=1, limit=1
              $region57: #{tpu_custom_call.1} parent=55 // loop_pre_header
                _
              $region58: #{tpu_custom_call.1} parent=55 // loop_header
                %s326 = sphi 0, %s330
                %p327 = scmp.ge.s32.totalorder %s326, 1
                %s331 = sphi %s320, %s320
                %s332 = sphi %s313, %s313
              $region59: #{tpu_custom_call.1} parent=55 // loop_header_branch
                %329 = sbr.rel (%p327) target = $region63
              $region60: #{tpu_custom_call.1} parent=55 // loop_body
                %v333 = vld [vmem:[%s331] sm:$0xff]
                %334 = vst [vmem:[%s332] sm:$0xff] %v333
                %v335 = vld [vmem:[%s331 + $0x8] sm:$0xff]
                %336 = vst [vmem:[%s332 + $0x8] sm:$0xff] %v335
                %v337 = vld [vmem:[%s331 + $0x10] sm:$0xff]
                %338 = vst [vmem:[%s332 + $0x10] sm:$0xff] %v337
                %v339 = vld [vmem:[%s331 + $0x18] sm:$0xff]
                %340 = vst [vmem:[%s332 + $0x18] sm:$0xff] %v339
                %v341 = vld [vmem:[%s331 + $0x20] sm:$0xff]
                %342 = vst [vmem:[%s332 + $0x20] sm:$0xff] %v341
                %v343 = vld [vmem:[%s331 + $0x28] sm:$0xff]
                %344 = vst [vmem:[%s332 + $0x28] sm:$0xff] %v343
                %v345 = vld [vmem:[%s331 + $0x30] sm:$0xff]
                %346 = vst [vmem:[%s332 + $0x30] sm:$0xff] %v345
                %v347 = vld [vmem:[%s331 + $0x38] sm:$0xff]
                %348 = vst [vmem:[%s332 + $0x38] sm:$0xff] %v347
                %v349 = vld [vmem:[%s331 + $0x40] sm:$0xff]
                %350 = vst [vmem:[%s332 + $0x40] sm:$0xff] %v349
                %v351 = vld [vmem:[%s331 + $0x48] sm:$0xff]
                %352 = vst [vmem:[%s332 + $0x48] sm:$0xff] %v351
                %v353 = vld [vmem:[%s331 + $0x50] sm:$0xff]
                %354 = vst [vmem:[%s332 + $0x50] sm:$0xff] %v353
                %v355 = vld [vmem:[%s331 + $0x58] sm:$0xff]
                %356 = vst [vmem:[%s332 + $0x58] sm:$0xff] %v355
                %v357 = vld [vmem:[%s331 + $0x60] sm:$0xff]
                %358 = vst [vmem:[%s332 + $0x60] sm:$0xff] %v357
                %v359 = vld [vmem:[%s331 + $0x68] sm:$0xff]
                %360 = vst [vmem:[%s332 + $0x68] sm:$0xff] %v359
                %v361 = vld [vmem:[%s331 + $0x70] sm:$0xff]
                %362 = vst [vmem:[%s332 + $0x70] sm:$0xff] %v361
                %v363 = vld [vmem:[%s331 + $0x78] sm:$0xff]
                %364 = vst [vmem:[%s332 + $0x78] sm:$0xff] %v363
                %v365 = vld [vmem:[%s331 + $0x80] sm:$0xff]
                %366 = vst [vmem:[%s332 + $0x80] sm:$0xff] %v365
                %v367 = vld [vmem:[%s331 + $0x88] sm:$0xff]
                %368 = vst [vmem:[%s332 + $0x88] sm:$0xff] %v367
                %v369 = vld [vmem:[%s331 + $0x90] sm:$0xff]
                %370 = vst [vmem:[%s332 + $0x90] sm:$0xff] %v369
                %v371 = vld [vmem:[%s331 + $0x98] sm:$0xff]
                %372 = vst [vmem:[%s332 + $0x98] sm:$0xff] %v371
                %v373 = vld [vmem:[%s331 + $0xa0] sm:$0xff]
                %374 = vst [vmem:[%s332 + $0xa0] sm:$0xff] %v373
                %v375 = vld [vmem:[%s331 + $0xa8] sm:$0xff]
                %376 = vst [vmem:[%s332 + $0xa8] sm:$0xff] %v375
                %v377 = vld [vmem:[%s331 + $0xb0] sm:$0xff]
                %378 = vst [vmem:[%s332 + $0xb0] sm:$0xff] %v377
                %v379 = vld [vmem:[%s331 + $0xb8] sm:$0xff]
                %380 = vst [vmem:[%s332 + $0xb8] sm:$0xff] %v379
                %v381 = vld [vmem:[%s331 + $0xc0] sm:$0xff]
                %382 = vst [vmem:[%s332 + $0xc0] sm:$0xff] %v381
                %v383 = vld [vmem:[%s331 + $0xc8] sm:$0xff]
                %384 = vst [vmem:[%s332 + $0xc8] sm:$0xff] %v383
                %v385 = vld [vmem:[%s331 + $0xd0] sm:$0xff]
                %386 = vst [vmem:[%s332 + $0xd0] sm:$0xff] %v385
                %v387 = vld [vmem:[%s331 + $0xd8] sm:$0xff]
                %388 = vst [vmem:[%s332 + $0xd8] sm:$0xff] %v387
                %v389 = vld [vmem:[%s331 + $0xe0] sm:$0xff]
                %390 = vst [vmem:[%s332 + $0xe0] sm:$0xff] %v389
                %v391 = vld [vmem:[%s331 + $0xe8] sm:$0xff]
                %392 = vst [vmem:[%s332 + $0xe8] sm:$0xff] %v391
                %v393 = vld [vmem:[%s331 + $0xf0] sm:$0xff]
                %394 = vst [vmem:[%s332 + $0xf0] sm:$0xff] %v393
                %v395 = vld [vmem:[%s331 + $0xf8] sm:$0xff]
                %396 = vst [vmem:[%s332 + $0xf8] sm:$0xff] %v395
                %v397 = vld [vmem:[%s331 + $0x100] sm:$0xff]
                %398 = vst [vmem:[%s332 + $0x100] sm:$0xff] %v397
                %v399 = vld [vmem:[%s331 + $0x108] sm:$0xff]
                %400 = vst [vmem:[%s332 + $0x108] sm:$0xff] %v399
                %v401 = vld [vmem:[%s331 + $0x110] sm:$0xff]
                %402 = vst [vmem:[%s332 + $0x110] sm:$0xff] %v401
                %v403 = vld [vmem:[%s331 + $0x118] sm:$0xff]
                %404 = vst [vmem:[%s332 + $0x118] sm:$0xff] %v403
                %v405 = vld [vmem:[%s331 + $0x120] sm:$0xff]
                %406 = vst [vmem:[%s332 + $0x120] sm:$0xff] %v405
                %v407 = vld [vmem:[%s331 + $0x128] sm:$0xff]
                %408 = vst [vmem:[%s332 + $0x128] sm:$0xff] %v407
                %v409 = vld [vmem:[%s331 + $0x130] sm:$0xff]
                %410 = vst [vmem:[%s332 + $0x130] sm:$0xff] %v409
                %v411 = vld [vmem:[%s331 + $0x138] sm:$0xff]
                %412 = vst [vmem:[%s332 + $0x138] sm:$0xff] %v411
                %v413 = vld [vmem:[%s331 + $0x140] sm:$0xff]
                %414 = vst [vmem:[%s332 + $0x140] sm:$0xff] %v413
                %v415 = vld [vmem:[%s331 + $0x148] sm:$0xff]
                %416 = vst [vmem:[%s332 + $0x148] sm:$0xff] %v415
                %v417 = vld [vmem:[%s331 + $0x150] sm:$0xff]
                %418 = vst [vmem:[%s332 + $0x150] sm:$0xff] %v417
                %v419 = vld [vmem:[%s331 + $0x158] sm:$0xff]
                %420 = vst [vmem:[%s332 + $0x158] sm:$0xff] %v419
                %v421 = vld [vmem:[%s331 + $0x160] sm:$0xff]
                %422 = vst [vmem:[%s332 + $0x160] sm:$0xff] %v421
                %v423 = vld [vmem:[%s331 + $0x168] sm:$0xff]
                %424 = vst [vmem:[%s332 + $0x168] sm:$0xff] %v423
                %v425 = vld [vmem:[%s331 + $0x170] sm:$0xff]
                %426 = vst [vmem:[%s332 + $0x170] sm:$0xff] %v425
                %v427 = vld [vmem:[%s331 + $0x178] sm:$0xff]
                %428 = vst [vmem:[%s332 + $0x178] sm:$0xff] %v427
                %v429 = vld [vmem:[%s331 + $0x180] sm:$0xff]
                %430 = vst [vmem:[%s332 + $0x180] sm:$0xff] %v429
                %v431 = vld [vmem:[%s331 + $0x188] sm:$0xff]
                %432 = vst [vmem:[%s332 + $0x188] sm:$0xff] %v431
                %v433 = vld [vmem:[%s331 + $0x190] sm:$0xff]
                %434 = vst [vmem:[%s332 + $0x190] sm:$0xff] %v433
                %v435 = vld [vmem:[%s331 + $0x198] sm:$0xff]
                %436 = vst [vmem:[%s332 + $0x198] sm:$0xff] %v435
                %v437 = vld [vmem:[%s331 + $0x1a0] sm:$0xff]
                %438 = vst [vmem:[%s332 + $0x1a0] sm:$0xff] %v437
                %v439 = vld [vmem:[%s331 + $0x1a8] sm:$0xff]
                %440 = vst [vmem:[%s332 + $0x1a8] sm:$0xff] %v439
                %v441 = vld [vmem:[%s331 + $0x1b0] sm:$0xff]
                %442 = vst [vmem:[%s332 + $0x1b0] sm:$0xff] %v441
                %v443 = vld [vmem:[%s331 + $0x1b8] sm:$0xff]
                %444 = vst [vmem:[%s332 + $0x1b8] sm:$0xff] %v443
                %v445 = vld [vmem:[%s331 + $0x1c0] sm:$0xff]
                %446 = vst [vmem:[%s332 + $0x1c0] sm:$0xff] %v445
                %v447 = vld [vmem:[%s331 + $0x1c8] sm:$0xff]
                %448 = vst [vmem:[%s332 + $0x1c8] sm:$0xff] %v447
                %v449 = vld [vmem:[%s331 + $0x1d0] sm:$0xff]
                %450 = vst [vmem:[%s332 + $0x1d0] sm:$0xff] %v449
                %v451 = vld [vmem:[%s331 + $0x1d8] sm:$0xff]
                %452 = vst [vmem:[%s332 + $0x1d8] sm:$0xff] %v451
                %v453 = vld [vmem:[%s331 + $0x1e0] sm:$0xff]
                %454 = vst [vmem:[%s332 + $0x1e0] sm:$0xff] %v453
                %v455 = vld [vmem:[%s331 + $0x1e8] sm:$0xff]
                %456 = vst [vmem:[%s332 + $0x1e8] sm:$0xff] %v455
                %v457 = vld [vmem:[%s331 + $0x1f0] sm:$0xff]
                %458 = vst [vmem:[%s332 + $0x1f0] sm:$0xff] %v457
                %v459 = vld [vmem:[%s331 + $0x1f8] sm:$0xff]
                %460 = vst [vmem:[%s332 + $0x1f8] sm:$0xff] %v459
                %v461 = vld [vmem:[%s331 + $0x200] sm:$0xff]
                %462 = vst [vmem:[%s332 + $0x200] sm:$0xff] %v461
                %v463 = vld [vmem:[%s331 + $0x208] sm:$0xff]
                %464 = vst [vmem:[%s332 + $0x208] sm:$0xff] %v463
                %v465 = vld [vmem:[%s331 + $0x210] sm:$0xff]
                %466 = vst [vmem:[%s332 + $0x210] sm:$0xff] %v465
                %v467 = vld [vmem:[%s331 + $0x218] sm:$0xff]
                %468 = vst [vmem:[%s332 + $0x218] sm:$0xff] %v467
                %v469 = vld [vmem:[%s331 + $0x220] sm:$0xff]
                %470 = vst [vmem:[%s332 + $0x220] sm:$0xff] %v469
                %v471 = vld [vmem:[%s331 + $0x228] sm:$0xff]
                %472 = vst [vmem:[%s332 + $0x228] sm:$0xff] %v471
                %v473 = vld [vmem:[%s331 + $0x230] sm:$0xff]
                %474 = vst [vmem:[%s332 + $0x230] sm:$0xff] %v473
                %v475 = vld [vmem:[%s331 + $0x238] sm:$0xff]
                %476 = vst [vmem:[%s332 + $0x238] sm:$0xff] %v475
                %v477 = vld [vmem:[%s331 + $0x240] sm:$0xff]
                %478 = vst [vmem:[%s332 + $0x240] sm:$0xff] %v477
                %v479 = vld [vmem:[%s331 + $0x248] sm:$0xff]
                %480 = vst [vmem:[%s332 + $0x248] sm:$0xff] %v479
                %v481 = vld [vmem:[%s331 + $0x250] sm:$0xff]
                %482 = vst [vmem:[%s332 + $0x250] sm:$0xff] %v481
                %v483 = vld [vmem:[%s331 + $0x258] sm:$0xff]
                %484 = vst [vmem:[%s332 + $0x258] sm:$0xff] %v483
                %v485 = vld [vmem:[%s331 + $0x260] sm:$0xff]
                %486 = vst [vmem:[%s332 + $0x260] sm:$0xff] %v485
                %v487 = vld [vmem:[%s331 + $0x268] sm:$0xff]
                %488 = vst [vmem:[%s332 + $0x268] sm:$0xff] %v487
                %v489 = vld [vmem:[%s331 + $0x270] sm:$0xff]
                %490 = vst [vmem:[%s332 + $0x270] sm:$0xff] %v489
                %v491 = vld [vmem:[%s331 + $0x278] sm:$0xff]
                %492 = vst [vmem:[%s332 + $0x278] sm:$0xff] %v491
                %v493 = vld [vmem:[%s331 + $0x280] sm:$0xff]
                %494 = vst [vmem:[%s332 + $0x280] sm:$0xff] %v493
                %v495 = vld [vmem:[%s331 + $0x288] sm:$0xff]
                %496 = vst [vmem:[%s332 + $0x288] sm:$0xff] %v495
                %v497 = vld [vmem:[%s331 + $0x290] sm:$0xff]
                %498 = vst [vmem:[%s332 + $0x290] sm:$0xff] %v497
                %v499 = vld [vmem:[%s331 + $0x298] sm:$0xff]
                %500 = vst [vmem:[%s332 + $0x298] sm:$0xff] %v499
                %v501 = vld [vmem:[%s331 + $0x2a0] sm:$0xff]
                %502 = vst [vmem:[%s332 + $0x2a0] sm:$0xff] %v501
                %v503 = vld [vmem:[%s331 + $0x2a8] sm:$0xff]
                %504 = vst [vmem:[%s332 + $0x2a8] sm:$0xff] %v503
                %v505 = vld [vmem:[%s331 + $0x2b0] sm:$0xff]
                %506 = vst [vmem:[%s332 + $0x2b0] sm:$0xff] %v505
                %v507 = vld [vmem:[%s331 + $0x2b8] sm:$0xff]
                %508 = vst [vmem:[%s332 + $0x2b8] sm:$0xff] %v507
                %v509 = vld [vmem:[%s331 + $0x2c0] sm:$0xff]
                %510 = vst [vmem:[%s332 + $0x2c0] sm:$0xff] %v509
                %v511 = vld [vmem:[%s331 + $0x2c8] sm:$0xff]
                %512 = vst [vmem:[%s332 + $0x2c8] sm:$0xff] %v511
                %v513 = vld [vmem:[%s331 + $0x2d0] sm:$0xff]
                %514 = vst [vmem:[%s332 + $0x2d0] sm:$0xff] %v513
                %v515 = vld [vmem:[%s331 + $0x2d8] sm:$0xff]
                %516 = vst [vmem:[%s332 + $0x2d8] sm:$0xff] %v515
                %v517 = vld [vmem:[%s331 + $0x2e0] sm:$0xff]
                %518 = vst [vmem:[%s332 + $0x2e0] sm:$0xff] %v517
                %v519 = vld [vmem:[%s331 + $0x2e8] sm:$0xff]
                %520 = vst [vmem:[%s332 + $0x2e8] sm:$0xff] %v519
                %v521 = vld [vmem:[%s331 + $0x2f0] sm:$0xff]
                %522 = vst [vmem:[%s332 + $0x2f0] sm:$0xff] %v521
                %v523 = vld [vmem:[%s331 + $0x2f8] sm:$0xff]
                %524 = vst [vmem:[%s332 + $0x2f8] sm:$0xff] %v523
                %v525 = vld [vmem:[%s331 + $0x300] sm:$0xff]
                %526 = vst [vmem:[%s332 + $0x300] sm:$0xff] %v525
                %v527 = vld [vmem:[%s331 + $0x308] sm:$0xff]
                %528 = vst [vmem:[%s332 + $0x308] sm:$0xff] %v527
                %v529 = vld [vmem:[%s331 + $0x310] sm:$0xff]
                %530 = vst [vmem:[%s332 + $0x310] sm:$0xff] %v529
                %v531 = vld [vmem:[%s331 + $0x318] sm:$0xff]
                %532 = vst [vmem:[%s332 + $0x318] sm:$0xff] %v531
                %v533 = vld [vmem:[%s331 + $0x320] sm:$0xff]
                %534 = vst [vmem:[%s332 + $0x320] sm:$0xff] %v533
                %v535 = vld [vmem:[%s331 + $0x328] sm:$0xff]
                %536 = vst [vmem:[%s332 + $0x328] sm:$0xff] %v535
                %v537 = vld [vmem:[%s331 + $0x330] sm:$0xff]
                %538 = vst [vmem:[%s332 + $0x330] sm:$0xff] %v537
                %v539 = vld [vmem:[%s331 + $0x338] sm:$0xff]
                %540 = vst [vmem:[%s332 + $0x338] sm:$0xff] %v539
                %v541 = vld [vmem:[%s331 + $0x340] sm:$0xff]
                %542 = vst [vmem:[%s332 + $0x340] sm:$0xff] %v541
                %v543 = vld [vmem:[%s331 + $0x348] sm:$0xff]
                %544 = vst [vmem:[%s332 + $0x348] sm:$0xff] %v543
                %v545 = vld [vmem:[%s331 + $0x350] sm:$0xff]
                %546 = vst [vmem:[%s332 + $0x350] sm:$0xff] %v545
                %v547 = vld [vmem:[%s331 + $0x358] sm:$0xff]
                %548 = vst [vmem:[%s332 + $0x358] sm:$0xff] %v547
                %v549 = vld [vmem:[%s331 + $0x360] sm:$0xff]
                %550 = vst [vmem:[%s332 + $0x360] sm:$0xff] %v549
                %v551 = vld [vmem:[%s331 + $0x368] sm:$0xff]
                %552 = vst [vmem:[%s332 + $0x368] sm:$0xff] %v551
                %v553 = vld [vmem:[%s331 + $0x370] sm:$0xff]
                %554 = vst [vmem:[%s332 + $0x370] sm:$0xff] %v553
                %v555 = vld [vmem:[%s331 + $0x378] sm:$0xff]
                %556 = vst [vmem:[%s332 + $0x378] sm:$0xff] %v555
                %v557 = vld [vmem:[%s331 + $0x380] sm:$0xff]
                %558 = vst [vmem:[%s332 + $0x380] sm:$0xff] %v557
                %v559 = vld [vmem:[%s331 + $0x388] sm:$0xff]
                %560 = vst [vmem:[%s332 + $0x388] sm:$0xff] %v559
                %v561 = vld [vmem:[%s331 + $0x390] sm:$0xff]
                %562 = vst [vmem:[%s332 + $0x390] sm:$0xff] %v561
                %v563 = vld [vmem:[%s331 + $0x398] sm:$0xff]
                %564 = vst [vmem:[%s332 + $0x398] sm:$0xff] %v563
                %v565 = vld [vmem:[%s331 + $0x3a0] sm:$0xff]
                %566 = vst [vmem:[%s332 + $0x3a0] sm:$0xff] %v565
                %v567 = vld [vmem:[%s331 + $0x3a8] sm:$0xff]
                %568 = vst [vmem:[%s332 + $0x3a8] sm:$0xff] %v567
                %v569 = vld [vmem:[%s331 + $0x3b0] sm:$0xff]
                %570 = vst [vmem:[%s332 + $0x3b0] sm:$0xff] %v569
                %v571 = vld [vmem:[%s331 + $0x3b8] sm:$0xff]
                %572 = vst [vmem:[%s332 + $0x3b8] sm:$0xff] %v571
                %v573 = vld [vmem:[%s331 + $0x3c0] sm:$0xff]
                %574 = vst [vmem:[%s332 + $0x3c0] sm:$0xff] %v573
                %v575 = vld [vmem:[%s331 + $0x3c8] sm:$0xff]
                %576 = vst [vmem:[%s332 + $0x3c8] sm:$0xff] %v575
                %v577 = vld [vmem:[%s331 + $0x3d0] sm:$0xff]
                %578 = vst [vmem:[%s332 + $0x3d0] sm:$0xff] %v577
                %v579 = vld [vmem:[%s331 + $0x3d8] sm:$0xff]
                %580 = vst [vmem:[%s332 + $0x3d8] sm:$0xff] %v579
                %v581 = vld [vmem:[%s331 + $0x3e0] sm:$0xff]
                %582 = vst [vmem:[%s332 + $0x3e0] sm:$0xff] %v581
                %v583 = vld [vmem:[%s331 + $0x3e8] sm:$0xff]
                %584 = vst [vmem:[%s332 + $0x3e8] sm:$0xff] %v583
                %v585 = vld [vmem:[%s331 + $0x3f0] sm:$0xff]
                %586 = vst [vmem:[%s332 + $0x3f0] sm:$0xff] %v585
                %v587 = vld [vmem:[%s331 + $0x3f8] sm:$0xff]
                %588 = vst [vmem:[%s332 + $0x3f8] sm:$0xff] %v587
                %v589 = vld [vmem:[%s331 + $0x400] sm:$0xff]
                %590 = vst [vmem:[%s332 + $0x400] sm:$0xff] %v589
                %v591 = vld [vmem:[%s331 + $0x408] sm:$0xff]
                %592 = vst [vmem:[%s332 + $0x408] sm:$0xff] %v591
                %v593 = vld [vmem:[%s331 + $0x410] sm:$0xff]
                %594 = vst [vmem:[%s332 + $0x410] sm:$0xff] %v593
                %v595 = vld [vmem:[%s331 + $0x418] sm:$0xff]
                %596 = vst [vmem:[%s332 + $0x418] sm:$0xff] %v595
                %v597 = vld [vmem:[%s331 + $0x420] sm:$0xff]
                %598 = vst [vmem:[%s332 + $0x420] sm:$0xff] %v597
                %v599 = vld [vmem:[%s331 + $0x428] sm:$0xff]
                %600 = vst [vmem:[%s332 + $0x428] sm:$0xff] %v599
                %v601 = vld [vmem:[%s331 + $0x430] sm:$0xff]
                %602 = vst [vmem:[%s332 + $0x430] sm:$0xff] %v601
                %v603 = vld [vmem:[%s331 + $0x438] sm:$0xff]
                %604 = vst [vmem:[%s332 + $0x438] sm:$0xff] %v603
                %v605 = vld [vmem:[%s331 + $0x440] sm:$0xff]
                %606 = vst [vmem:[%s332 + $0x440] sm:$0xff] %v605
                %v607 = vld [vmem:[%s331 + $0x448] sm:$0xff]
                %608 = vst [vmem:[%s332 + $0x448] sm:$0xff] %v607
                %v609 = vld [vmem:[%s331 + $0x450] sm:$0xff]
                %610 = vst [vmem:[%s332 + $0x450] sm:$0xff] %v609
                %v611 = vld [vmem:[%s331 + $0x458] sm:$0xff]
                %612 = vst [vmem:[%s332 + $0x458] sm:$0xff] %v611
                %v613 = vld [vmem:[%s331 + $0x460] sm:$0xff]
                %614 = vst [vmem:[%s332 + $0x460] sm:$0xff] %v613
                %v615 = vld [vmem:[%s331 + $0x468] sm:$0xff]
                %616 = vst [vmem:[%s332 + $0x468] sm:$0xff] %v615
                %v617 = vld [vmem:[%s331 + $0x470] sm:$0xff]
                %618 = vst [vmem:[%s332 + $0x470] sm:$0xff] %v617
                %v619 = vld [vmem:[%s331 + $0x478] sm:$0xff]
                %620 = vst [vmem:[%s332 + $0x478] sm:$0xff] %v619
                %v621 = vld [vmem:[%s331 + $0x480] sm:$0xff]
                %622 = vst [vmem:[%s332 + $0x480] sm:$0xff] %v621
                %v623 = vld [vmem:[%s331 + $0x488] sm:$0xff]
                %624 = vst [vmem:[%s332 + $0x488] sm:$0xff] %v623
                %v625 = vld [vmem:[%s331 + $0x490] sm:$0xff]
                %626 = vst [vmem:[%s332 + $0x490] sm:$0xff] %v625
                %v627 = vld [vmem:[%s331 + $0x498] sm:$0xff]
                %628 = vst [vmem:[%s332 + $0x498] sm:$0xff] %v627
                %v629 = vld [vmem:[%s331 + $0x4a0] sm:$0xff]
                %630 = vst [vmem:[%s332 + $0x4a0] sm:$0xff] %v629
                %v631 = vld [vmem:[%s331 + $0x4a8] sm:$0xff]
                %632 = vst [vmem:[%s332 + $0x4a8] sm:$0xff] %v631
                %v633 = vld [vmem:[%s331 + $0x4b0] sm:$0xff]
                %634 = vst [vmem:[%s332 + $0x4b0] sm:$0xff] %v633
                %v635 = vld [vmem:[%s331 + $0x4b8] sm:$0xff]
                %636 = vst [vmem:[%s332 + $0x4b8] sm:$0xff] %v635
                %v637 = vld [vmem:[%s331 + $0x4c0] sm:$0xff]
                %638 = vst [vmem:[%s332 + $0x4c0] sm:$0xff] %v637
                %v639 = vld [vmem:[%s331 + $0x4c8] sm:$0xff]
                %640 = vst [vmem:[%s332 + $0x4c8] sm:$0xff] %v639
                %v641 = vld [vmem:[%s331 + $0x4d0] sm:$0xff]
                %642 = vst [vmem:[%s332 + $0x4d0] sm:$0xff] %v641
                %v643 = vld [vmem:[%s331 + $0x4d8] sm:$0xff]
                %644 = vst [vmem:[%s332 + $0x4d8] sm:$0xff] %v643
                %v645 = vld [vmem:[%s331 + $0x4e0] sm:$0xff]
                %646 = vst [vmem:[%s332 + $0x4e0] sm:$0xff] %v645
                %v647 = vld [vmem:[%s331 + $0x4e8] sm:$0xff]
                %648 = vst [vmem:[%s332 + $0x4e8] sm:$0xff] %v647
                %v649 = vld [vmem:[%s331 + $0x4f0] sm:$0xff]
                %650 = vst [vmem:[%s332 + $0x4f0] sm:$0xff] %v649
                %v651 = vld [vmem:[%s331 + $0x4f8] sm:$0xff]
                %652 = vst [vmem:[%s332 + $0x4f8] sm:$0xff] %v651
                %v653 = vld [vmem:[%s331 + $0x500] sm:$0xff]
                %654 = vst [vmem:[%s332 + $0x500] sm:$0xff] %v653
                %v655 = vld [vmem:[%s331 + $0x508] sm:$0xff]
                %656 = vst [vmem:[%s332 + $0x508] sm:$0xff] %v655
                %v657 = vld [vmem:[%s331 + $0x510] sm:$0xff]
                %658 = vst [vmem:[%s332 + $0x510] sm:$0xff] %v657
                %v659 = vld [vmem:[%s331 + $0x518] sm:$0xff]
                %660 = vst [vmem:[%s332 + $0x518] sm:$0xff] %v659
                %v661 = vld [vmem:[%s331 + $0x520] sm:$0xff]
                %662 = vst [vmem:[%s332 + $0x520] sm:$0xff] %v661
                %v663 = vld [vmem:[%s331 + $0x528] sm:$0xff]
                %664 = vst [vmem:[%s332 + $0x528] sm:$0xff] %v663
                %v665 = vld [vmem:[%s331 + $0x530] sm:$0xff]
                %666 = vst [vmem:[%s332 + $0x530] sm:$0xff] %v665
                %v667 = vld [vmem:[%s331 + $0x538] sm:$0xff]
                %668 = vst [vmem:[%s332 + $0x538] sm:$0xff] %v667
                %v669 = vld [vmem:[%s331 + $0x540] sm:$0xff]
                %670 = vst [vmem:[%s332 + $0x540] sm:$0xff] %v669
                %v671 = vld [vmem:[%s331 + $0x548] sm:$0xff]
                %672 = vst [vmem:[%s332 + $0x548] sm:$0xff] %v671
                %v673 = vld [vmem:[%s331 + $0x550] sm:$0xff]
                %674 = vst [vmem:[%s332 + $0x550] sm:$0xff] %v673
                %v675 = vld [vmem:[%s331 + $0x558] sm:$0xff]
                %676 = vst [vmem:[%s332 + $0x558] sm:$0xff] %v675
                %v677 = vld [vmem:[%s331 + $0x560] sm:$0xff]
                %678 = vst [vmem:[%s332 + $0x560] sm:$0xff] %v677
                %v679 = vld [vmem:[%s331 + $0x568] sm:$0xff]
                %680 = vst [vmem:[%s332 + $0x568] sm:$0xff] %v679
                %v681 = vld [vmem:[%s331 + $0x570] sm:$0xff]
                %682 = vst [vmem:[%s332 + $0x570] sm:$0xff] %v681
                %v683 = vld [vmem:[%s331 + $0x578] sm:$0xff]
                %684 = vst [vmem:[%s332 + $0x578] sm:$0xff] %v683
                %v685 = vld [vmem:[%s331 + $0x580] sm:$0xff]
                %686 = vst [vmem:[%s332 + $0x580] sm:$0xff] %v685
                %v687 = vld [vmem:[%s331 + $0x588] sm:$0xff]
                %688 = vst [vmem:[%s332 + $0x588] sm:$0xff] %v687
                %v689 = vld [vmem:[%s331 + $0x590] sm:$0xff]
                %690 = vst [vmem:[%s332 + $0x590] sm:$0xff] %v689
                %v691 = vld [vmem:[%s331 + $0x598] sm:$0xff]
                %692 = vst [vmem:[%s332 + $0x598] sm:$0xff] %v691
                %v693 = vld [vmem:[%s331 + $0x5a0] sm:$0xff]
                %694 = vst [vmem:[%s332 + $0x5a0] sm:$0xff] %v693
                %v695 = vld [vmem:[%s331 + $0x5a8] sm:$0xff]
                %696 = vst [vmem:[%s332 + $0x5a8] sm:$0xff] %v695
                %v697 = vld [vmem:[%s331 + $0x5b0] sm:$0xff]
                %698 = vst [vmem:[%s332 + $0x5b0] sm:$0xff] %v697
                %v699 = vld [vmem:[%s331 + $0x5b8] sm:$0xff]
                %700 = vst [vmem:[%s332 + $0x5b8] sm:$0xff] %v699
                %v701 = vld [vmem:[%s331 + $0x5c0] sm:$0xff]
                %702 = vst [vmem:[%s332 + $0x5c0] sm:$0xff] %v701
                %v703 = vld [vmem:[%s331 + $0x5c8] sm:$0xff]
                %704 = vst [vmem:[%s332 + $0x5c8] sm:$0xff] %v703
                %v705 = vld [vmem:[%s331 + $0x5d0] sm:$0xff]
                %706 = vst [vmem:[%s332 + $0x5d0] sm:$0xff] %v705
                %v707 = vld [vmem:[%s331 + $0x5d8] sm:$0xff]
                %708 = vst [vmem:[%s332 + $0x5d8] sm:$0xff] %v707
                %v709 = vld [vmem:[%s331 + $0x5e0] sm:$0xff]
                %710 = vst [vmem:[%s332 + $0x5e0] sm:$0xff] %v709
                %v711 = vld [vmem:[%s331 + $0x5e8] sm:$0xff]
                %712 = vst [vmem:[%s332 + $0x5e8] sm:$0xff] %v711
                %v713 = vld [vmem:[%s331 + $0x5f0] sm:$0xff]
                %714 = vst [vmem:[%s332 + $0x5f0] sm:$0xff] %v713
                %v715 = vld [vmem:[%s331 + $0x5f8] sm:$0xff]
                %716 = vst [vmem:[%s332 + $0x5f8] sm:$0xff] %v715
                %v717 = vld [vmem:[%s331 + $0x600] sm:$0xff]
                %718 = vst [vmem:[%s332 + $0x600] sm:$0xff] %v717
                %v719 = vld [vmem:[%s331 + $0x608] sm:$0xff]
                %720 = vst [vmem:[%s332 + $0x608] sm:$0xff] %v719
                %v721 = vld [vmem:[%s331 + $0x610] sm:$0xff]
                %722 = vst [vmem:[%s332 + $0x610] sm:$0xff] %v721
                %v723 = vld [vmem:[%s331 + $0x618] sm:$0xff]
                %724 = vst [vmem:[%s332 + $0x618] sm:$0xff] %v723
                %v725 = vld [vmem:[%s331 + $0x620] sm:$0xff]
                %726 = vst [vmem:[%s332 + $0x620] sm:$0xff] %v725
                %v727 = vld [vmem:[%s331 + $0x628] sm:$0xff]
                %728 = vst [vmem:[%s332 + $0x628] sm:$0xff] %v727
                %v729 = vld [vmem:[%s331 + $0x630] sm:$0xff]
                %730 = vst [vmem:[%s332 + $0x630] sm:$0xff] %v729
                %v731 = vld [vmem:[%s331 + $0x638] sm:$0xff]
                %732 = vst [vmem:[%s332 + $0x638] sm:$0xff] %v731
                %v733 = vld [vmem:[%s331 + $0x640] sm:$0xff]
                %734 = vst [vmem:[%s332 + $0x640] sm:$0xff] %v733
                %v735 = vld [vmem:[%s331 + $0x648] sm:$0xff]
                %736 = vst [vmem:[%s332 + $0x648] sm:$0xff] %v735
                %v737 = vld [vmem:[%s331 + $0x650] sm:$0xff]
                %738 = vst [vmem:[%s332 + $0x650] sm:$0xff] %v737
                %v739 = vld [vmem:[%s331 + $0x658] sm:$0xff]
                %740 = vst [vmem:[%s332 + $0x658] sm:$0xff] %v739
                %v741 = vld [vmem:[%s331 + $0x660] sm:$0xff]
                %742 = vst [vmem:[%s332 + $0x660] sm:$0xff] %v741
                %v743 = vld [vmem:[%s331 + $0x668] sm:$0xff]
                %744 = vst [vmem:[%s332 + $0x668] sm:$0xff] %v743
                %v745 = vld [vmem:[%s331 + $0x670] sm:$0xff]
                %746 = vst [vmem:[%s332 + $0x670] sm:$0xff] %v745
                %v747 = vld [vmem:[%s331 + $0x678] sm:$0xff]
                %748 = vst [vmem:[%s332 + $0x678] sm:$0xff] %v747
                %v749 = vld [vmem:[%s331 + $0x680] sm:$0xff]
                %750 = vst [vmem:[%s332 + $0x680] sm:$0xff] %v749
                %v751 = vld [vmem:[%s331 + $0x688] sm:$0xff]
                %752 = vst [vmem:[%s332 + $0x688] sm:$0xff] %v751
                %v753 = vld [vmem:[%s331 + $0x690] sm:$0xff]
                %754 = vst [vmem:[%s332 + $0x690] sm:$0xff] %v753
                %v755 = vld [vmem:[%s331 + $0x698] sm:$0xff]
                %756 = vst [vmem:[%s332 + $0x698] sm:$0xff] %v755
                %v757 = vld [vmem:[%s331 + $0x6a0] sm:$0xff]
                %758 = vst [vmem:[%s332 + $0x6a0] sm:$0xff] %v757
                %v759 = vld [vmem:[%s331 + $0x6a8] sm:$0xff]
                %760 = vst [vmem:[%s332 + $0x6a8] sm:$0xff] %v759
                %v761 = vld [vmem:[%s331 + $0x6b0] sm:$0xff]
                %762 = vst [vmem:[%s332 + $0x6b0] sm:$0xff] %v761
                %v763 = vld [vmem:[%s331 + $0x6b8] sm:$0xff]
                %764 = vst [vmem:[%s332 + $0x6b8] sm:$0xff] %v763
                %v765 = vld [vmem:[%s331 + $0x6c0] sm:$0xff]
                %766 = vst [vmem:[%s332 + $0x6c0] sm:$0xff] %v765
                %v767 = vld [vmem:[%s331 + $0x6c8] sm:$0xff]
                %768 = vst [vmem:[%s332 + $0x6c8] sm:$0xff] %v767
                %v769 = vld [vmem:[%s331 + $0x6d0] sm:$0xff]
                %770 = vst [vmem:[%s332 + $0x6d0] sm:$0xff] %v769
                %v771 = vld [vmem:[%s331 + $0x6d8] sm:$0xff]
                %772 = vst [vmem:[%s332 + $0x6d8] sm:$0xff] %v771
                %v773 = vld [vmem:[%s331 + $0x6e0] sm:$0xff]
                %774 = vst [vmem:[%s332 + $0x6e0] sm:$0xff] %v773
                %v775 = vld [vmem:[%s331 + $0x6e8] sm:$0xff]
                %776 = vst [vmem:[%s332 + $0x6e8] sm:$0xff] %v775
                %v777 = vld [vmem:[%s331 + $0x6f0] sm:$0xff]
                %778 = vst [vmem:[%s332 + $0x6f0] sm:$0xff] %v777
                %v779 = vld [vmem:[%s331 + $0x6f8] sm:$0xff]
                %780 = vst [vmem:[%s332 + $0x6f8] sm:$0xff] %v779
                %v781 = vld [vmem:[%s331 + $0x700] sm:$0xff]
                %782 = vst [vmem:[%s332 + $0x700] sm:$0xff] %v781
                %v783 = vld [vmem:[%s331 + $0x708] sm:$0xff]
                %784 = vst [vmem:[%s332 + $0x708] sm:$0xff] %v783
                %v785 = vld [vmem:[%s331 + $0x710] sm:$0xff]
                %786 = vst [vmem:[%s332 + $0x710] sm:$0xff] %v785
                %v787 = vld [vmem:[%s331 + $0x718] sm:$0xff]
                %788 = vst [vmem:[%s332 + $0x718] sm:$0xff] %v787
                %v789 = vld [vmem:[%s331 + $0x720] sm:$0xff]
                %790 = vst [vmem:[%s332 + $0x720] sm:$0xff] %v789
                %v791 = vld [vmem:[%s331 + $0x728] sm:$0xff]
                %792 = vst [vmem:[%s332 + $0x728] sm:$0xff] %v791
                %v793 = vld [vmem:[%s331 + $0x730] sm:$0xff]
                %794 = vst [vmem:[%s332 + $0x730] sm:$0xff] %v793
                %v795 = vld [vmem:[%s331 + $0x738] sm:$0xff]
                %796 = vst [vmem:[%s332 + $0x738] sm:$0xff] %v795
                %v797 = vld [vmem:[%s331 + $0x740] sm:$0xff]
                %798 = vst [vmem:[%s332 + $0x740] sm:$0xff] %v797
                %v799 = vld [vmem:[%s331 + $0x748] sm:$0xff]
                %800 = vst [vmem:[%s332 + $0x748] sm:$0xff] %v799
                %v801 = vld [vmem:[%s331 + $0x750] sm:$0xff]
                %802 = vst [vmem:[%s332 + $0x750] sm:$0xff] %v801
                %v803 = vld [vmem:[%s331 + $0x758] sm:$0xff]
                %804 = vst [vmem:[%s332 + $0x758] sm:$0xff] %v803
                %v805 = vld [vmem:[%s331 + $0x760] sm:$0xff]
                %806 = vst [vmem:[%s332 + $0x760] sm:$0xff] %v805
                %v807 = vld [vmem:[%s331 + $0x768] sm:$0xff]
                %808 = vst [vmem:[%s332 + $0x768] sm:$0xff] %v807
                %v809 = vld [vmem:[%s331 + $0x770] sm:$0xff]
                %810 = vst [vmem:[%s332 + $0x770] sm:$0xff] %v809
                %v811 = vld [vmem:[%s331 + $0x778] sm:$0xff]
                %812 = vst [vmem:[%s332 + $0x778] sm:$0xff] %v811
                %v813 = vld [vmem:[%s331 + $0x780] sm:$0xff]
                %814 = vst [vmem:[%s332 + $0x780] sm:$0xff] %v813
                %v815 = vld [vmem:[%s331 + $0x788] sm:$0xff]
                %816 = vst [vmem:[%s332 + $0x788] sm:$0xff] %v815
                %v817 = vld [vmem:[%s331 + $0x790] sm:$0xff]
                %818 = vst [vmem:[%s332 + $0x790] sm:$0xff] %v817
                %v819 = vld [vmem:[%s331 + $0x798] sm:$0xff]
                %820 = vst [vmem:[%s332 + $0x798] sm:$0xff] %v819
                %v821 = vld [vmem:[%s331 + $0x7a0] sm:$0xff]
                %822 = vst [vmem:[%s332 + $0x7a0] sm:$0xff] %v821
                %v823 = vld [vmem:[%s331 + $0x7a8] sm:$0xff]
                %824 = vst [vmem:[%s332 + $0x7a8] sm:$0xff] %v823
                %v825 = vld [vmem:[%s331 + $0x7b0] sm:$0xff]
                %826 = vst [vmem:[%s332 + $0x7b0] sm:$0xff] %v825
                %v827 = vld [vmem:[%s331 + $0x7b8] sm:$0xff]
                %828 = vst [vmem:[%s332 + $0x7b8] sm:$0xff] %v827
                %v829 = vld [vmem:[%s331 + $0x7c0] sm:$0xff]
                %830 = vst [vmem:[%s332 + $0x7c0] sm:$0xff] %v829
                %v831 = vld [vmem:[%s331 + $0x7c8] sm:$0xff]
                %832 = vst [vmem:[%s332 + $0x7c8] sm:$0xff] %v831
                %v833 = vld [vmem:[%s331 + $0x7d0] sm:$0xff]
                %834 = vst [vmem:[%s332 + $0x7d0] sm:$0xff] %v833
                %v835 = vld [vmem:[%s331 + $0x7d8] sm:$0xff]
                %836 = vst [vmem:[%s332 + $0x7d8] sm:$0xff] %v835
                %v837 = vld [vmem:[%s331 + $0x7e0] sm:$0xff]
                %838 = vst [vmem:[%s332 + $0x7e0] sm:$0xff] %v837
                %v839 = vld [vmem:[%s331 + $0x7e8] sm:$0xff]
                %840 = vst [vmem:[%s332 + $0x7e8] sm:$0xff] %v839
                %v841 = vld [vmem:[%s331 + $0x7f0] sm:$0xff]
                %842 = vst [vmem:[%s332 + $0x7f0] sm:$0xff] %v841
                %v843 = vld [vmem:[%s331 + $0x7f8] sm:$0xff]
                %844 = vst [vmem:[%s332 + $0x7f8] sm:$0xff] %v843
                %v845 = vld [vmem:[%s331 + $0x2000] sm:$0xff]
                %846 = vst [vmem:[%s332 + $0x800] sm:$0xff] %v845
                %v847 = vld [vmem:[%s331 + $0x2008] sm:$0xff]
                %848 = vst [vmem:[%s332 + $0x808] sm:$0xff] %v847
                %v849 = vld [vmem:[%s331 + $0x2010] sm:$0xff]
                %850 = vst [vmem:[%s332 + $0x810] sm:$0xff] %v849
                %v851 = vld [vmem:[%s331 + $0x2018] sm:$0xff]
                %852 = vst [vmem:[%s332 + $0x818] sm:$0xff] %v851
                %v853 = vld [vmem:[%s331 + $0x2020] sm:$0xff]
                %854 = vst [vmem:[%s332 + $0x820] sm:$0xff] %v853
                %v855 = vld [vmem:[%s331 + $0x2028] sm:$0xff]
                %856 = vst [vmem:[%s332 + $0x828] sm:$0xff] %v855
                %v857 = vld [vmem:[%s331 + $0x2030] sm:$0xff]
                %858 = vst [vmem:[%s332 + $0x830] sm:$0xff] %v857
                %v859 = vld [vmem:[%s331 + $0x2038] sm:$0xff]
                %860 = vst [vmem:[%s332 + $0x838] sm:$0xff] %v859
                %v861 = vld [vmem:[%s331 + $0x2040] sm:$0xff]
                %862 = vst [vmem:[%s332 + $0x840] sm:$0xff] %v861
                %v863 = vld [vmem:[%s331 + $0x2048] sm:$0xff]
                %864 = vst [vmem:[%s332 + $0x848] sm:$0xff] %v863
                %v865 = vld [vmem:[%s331 + $0x2050] sm:$0xff]
                %866 = vst [vmem:[%s332 + $0x850] sm:$0xff] %v865
                %v867 = vld [vmem:[%s331 + $0x2058] sm:$0xff]
                %868 = vst [vmem:[%s332 + $0x858] sm:$0xff] %v867
                %v869 = vld [vmem:[%s331 + $0x2060] sm:$0xff]
                %870 = vst [vmem:[%s332 + $0x860] sm:$0xff] %v869
                %v871 = vld [vmem:[%s331 + $0x2068] sm:$0xff]
                %872 = vst [vmem:[%s332 + $0x868] sm:$0xff] %v871
                %v873 = vld [vmem:[%s331 + $0x2070] sm:$0xff]
                %874 = vst [vmem:[%s332 + $0x870] sm:$0xff] %v873
                %v875 = vld [vmem:[%s331 + $0x2078] sm:$0xff]
                %876 = vst [vmem:[%s332 + $0x878] sm:$0xff] %v875
                %v877 = vld [vmem:[%s331 + $0x2080] sm:$0xff]
                %878 = vst [vmem:[%s332 + $0x880] sm:$0xff] %v877
                %v879 = vld [vmem:[%s331 + $0x2088] sm:$0xff]
                %880 = vst [vmem:[%s332 + $0x888] sm:$0xff] %v879
                %v881 = vld [vmem:[%s331 + $0x2090] sm:$0xff]
                %882 = vst [vmem:[%s332 + $0x890] sm:$0xff] %v881
                %v883 = vld [vmem:[%s331 + $0x2098] sm:$0xff]
                %884 = vst [vmem:[%s332 + $0x898] sm:$0xff] %v883
                %v885 = vld [vmem:[%s331 + $0x20a0] sm:$0xff]
                %886 = vst [vmem:[%s332 + $0x8a0] sm:$0xff] %v885
                %v887 = vld [vmem:[%s331 + $0x20a8] sm:$0xff]
                %888 = vst [vmem:[%s332 + $0x8a8] sm:$0xff] %v887
                %v889 = vld [vmem:[%s331 + $0x20b0] sm:$0xff]
                %890 = vst [vmem:[%s332 + $0x8b0] sm:$0xff] %v889
                %v891 = vld [vmem:[%s331 + $0x20b8] sm:$0xff]
                %892 = vst [vmem:[%s332 + $0x8b8] sm:$0xff] %v891
                %v893 = vld [vmem:[%s331 + $0x20c0] sm:$0xff]
                %894 = vst [vmem:[%s332 + $0x8c0] sm:$0xff] %v893
                %v895 = vld [vmem:[%s331 + $0x20c8] sm:$0xff]
                %896 = vst [vmem:[%s332 + $0x8c8] sm:$0xff] %v895
                %v897 = vld [vmem:[%s331 + $0x20d0] sm:$0xff]
                %898 = vst [vmem:[%s332 + $0x8d0] sm:$0xff] %v897
                %v899 = vld [vmem:[%s331 + $0x20d8] sm:$0xff]
                %900 = vst [vmem:[%s332 + $0x8d8] sm:$0xff] %v899
                %v901 = vld [vmem:[%s331 + $0x20e0] sm:$0xff]
                %902 = vst [vmem:[%s332 + $0x8e0] sm:$0xff] %v901
                %v903 = vld [vmem:[%s331 + $0x20e8] sm:$0xff]
                %904 = vst [vmem:[%s332 + $0x8e8] sm:$0xff] %v903
                %v905 = vld [vmem:[%s331 + $0x20f0] sm:$0xff]
                %906 = vst [vmem:[%s332 + $0x8f0] sm:$0xff] %v905
                %v907 = vld [vmem:[%s331 + $0x20f8] sm:$0xff]
                %908 = vst [vmem:[%s332 + $0x8f8] sm:$0xff] %v907
                %v909 = vld [vmem:[%s331 + $0x2100] sm:$0xff]
                %910 = vst [vmem:[%s332 + $0x900] sm:$0xff] %v909
                %v911 = vld [vmem:[%s331 + $0x2108] sm:$0xff]
                %912 = vst [vmem:[%s332 + $0x908] sm:$0xff] %v911
                %v913 = vld [vmem:[%s331 + $0x2110] sm:$0xff]
                %914 = vst [vmem:[%s332 + $0x910] sm:$0xff] %v913
                %v915 = vld [vmem:[%s331 + $0x2118] sm:$0xff]
                %916 = vst [vmem:[%s332 + $0x918] sm:$0xff] %v915
                %v917 = vld [vmem:[%s331 + $0x2120] sm:$0xff]
                %918 = vst [vmem:[%s332 + $0x920] sm:$0xff] %v917
                %v919 = vld [vmem:[%s331 + $0x2128] sm:$0xff]
                %920 = vst [vmem:[%s332 + $0x928] sm:$0xff] %v919
                %v921 = vld [vmem:[%s331 + $0x2130] sm:$0xff]
                %922 = vst [vmem:[%s332 + $0x930] sm:$0xff] %v921
                %v923 = vld [vmem:[%s331 + $0x2138] sm:$0xff]
                %924 = vst [vmem:[%s332 + $0x938] sm:$0xff] %v923
                %v925 = vld [vmem:[%s331 + $0x2140] sm:$0xff]
                %926 = vst [vmem:[%s332 + $0x940] sm:$0xff] %v925
                %v927 = vld [vmem:[%s331 + $0x2148] sm:$0xff]
                %928 = vst [vmem:[%s332 + $0x948] sm:$0xff] %v927
                %v929 = vld [vmem:[%s331 + $0x2150] sm:$0xff]
                %930 = vst [vmem:[%s332 + $0x950] sm:$0xff] %v929
                %v931 = vld [vmem:[%s331 + $0x2158] sm:$0xff]
                %932 = vst [vmem:[%s332 + $0x958] sm:$0xff] %v931
                %v933 = vld [vmem:[%s331 + $0x2160] sm:$0xff]
                %934 = vst [vmem:[%s332 + $0x960] sm:$0xff] %v933
                %v935 = vld [vmem:[%s331 + $0x2168] sm:$0xff]
                %936 = vst [vmem:[%s332 + $0x968] sm:$0xff] %v935
                %v937 = vld [vmem:[%s331 + $0x2170] sm:$0xff]
                %938 = vst [vmem:[%s332 + $0x970] sm:$0xff] %v937
                %v939 = vld [vmem:[%s331 + $0x2178] sm:$0xff]
                %940 = vst [vmem:[%s332 + $0x978] sm:$0xff] %v939
                %v941 = vld [vmem:[%s331 + $0x2180] sm:$0xff]
                %942 = vst [vmem:[%s332 + $0x980] sm:$0xff] %v941
                %v943 = vld [vmem:[%s331 + $0x2188] sm:$0xff]
                %944 = vst [vmem:[%s332 + $0x988] sm:$0xff] %v943
                %v945 = vld [vmem:[%s331 + $0x2190] sm:$0xff]
                %946 = vst [vmem:[%s332 + $0x990] sm:$0xff] %v945
                %v947 = vld [vmem:[%s331 + $0x2198] sm:$0xff]
                %948 = vst [vmem:[%s332 + $0x998] sm:$0xff] %v947
                %v949 = vld [vmem:[%s331 + $0x21a0] sm:$0xff]
                %950 = vst [vmem:[%s332 + $0x9a0] sm:$0xff] %v949
                %v951 = vld [vmem:[%s331 + $0x21a8] sm:$0xff]
                %952 = vst [vmem:[%s332 + $0x9a8] sm:$0xff] %v951
                %v953 = vld [vmem:[%s331 + $0x21b0] sm:$0xff]
                %954 = vst [vmem:[%s332 + $0x9b0] sm:$0xff] %v953
                %v955 = vld [vmem:[%s331 + $0x21b8] sm:$0xff]
                %956 = vst [vmem:[%s332 + $0x9b8] sm:$0xff] %v955
                %v957 = vld [vmem:[%s331 + $0x21c0] sm:$0xff]
                %958 = vst [vmem:[%s332 + $0x9c0] sm:$0xff] %v957
                %v959 = vld [vmem:[%s331 + $0x21c8] sm:$0xff]
                %960 = vst [vmem:[%s332 + $0x9c8] sm:$0xff] %v959
                %v961 = vld [vmem:[%s331 + $0x21d0] sm:$0xff]
                %962 = vst [vmem:[%s332 + $0x9d0] sm:$0xff] %v961
                %v963 = vld [vmem:[%s331 + $0x21d8] sm:$0xff]
                %964 = vst [vmem:[%s332 + $0x9d8] sm:$0xff] %v963
                %v965 = vld [vmem:[%s331 + $0x21e0] sm:$0xff]
                %966 = vst [vmem:[%s332 + $0x9e0] sm:$0xff] %v965
                %v967 = vld [vmem:[%s331 + $0x21e8] sm:$0xff]
                %968 = vst [vmem:[%s332 + $0x9e8] sm:$0xff] %v967
                %v969 = vld [vmem:[%s331 + $0x21f0] sm:$0xff]
                %970 = vst [vmem:[%s332 + $0x9f0] sm:$0xff] %v969
                %v971 = vld [vmem:[%s331 + $0x21f8] sm:$0xff]
                %972 = vst [vmem:[%s332 + $0x9f8] sm:$0xff] %v971
                %v973 = vld [vmem:[%s331 + $0x2200] sm:$0xff]
                %974 = vst [vmem:[%s332 + $0xa00] sm:$0xff] %v973
                %v975 = vld [vmem:[%s331 + $0x2208] sm:$0xff]
                %976 = vst [vmem:[%s332 + $0xa08] sm:$0xff] %v975
                %v977 = vld [vmem:[%s331 + $0x2210] sm:$0xff]
                %978 = vst [vmem:[%s332 + $0xa10] sm:$0xff] %v977
                %v979 = vld [vmem:[%s331 + $0x2218] sm:$0xff]
                %980 = vst [vmem:[%s332 + $0xa18] sm:$0xff] %v979
                %v981 = vld [vmem:[%s331 + $0x2220] sm:$0xff]
                %982 = vst [vmem:[%s332 + $0xa20] sm:$0xff] %v981
                %v983 = vld [vmem:[%s331 + $0x2228] sm:$0xff]
                %984 = vst [vmem:[%s332 + $0xa28] sm:$0xff] %v983
                %v985 = vld [vmem:[%s331 + $0x2230] sm:$0xff]
                %986 = vst [vmem:[%s332 + $0xa30] sm:$0xff] %v985
                %v987 = vld [vmem:[%s331 + $0x2238] sm:$0xff]
                %988 = vst [vmem:[%s332 + $0xa38] sm:$0xff] %v987
                %v989 = vld [vmem:[%s331 + $0x2240] sm:$0xff]
                %990 = vst [vmem:[%s332 + $0xa40] sm:$0xff] %v989
                %v991 = vld [vmem:[%s331 + $0x2248] sm:$0xff]
                %992 = vst [vmem:[%s332 + $0xa48] sm:$0xff] %v991
                %v993 = vld [vmem:[%s331 + $0x2250] sm:$0xff]
                %994 = vst [vmem:[%s332 + $0xa50] sm:$0xff] %v993
                %v995 = vld [vmem:[%s331 + $0x2258] sm:$0xff]
                %996 = vst [vmem:[%s332 + $0xa58] sm:$0xff] %v995
                %v997 = vld [vmem:[%s331 + $0x2260] sm:$0xff]
                %998 = vst [vmem:[%s332 + $0xa60] sm:$0xff] %v997
                %v999 = vld [vmem:[%s331 + $0x2268] sm:$0xff]
                %1000 = vst [vmem:[%s332 + $0xa68] sm:$0xff] %v999
                %v1001 = vld [vmem:[%s331 + $0x2270] sm:$0xff]
                %1002 = vst [vmem:[%s332 + $0xa70] sm:$0xff] %v1001
                %v1003 = vld [vmem:[%s331 + $0x2278] sm:$0xff]
                %1004 = vst [vmem:[%s332 + $0xa78] sm:$0xff] %v1003
                %v1005 = vld [vmem:[%s331 + $0x2280] sm:$0xff]
                %1006 = vst [vmem:[%s332 + $0xa80] sm:$0xff] %v1005
                %v1007 = vld [vmem:[%s331 + $0x2288] sm:$0xff]
                %1008 = vst [vmem:[%s332 + $0xa88] sm:$0xff] %v1007
                %v1009 = vld [vmem:[%s331 + $0x2290] sm:$0xff]
                %1010 = vst [vmem:[%s332 + $0xa90] sm:$0xff] %v1009
                %v1011 = vld [vmem:[%s331 + $0x2298] sm:$0xff]
                %1012 = vst [vmem:[%s332 + $0xa98] sm:$0xff] %v1011
                %v1013 = vld [vmem:[%s331 + $0x22a0] sm:$0xff]
                %1014 = vst [vmem:[%s332 + $0xaa0] sm:$0xff] %v1013
                %v1015 = vld [vmem:[%s331 + $0x22a8] sm:$0xff]
                %1016 = vst [vmem:[%s332 + $0xaa8] sm:$0xff] %v1015
                %v1017 = vld [vmem:[%s331 + $0x22b0] sm:$0xff]
                %1018 = vst [vmem:[%s332 + $0xab0] sm:$0xff] %v1017
                %v1019 = vld [vmem:[%s331 + $0x22b8] sm:$0xff]
                %1020 = vst [vmem:[%s332 + $0xab8] sm:$0xff] %v1019
                %v1021 = vld [vmem:[%s331 + $0x22c0] sm:$0xff]
                %1022 = vst [vmem:[%s332 + $0xac0] sm:$0xff] %v1021
                %v1023 = vld [vmem:[%s331 + $0x22c8] sm:$0xff]
                %1024 = vst [vmem:[%s332 + $0xac8] sm:$0xff] %v1023
                %v1025 = vld [vmem:[%s331 + $0x22d0] sm:$0xff]
                %1026 = vst [vmem:[%s332 + $0xad0] sm:$0xff] %v1025
                %v1027 = vld [vmem:[%s331 + $0x22d8] sm:$0xff]
                %1028 = vst [vmem:[%s332 + $0xad8] sm:$0xff] %v1027
                %v1029 = vld [vmem:[%s331 + $0x22e0] sm:$0xff]
                %1030 = vst [vmem:[%s332 + $0xae0] sm:$0xff] %v1029
                %v1031 = vld [vmem:[%s331 + $0x22e8] sm:$0xff]
                %1032 = vst [vmem:[%s332 + $0xae8] sm:$0xff] %v1031
                %v1033 = vld [vmem:[%s331 + $0x22f0] sm:$0xff]
                %1034 = vst [vmem:[%s332 + $0xaf0] sm:$0xff] %v1033
                %v1035 = vld [vmem:[%s331 + $0x22f8] sm:$0xff]
                %1036 = vst [vmem:[%s332 + $0xaf8] sm:$0xff] %v1035
                %v1037 = vld [vmem:[%s331 + $0x2300] sm:$0xff]
                %1038 = vst [vmem:[%s332 + $0xb00] sm:$0xff] %v1037
                %v1039 = vld [vmem:[%s331 + $0x2308] sm:$0xff]
                %1040 = vst [vmem:[%s332 + $0xb08] sm:$0xff] %v1039
                %v1041 = vld [vmem:[%s331 + $0x2310] sm:$0xff]
                %1042 = vst [vmem:[%s332 + $0xb10] sm:$0xff] %v1041
                %v1043 = vld [vmem:[%s331 + $0x2318] sm:$0xff]
                %1044 = vst [vmem:[%s332 + $0xb18] sm:$0xff] %v1043
                %v1045 = vld [vmem:[%s331 + $0x2320] sm:$0xff]
                %1046 = vst [vmem:[%s332 + $0xb20] sm:$0xff] %v1045
                %v1047 = vld [vmem:[%s331 + $0x2328] sm:$0xff]
                %1048 = vst [vmem:[%s332 + $0xb28] sm:$0xff] %v1047
                %v1049 = vld [vmem:[%s331 + $0x2330] sm:$0xff]
                %1050 = vst [vmem:[%s332 + $0xb30] sm:$0xff] %v1049
                %v1051 = vld [vmem:[%s331 + $0x2338] sm:$0xff]
                %1052 = vst [vmem:[%s332 + $0xb38] sm:$0xff] %v1051
                %v1053 = vld [vmem:[%s331 + $0x2340] sm:$0xff]
                %1054 = vst [vmem:[%s332 + $0xb40] sm:$0xff] %v1053
                %v1055 = vld [vmem:[%s331 + $0x2348] sm:$0xff]
                %1056 = vst [vmem:[%s332 + $0xb48] sm:$0xff] %v1055
                %v1057 = vld [vmem:[%s331 + $0x2350] sm:$0xff]
                %1058 = vst [vmem:[%s332 + $0xb50] sm:$0xff] %v1057
                %v1059 = vld [vmem:[%s331 + $0x2358] sm:$0xff]
                %1060 = vst [vmem:[%s332 + $0xb58] sm:$0xff] %v1059
                %v1061 = vld [vmem:[%s331 + $0x2360] sm:$0xff]
                %1062 = vst [vmem:[%s332 + $0xb60] sm:$0xff] %v1061
                %v1063 = vld [vmem:[%s331 + $0x2368] sm:$0xff]
                %1064 = vst [vmem:[%s332 + $0xb68] sm:$0xff] %v1063
                %v1065 = vld [vmem:[%s331 + $0x2370] sm:$0xff]
                %1066 = vst [vmem:[%s332 + $0xb70] sm:$0xff] %v1065
                %v1067 = vld [vmem:[%s331 + $0x2378] sm:$0xff]
                %1068 = vst [vmem:[%s332 + $0xb78] sm:$0xff] %v1067
                %v1069 = vld [vmem:[%s331 + $0x2380] sm:$0xff]
                %1070 = vst [vmem:[%s332 + $0xb80] sm:$0xff] %v1069
                %v1071 = vld [vmem:[%s331 + $0x2388] sm:$0xff]
                %1072 = vst [vmem:[%s332 + $0xb88] sm:$0xff] %v1071
                %v1073 = vld [vmem:[%s331 + $0x2390] sm:$0xff]
                %1074 = vst [vmem:[%s332 + $0xb90] sm:$0xff] %v1073
                %v1075 = vld [vmem:[%s331 + $0x2398] sm:$0xff]
                %1076 = vst [vmem:[%s332 + $0xb98] sm:$0xff] %v1075
                %v1077 = vld [vmem:[%s331 + $0x23a0] sm:$0xff]
                %1078 = vst [vmem:[%s332 + $0xba0] sm:$0xff] %v1077
                %v1079 = vld [vmem:[%s331 + $0x23a8] sm:$0xff]
                %1080 = vst [vmem:[%s332 + $0xba8] sm:$0xff] %v1079
                %v1081 = vld [vmem:[%s331 + $0x23b0] sm:$0xff]
                %1082 = vst [vmem:[%s332 + $0xbb0] sm:$0xff] %v1081
                %v1083 = vld [vmem:[%s331 + $0x23b8] sm:$0xff]
                %1084 = vst [vmem:[%s332 + $0xbb8] sm:$0xff] %v1083
                %v1085 = vld [vmem:[%s331 + $0x23c0] sm:$0xff]
                %1086 = vst [vmem:[%s332 + $0xbc0] sm:$0xff] %v1085
                %v1087 = vld [vmem:[%s331 + $0x23c8] sm:$0xff]
                %1088 = vst [vmem:[%s332 + $0xbc8] sm:$0xff] %v1087
                %v1089 = vld [vmem:[%s331 + $0x23d0] sm:$0xff]
                %1090 = vst [vmem:[%s332 + $0xbd0] sm:$0xff] %v1089
                %v1091 = vld [vmem:[%s331 + $0x23d8] sm:$0xff]
                %1092 = vst [vmem:[%s332 + $0xbd8] sm:$0xff] %v1091
                %v1093 = vld [vmem:[%s331 + $0x23e0] sm:$0xff]
                %1094 = vst [vmem:[%s332 + $0xbe0] sm:$0xff] %v1093
                %v1095 = vld [vmem:[%s331 + $0x23e8] sm:$0xff]
                %1096 = vst [vmem:[%s332 + $0xbe8] sm:$0xff] %v1095
                %v1097 = vld [vmem:[%s331 + $0x23f0] sm:$0xff]
                %1098 = vst [vmem:[%s332 + $0xbf0] sm:$0xff] %v1097
                %v1099 = vld [vmem:[%s331 + $0x23f8] sm:$0xff]
                %1100 = vst [vmem:[%s332 + $0xbf8] sm:$0xff] %v1099
                %v1101 = vld [vmem:[%s331 + $0x2400] sm:$0xff]
                %1102 = vst [vmem:[%s332 + $0xc00] sm:$0xff] %v1101
                %v1103 = vld [vmem:[%s331 + $0x2408] sm:$0xff]
                %1104 = vst [vmem:[%s332 + $0xc08] sm:$0xff] %v1103
                %v1105 = vld [vmem:[%s331 + $0x2410] sm:$0xff]
                %1106 = vst [vmem:[%s332 + $0xc10] sm:$0xff] %v1105
                %v1107 = vld [vmem:[%s331 + $0x2418] sm:$0xff]
                %1108 = vst [vmem:[%s332 + $0xc18] sm:$0xff] %v1107
                %v1109 = vld [vmem:[%s331 + $0x2420] sm:$0xff]
                %1110 = vst [vmem:[%s332 + $0xc20] sm:$0xff] %v1109
                %v1111 = vld [vmem:[%s331 + $0x2428] sm:$0xff]
                %1112 = vst [vmem:[%s332 + $0xc28] sm:$0xff] %v1111
                %v1113 = vld [vmem:[%s331 + $0x2430] sm:$0xff]
                %1114 = vst [vmem:[%s332 + $0xc30] sm:$0xff] %v1113
                %v1115 = vld [vmem:[%s331 + $0x2438] sm:$0xff]
                %1116 = vst [vmem:[%s332 + $0xc38] sm:$0xff] %v1115
                %v1117 = vld [vmem:[%s331 + $0x2440] sm:$0xff]
                %1118 = vst [vmem:[%s332 + $0xc40] sm:$0xff] %v1117
                %v1119 = vld [vmem:[%s331 + $0x2448] sm:$0xff]
                %1120 = vst [vmem:[%s332 + $0xc48] sm:$0xff] %v1119
                %v1121 = vld [vmem:[%s331 + $0x2450] sm:$0xff]
                %1122 = vst [vmem:[%s332 + $0xc50] sm:$0xff] %v1121
                %v1123 = vld [vmem:[%s331 + $0x2458] sm:$0xff]
                %1124 = vst [vmem:[%s332 + $0xc58] sm:$0xff] %v1123
                %v1125 = vld [vmem:[%s331 + $0x2460] sm:$0xff]
                %1126 = vst [vmem:[%s332 + $0xc60] sm:$0xff] %v1125
                %v1127 = vld [vmem:[%s331 + $0x2468] sm:$0xff]
                %1128 = vst [vmem:[%s332 + $0xc68] sm:$0xff] %v1127
                %v1129 = vld [vmem:[%s331 + $0x2470] sm:$0xff]
                %1130 = vst [vmem:[%s332 + $0xc70] sm:$0xff] %v1129
                %v1131 = vld [vmem:[%s331 + $0x2478] sm:$0xff]
                %1132 = vst [vmem:[%s332 + $0xc78] sm:$0xff] %v1131
                %v1133 = vld [vmem:[%s331 + $0x2480] sm:$0xff]
                %1134 = vst [vmem:[%s332 + $0xc80] sm:$0xff] %v1133
                %v1135 = vld [vmem:[%s331 + $0x2488] sm:$0xff]
                %1136 = vst [vmem:[%s332 + $0xc88] sm:$0xff] %v1135
                %v1137 = vld [vmem:[%s331 + $0x2490] sm:$0xff]
                %1138 = vst [vmem:[%s332 + $0xc90] sm:$0xff] %v1137
                %v1139 = vld [vmem:[%s331 + $0x2498] sm:$0xff]
                %1140 = vst [vmem:[%s332 + $0xc98] sm:$0xff] %v1139
                %v1141 = vld [vmem:[%s331 + $0x24a0] sm:$0xff]
                %1142 = vst [vmem:[%s332 + $0xca0] sm:$0xff] %v1141
                %v1143 = vld [vmem:[%s331 + $0x24a8] sm:$0xff]
                %1144 = vst [vmem:[%s332 + $0xca8] sm:$0xff] %v1143
                %v1145 = vld [vmem:[%s331 + $0x24b0] sm:$0xff]
                %1146 = vst [vmem:[%s332 + $0xcb0] sm:$0xff] %v1145
                %v1147 = vld [vmem:[%s331 + $0x24b8] sm:$0xff]
                %1148 = vst [vmem:[%s332 + $0xcb8] sm:$0xff] %v1147
                %v1149 = vld [vmem:[%s331 + $0x24c0] sm:$0xff]
                %1150 = vst [vmem:[%s332 + $0xcc0] sm:$0xff] %v1149
                %v1151 = vld [vmem:[%s331 + $0x24c8] sm:$0xff]
                %1152 = vst [vmem:[%s332 + $0xcc8] sm:$0xff] %v1151
                %v1153 = vld [vmem:[%s331 + $0x24d0] sm:$0xff]
                %1154 = vst [vmem:[%s332 + $0xcd0] sm:$0xff] %v1153
                %v1155 = vld [vmem:[%s331 + $0x24d8] sm:$0xff]
                %1156 = vst [vmem:[%s332 + $0xcd8] sm:$0xff] %v1155
                %v1157 = vld [vmem:[%s331 + $0x24e0] sm:$0xff]
                %1158 = vst [vmem:[%s332 + $0xce0] sm:$0xff] %v1157
                %v1159 = vld [vmem:[%s331 + $0x24e8] sm:$0xff]
                %1160 = vst [vmem:[%s332 + $0xce8] sm:$0xff] %v1159
                %v1161 = vld [vmem:[%s331 + $0x24f0] sm:$0xff]
                %1162 = vst [vmem:[%s332 + $0xcf0] sm:$0xff] %v1161
                %v1163 = vld [vmem:[%s331 + $0x24f8] sm:$0xff]
                %1164 = vst [vmem:[%s332 + $0xcf8] sm:$0xff] %v1163
                %v1165 = vld [vmem:[%s331 + $0x2500] sm:$0xff]
                %1166 = vst [vmem:[%s332 + $0xd00] sm:$0xff] %v1165
                %v1167 = vld [vmem:[%s331 + $0x2508] sm:$0xff]
                %1168 = vst [vmem:[%s332 + $0xd08] sm:$0xff] %v1167
                %v1169 = vld [vmem:[%s331 + $0x2510] sm:$0xff]
                %1170 = vst [vmem:[%s332 + $0xd10] sm:$0xff] %v1169
                %v1171 = vld [vmem:[%s331 + $0x2518] sm:$0xff]
                %1172 = vst [vmem:[%s332 + $0xd18] sm:$0xff] %v1171
                %v1173 = vld [vmem:[%s331 + $0x2520] sm:$0xff]
                %1174 = vst [vmem:[%s332 + $0xd20] sm:$0xff] %v1173
                %v1175 = vld [vmem:[%s331 + $0x2528] sm:$0xff]
                %1176 = vst [vmem:[%s332 + $0xd28] sm:$0xff] %v1175
                %v1177 = vld [vmem:[%s331 + $0x2530] sm:$0xff]
                %1178 = vst [vmem:[%s332 + $0xd30] sm:$0xff] %v1177
                %v1179 = vld [vmem:[%s331 + $0x2538] sm:$0xff]
                %1180 = vst [vmem:[%s332 + $0xd38] sm:$0xff] %v1179
                %v1181 = vld [vmem:[%s331 + $0x2540] sm:$0xff]
                %1182 = vst [vmem:[%s332 + $0xd40] sm:$0xff] %v1181
                %v1183 = vld [vmem:[%s331 + $0x2548] sm:$0xff]
                %1184 = vst [vmem:[%s332 + $0xd48] sm:$0xff] %v1183
                %v1185 = vld [vmem:[%s331 + $0x2550] sm:$0xff]
                %1186 = vst [vmem:[%s332 + $0xd50] sm:$0xff] %v1185
                %v1187 = vld [vmem:[%s331 + $0x2558] sm:$0xff]
                %1188 = vst [vmem:[%s332 + $0xd58] sm:$0xff] %v1187
                %v1189 = vld [vmem:[%s331 + $0x2560] sm:$0xff]
                %1190 = vst [vmem:[%s332 + $0xd60] sm:$0xff] %v1189
                %v1191 = vld [vmem:[%s331 + $0x2568] sm:$0xff]
                %1192 = vst [vmem:[%s332 + $0xd68] sm:$0xff] %v1191
                %v1193 = vld [vmem:[%s331 + $0x2570] sm:$0xff]
                %1194 = vst [vmem:[%s332 + $0xd70] sm:$0xff] %v1193
                %v1195 = vld [vmem:[%s331 + $0x2578] sm:$0xff]
                %1196 = vst [vmem:[%s332 + $0xd78] sm:$0xff] %v1195
                %v1197 = vld [vmem:[%s331 + $0x2580] sm:$0xff]
                %1198 = vst [vmem:[%s332 + $0xd80] sm:$0xff] %v1197
                %v1199 = vld [vmem:[%s331 + $0x2588] sm:$0xff]
                %1200 = vst [vmem:[%s332 + $0xd88] sm:$0xff] %v1199
                %v1201 = vld [vmem:[%s331 + $0x2590] sm:$0xff]
                %1202 = vst [vmem:[%s332 + $0xd90] sm:$0xff] %v1201
                %v1203 = vld [vmem:[%s331 + $0x2598] sm:$0xff]
                %1204 = vst [vmem:[%s332 + $0xd98] sm:$0xff] %v1203
                %v1205 = vld [vmem:[%s331 + $0x25a0] sm:$0xff]
                %1206 = vst [vmem:[%s332 + $0xda0] sm:$0xff] %v1205
                %v1207 = vld [vmem:[%s331 + $0x25a8] sm:$0xff]
                %1208 = vst [vmem:[%s332 + $0xda8] sm:$0xff] %v1207
                %v1209 = vld [vmem:[%s331 + $0x25b0] sm:$0xff]
                %1210 = vst [vmem:[%s332 + $0xdb0] sm:$0xff] %v1209
                %v1211 = vld [vmem:[%s331 + $0x25b8] sm:$0xff]
                %1212 = vst [vmem:[%s332 + $0xdb8] sm:$0xff] %v1211
                %v1213 = vld [vmem:[%s331 + $0x25c0] sm:$0xff]
                %1214 = vst [vmem:[%s332 + $0xdc0] sm:$0xff] %v1213
                %v1215 = vld [vmem:[%s331 + $0x25c8] sm:$0xff]
                %1216 = vst [vmem:[%s332 + $0xdc8] sm:$0xff] %v1215
                %v1217 = vld [vmem:[%s331 + $0x25d0] sm:$0xff]
                %1218 = vst [vmem:[%s332 + $0xdd0] sm:$0xff] %v1217
                %v1219 = vld [vmem:[%s331 + $0x25d8] sm:$0xff]
                %1220 = vst [vmem:[%s332 + $0xdd8] sm:$0xff] %v1219
                %v1221 = vld [vmem:[%s331 + $0x25e0] sm:$0xff]
                %1222 = vst [vmem:[%s332 + $0xde0] sm:$0xff] %v1221
                %v1223 = vld [vmem:[%s331 + $0x25e8] sm:$0xff]
                %1224 = vst [vmem:[%s332 + $0xde8] sm:$0xff] %v1223
                %v1225 = vld [vmem:[%s331 + $0x25f0] sm:$0xff]
                %1226 = vst [vmem:[%s332 + $0xdf0] sm:$0xff] %v1225
                %v1227 = vld [vmem:[%s331 + $0x25f8] sm:$0xff]
                %1228 = vst [vmem:[%s332 + $0xdf8] sm:$0xff] %v1227
                %v1229 = vld [vmem:[%s331 + $0x2600] sm:$0xff]
                %1230 = vst [vmem:[%s332 + $0xe00] sm:$0xff] %v1229
                %v1231 = vld [vmem:[%s331 + $0x2608] sm:$0xff]
                %1232 = vst [vmem:[%s332 + $0xe08] sm:$0xff] %v1231
                %v1233 = vld [vmem:[%s331 + $0x2610] sm:$0xff]
                %1234 = vst [vmem:[%s332 + $0xe10] sm:$0xff] %v1233
                %v1235 = vld [vmem:[%s331 + $0x2618] sm:$0xff]
                %1236 = vst [vmem:[%s332 + $0xe18] sm:$0xff] %v1235
                %v1237 = vld [vmem:[%s331 + $0x2620] sm:$0xff]
                %1238 = vst [vmem:[%s332 + $0xe20] sm:$0xff] %v1237
                %v1239 = vld [vmem:[%s331 + $0x2628] sm:$0xff]
                %1240 = vst [vmem:[%s332 + $0xe28] sm:$0xff] %v1239
                %v1241 = vld [vmem:[%s331 + $0x2630] sm:$0xff]
                %1242 = vst [vmem:[%s332 + $0xe30] sm:$0xff] %v1241
                %v1243 = vld [vmem:[%s331 + $0x2638] sm:$0xff]
                %1244 = vst [vmem:[%s332 + $0xe38] sm:$0xff] %v1243
                %v1245 = vld [vmem:[%s331 + $0x2640] sm:$0xff]
                %1246 = vst [vmem:[%s332 + $0xe40] sm:$0xff] %v1245
                %v1247 = vld [vmem:[%s331 + $0x2648] sm:$0xff]
                %1248 = vst [vmem:[%s332 + $0xe48] sm:$0xff] %v1247
                %v1249 = vld [vmem:[%s331 + $0x2650] sm:$0xff]
                %1250 = vst [vmem:[%s332 + $0xe50] sm:$0xff] %v1249
                %v1251 = vld [vmem:[%s331 + $0x2658] sm:$0xff]
                %1252 = vst [vmem:[%s332 + $0xe58] sm:$0xff] %v1251
                %v1253 = vld [vmem:[%s331 + $0x2660] sm:$0xff]
                %1254 = vst [vmem:[%s332 + $0xe60] sm:$0xff] %v1253
                %v1255 = vld [vmem:[%s331 + $0x2668] sm:$0xff]
                %1256 = vst [vmem:[%s332 + $0xe68] sm:$0xff] %v1255
                %v1257 = vld [vmem:[%s331 + $0x2670] sm:$0xff]
                %1258 = vst [vmem:[%s332 + $0xe70] sm:$0xff] %v1257
                %v1259 = vld [vmem:[%s331 + $0x2678] sm:$0xff]
                %1260 = vst [vmem:[%s332 + $0xe78] sm:$0xff] %v1259
                %v1261 = vld [vmem:[%s331 + $0x2680] sm:$0xff]
                %1262 = vst [vmem:[%s332 + $0xe80] sm:$0xff] %v1261
                %v1263 = vld [vmem:[%s331 + $0x2688] sm:$0xff]
                %1264 = vst [vmem:[%s332 + $0xe88] sm:$0xff] %v1263
                %v1265 = vld [vmem:[%s331 + $0x2690] sm:$0xff]
                %1266 = vst [vmem:[%s332 + $0xe90] sm:$0xff] %v1265
                %v1267 = vld [vmem:[%s331 + $0x2698] sm:$0xff]
                %1268 = vst [vmem:[%s332 + $0xe98] sm:$0xff] %v1267
                %v1269 = vld [vmem:[%s331 + $0x26a0] sm:$0xff]
                %1270 = vst [vmem:[%s332 + $0xea0] sm:$0xff] %v1269
                %v1271 = vld [vmem:[%s331 + $0x26a8] sm:$0xff]
                %1272 = vst [vmem:[%s332 + $0xea8] sm:$0xff] %v1271
                %v1273 = vld [vmem:[%s331 + $0x26b0] sm:$0xff]
                %1274 = vst [vmem:[%s332 + $0xeb0] sm:$0xff] %v1273
                %v1275 = vld [vmem:[%s331 + $0x26b8] sm:$0xff]
                %1276 = vst [vmem:[%s332 + $0xeb8] sm:$0xff] %v1275
                %v1277 = vld [vmem:[%s331 + $0x26c0] sm:$0xff]
                %1278 = vst [vmem:[%s332 + $0xec0] sm:$0xff] %v1277
                %v1279 = vld [vmem:[%s331 + $0x26c8] sm:$0xff]
                %1280 = vst [vmem:[%s332 + $0xec8] sm:$0xff] %v1279
                %v1281 = vld [vmem:[%s331 + $0x26d0] sm:$0xff]
                %1282 = vst [vmem:[%s332 + $0xed0] sm:$0xff] %v1281
                %v1283 = vld [vmem:[%s331 + $0x26d8] sm:$0xff]
                %1284 = vst [vmem:[%s332 + $0xed8] sm:$0xff] %v1283
                %v1285 = vld [vmem:[%s331 + $0x26e0] sm:$0xff]
                %1286 = vst [vmem:[%s332 + $0xee0] sm:$0xff] %v1285
                %v1287 = vld [vmem:[%s331 + $0x26e8] sm:$0xff]
                %1288 = vst [vmem:[%s332 + $0xee8] sm:$0xff] %v1287
                %v1289 = vld [vmem:[%s331 + $0x26f0] sm:$0xff]
                %1290 = vst [vmem:[%s332 + $0xef0] sm:$0xff] %v1289
                %v1291 = vld [vmem:[%s331 + $0x26f8] sm:$0xff]
                %1292 = vst [vmem:[%s332 + $0xef8] sm:$0xff] %v1291
                %v1293 = vld [vmem:[%s331 + $0x2700] sm:$0xff]
                %1294 = vst [vmem:[%s332 + $0xf00] sm:$0xff] %v1293
                %v1295 = vld [vmem:[%s331 + $0x2708] sm:$0xff]
                %1296 = vst [vmem:[%s332 + $0xf08] sm:$0xff] %v1295
                %v1297 = vld [vmem:[%s331 + $0x2710] sm:$0xff]
                %1298 = vst [vmem:[%s332 + $0xf10] sm:$0xff] %v1297
                %v1299 = vld [vmem:[%s331 + $0x2718] sm:$0xff]
                %1300 = vst [vmem:[%s332 + $0xf18] sm:$0xff] %v1299
                %v1301 = vld [vmem:[%s331 + $0x2720] sm:$0xff]
                %1302 = vst [vmem:[%s332 + $0xf20] sm:$0xff] %v1301
                %v1303 = vld [vmem:[%s331 + $0x2728] sm:$0xff]
                %1304 = vst [vmem:[%s332 + $0xf28] sm:$0xff] %v1303
                %v1305 = vld [vmem:[%s331 + $0x2730] sm:$0xff]
                %1306 = vst [vmem:[%s332 + $0xf30] sm:$0xff] %v1305
                %v1307 = vld [vmem:[%s331 + $0x2738] sm:$0xff]
                %1308 = vst [vmem:[%s332 + $0xf38] sm:$0xff] %v1307
                %v1309 = vld [vmem:[%s331 + $0x2740] sm:$0xff]
                %1310 = vst [vmem:[%s332 + $0xf40] sm:$0xff] %v1309
                %v1311 = vld [vmem:[%s331 + $0x2748] sm:$0xff]
                %1312 = vst [vmem:[%s332 + $0xf48] sm:$0xff] %v1311
                %v1313 = vld [vmem:[%s331 + $0x2750] sm:$0xff]
                %1314 = vst [vmem:[%s332 + $0xf50] sm:$0xff] %v1313
                %v1315 = vld [vmem:[%s331 + $0x2758] sm:$0xff]
                %1316 = vst [vmem:[%s332 + $0xf58] sm:$0xff] %v1315
                %v1317 = vld [vmem:[%s331 + $0x2760] sm:$0xff]
                %1318 = vst [vmem:[%s332 + $0xf60] sm:$0xff] %v1317
                %v1319 = vld [vmem:[%s331 + $0x2768] sm:$0xff]
                %1320 = vst [vmem:[%s332 + $0xf68] sm:$0xff] %v1319
                %v1321 = vld [vmem:[%s331 + $0x2770] sm:$0xff]
                %1322 = vst [vmem:[%s332 + $0xf70] sm:$0xff] %v1321
                %v1323 = vld [vmem:[%s331 + $0x2778] sm:$0xff]
                %1324 = vst [vmem:[%s332 + $0xf78] sm:$0xff] %v1323
                %v1325 = vld [vmem:[%s331 + $0x2780] sm:$0xff]
                %1326 = vst [vmem:[%s332 + $0xf80] sm:$0xff] %v1325
                %v1327 = vld [vmem:[%s331 + $0x2788] sm:$0xff]
                %1328 = vst [vmem:[%s332 + $0xf88] sm:$0xff] %v1327
                %v1329 = vld [vmem:[%s331 + $0x2790] sm:$0xff]
                %1330 = vst [vmem:[%s332 + $0xf90] sm:$0xff] %v1329
                %v1331 = vld [vmem:[%s331 + $0x2798] sm:$0xff]
                %1332 = vst [vmem:[%s332 + $0xf98] sm:$0xff] %v1331
                %v1333 = vld [vmem:[%s331 + $0x27a0] sm:$0xff]
                %1334 = vst [vmem:[%s332 + $0xfa0] sm:$0xff] %v1333
                %v1335 = vld [vmem:[%s331 + $0x27a8] sm:$0xff]
                %1336 = vst [vmem:[%s332 + $0xfa8] sm:$0xff] %v1335
                %v1337 = vld [vmem:[%s331 + $0x27b0] sm:$0xff]
                %1338 = vst [vmem:[%s332 + $0xfb0] sm:$0xff] %v1337
                %v1339 = vld [vmem:[%s331 + $0x27b8] sm:$0xff]
                %1340 = vst [vmem:[%s332 + $0xfb8] sm:$0xff] %v1339
                %v1341 = vld [vmem:[%s331 + $0x27c0] sm:$0xff]
                %1342 = vst [vmem:[%s332 + $0xfc0] sm:$0xff] %v1341
                %v1343 = vld [vmem:[%s331 + $0x27c8] sm:$0xff]
                %1344 = vst [vmem:[%s332 + $0xfc8] sm:$0xff] %v1343
                %v1345 = vld [vmem:[%s331 + $0x27d0] sm:$0xff]
                %1346 = vst [vmem:[%s332 + $0xfd0] sm:$0xff] %v1345
                %v1347 = vld [vmem:[%s331 + $0x27d8] sm:$0xff]
                %1348 = vst [vmem:[%s332 + $0xfd8] sm:$0xff] %v1347
                %v1349 = vld [vmem:[%s331 + $0x27e0] sm:$0xff]
                %1350 = vst [vmem:[%s332 + $0xfe0] sm:$0xff] %v1349
                %v1351 = vld [vmem:[%s331 + $0x27e8] sm:$0xff]
                %1352 = vst [vmem:[%s332 + $0xfe8] sm:$0xff] %v1351
                %v1353 = vld [vmem:[%s331 + $0x27f0] sm:$0xff]
                %1354 = vst [vmem:[%s332 + $0xff0] sm:$0xff] %v1353
                %v1355 = vld [vmem:[%s331 + $0x27f8] sm:$0xff]
                %1356 = vst [vmem:[%s332 + $0xff8] sm:$0xff] %v1355
              $region61: #{tpu_custom_call.1} parent=55 // loop_footer
                %s330 = sadd.s32 1, %s326
              $region62: #{tpu_custom_call.1} parent=55 // loop_footer_branch
                %325 = sbr.rel target = $region58
              $region63: #{tpu_custom_call.1} parent=55 // loop_exit
                _
            $region56: #{tpu_custom_call.1} parent=51 // pred_fallthru
              _
            // Predicated region
            $region64: #{tpu_custom_call.1} parent=51 // pred_check
              _
            $region65: #{tpu_custom_call.1} parent=51 // pred_check_branch
              %1358 = sbr.rel target = $region67
            $region66: #{tpu_custom_call.1} parent=51 // pred_region
              _
            $region67: #{tpu_custom_call.1} parent=51 // pred_fallthru
              _
          $region52: #{tpu_custom_call.1} parent=47 // pred_fallthru
            _
          %1359 = vnop
        $region48: #{tpu_custom_call.1} parent=43 // pred_fallthru
          _
        // Predicated region
        $region68: #{tpu_custom_call.1} parent=43 // pred_check
          %p1360 = pneg %p104
        $region69: #{tpu_custom_call.1} parent=43 // pred_check_branch
          %1362 = sbr.rel (%p1360) target = $region71
        $region70: #{tpu_custom_call.1} parent=43 // pred_region
          %s1363 = smul.u32 64, %s26
          %p1364 = scmp.lt.s32.totalorder %s1363, 255
          %s1365 = scalar_select %p1364, %s1363, 255
          %s1366 = smul.addr %s1365, 2
          %s1367 = smul.addr %s1366, 8
          %s1368 = scalar_lea.vmem %s2, %s1367
          %s1369 = smul.u32 64, %s26
        $region71: #{tpu_custom_call.1} parent=43 // pred_fallthru
          _
      $region44: #{tpu_custom_call.1} parent=5 // pred_fallthru
        _
      %p1370 = scmp.le.s32.totalorder 1, %s18
      %p1371 = scmp.lt.s32.totalorder %s18, 5
      %p1372 = pnand %p1370, %p1371
      %p1373 = pneg %p1372
      // Predicated region
      $region72: #{tpu_custom_call.1} parent=5 // pred_check
        _
      $region73: #{tpu_custom_call.1} parent=5 // pred_check_branch
        %1375 = sbr.rel (%p1372) target = $region75
      $region74: #{tpu_custom_call.1} parent=5 // pred_region
        %s1376 = ssub.s32 %s18, 1
        %s1377 = sand.u32 %s45, 1
        %s1378 = sand.u32 %s45, 1
        %s1379 = smul.addr %s1378, 4096
        %s1380 = scalar_lea.vmem [#allocation4], %s1379
        // Predicated region
        $region76: #{tpu_custom_call.1} parent=74 // pred_check
          %p1381 = pneg %p58
        $region77: #{tpu_custom_call.1} parent=74 // pred_check_branch
          %1383 = sbr.rel (%p1381) target = $region79
        $region78: #{tpu_custom_call.1} parent=74 // pred_region
          _
        $region79: #{tpu_custom_call.1} parent=74 // pred_fallthru
          _
        %s1384 = sand.u32 %s45, 1
        %s1385 = sand.u32 %s45, 1
        %s1386 = smul.addr %s1385, 4096
        %s1387 = scalar_lea.vmem [#allocation4], %s1386
        %p1388 = pneg %p58
        %p1389 = pneg %p55
        %p1390 = scmp.lt.s32.totalorder %s27, 0
        %s1391 = scalar_select %p1390, %s27, 0
        %s1392 = smul.addr %s1391, 2
        %s1393 = smul.addr %s1392, 2
        %s1394 = scalar_lea.vmem %s1, %s1393
        %p1395 = pneg %p84
        %p1396 = pneg %p81
        %s1397 = smul.u32 64, %s28
        %p1398 = scmp.lt.s32.totalorder %s1397, 255
        %s1399 = scalar_select %p1398, %s1397, 255
        %s1400 = smul.addr %s1399, 2
        %s1401 = smul.addr %s1400, 8
        %s1402 = scalar_lea.vmem %s2, %s1401
        %p1403 = pneg %p110
        %p1404 = pneg %p107
        %p1405 = pneg %p131
        %p1406 = pneg %p128
        %p1407 = pneg %p152
        %p1408 = pneg %p149
        %p1409 = pneg %p173
        %p1410 = pneg %p170
        %p1411 = pneg %p194
        %p1412 = pneg %p191
        %p1413 = pneg %p215
        %p1414 = pneg %p212
        %p1415 = pneg %p236
        %p1416 = pneg %p233
        %p1417 = pneg %p262
        %p1418 = pneg %p259
        %s1419 = smul.u32 2, %s27
        %s1420 = smul.u32 64, %s28
        %p1421 = scmp.lt.s32.totalorder %s27, 0
        %s1422 = scalar_select %p1421, %s27, 0
        %s1423 = smul.addr %s1422, 2
        %s1424 = smul.addr %s1423, 2
        %s1425 = scalar_lea.vmem %s1, %s1424
        %s1426 = smul.u32 64, %s28
        %p1427 = scmp.lt.s32.totalorder %s1426, 255
        %s1428 = scalar_select %p1427, %s1426, 255
        %s1429 = smul.addr %s1428, 2
        %s1430 = smul.addr %s1429, 8
        %s1431 = scalar_lea.vmem %s2, %s1430
        %s1432 = smul.u32 64, %s28
        %p1433 = scmp.eq.s32.totalorder %s28, 0
        // Predicated region
        $region80: #{tpu_custom_call.1} parent=74 // pred_check
          %p1434 = pneg %p1433
        $region81: #{tpu_custom_call.1} parent=74 // pred_check_branch
          %1436 = sbr.rel (%p1434) target = $region83
        $region82: #{tpu_custom_call.1} parent=74 // pred_region
          %vm1437 = vcmask 1041408
          %vm1438 = vcmask 3074
          %vm1439 = vmor %vm1438, %vm1437
          %1440 = vst.msk [vmem:[#allocation2] sm:$0xf] %vm1439, 0.0
        $region83: #{tpu_custom_call.1} parent=74 // pred_fallthru
          _
        %v1441 = vld [vmem:[%s1380] sm:$0xff]
        %v1442 = vld [vmem:[%s1380 + $0x8] sm:$0xff]
        %v1443 = vld [vmem:[%s1380 + $0x10] sm:$0xff]
        %v1444 = vld [vmem:[%s1380 + $0x18] sm:$0xff]
        %v1445 = vld [vmem:[%s1380 + $0x20] sm:$0xff]
        %v1446 = vld [vmem:[%s1380 + $0x28] sm:$0xff]
        %v1447 = vld [vmem:[%s1380 + $0x30] sm:$0xff]
        %v1448 = vld [vmem:[%s1380 + $0x38] sm:$0xff]
        %v1449 = vld [vmem:[%s1380 + $0x40] sm:$0xff]
        %v1450 = vld [vmem:[%s1380 + $0x48] sm:$0xff]
        %v1451 = vld [vmem:[%s1380 + $0x50] sm:$0xff]
        %v1452 = vld [vmem:[%s1380 + $0x58] sm:$0xff]
        %v1453 = vld [vmem:[%s1380 + $0x60] sm:$0xff]
        %v1454 = vld [vmem:[%s1380 + $0x68] sm:$0xff]
        %v1455 = vld [vmem:[%s1380 + $0x70] sm:$0xff]
        %v1456 = vld [vmem:[%s1380 + $0x78] sm:$0xff]
        %v1457 = vld [vmem:[%s1380 + $0x80] sm:$0xff]
        %v1458 = vld [vmem:[%s1380 + $0x88] sm:$0xff]
        %v1459 = vld [vmem:[%s1380 + $0x90] sm:$0xff]
        %v1460 = vld [vmem:[%s1380 + $0x98] sm:$0xff]
        %v1461 = vld [vmem:[%s1380 + $0xa0] sm:$0xff]
        %v1462 = vld [vmem:[%s1380 + $0xa8] sm:$0xff]
        %v1463 = vld [vmem:[%s1380 + $0xb0] sm:$0xff]
        %v1464 = vld [vmem:[%s1380 + $0xb8] sm:$0xff]
        %v1465 = vld [vmem:[%s1380 + $0xc0] sm:$0xff]
        %v1466 = vld [vmem:[%s1380 + $0xc8] sm:$0xff]
        %v1467 = vld [vmem:[%s1380 + $0xd0] sm:$0xff]
        %v1468 = vld [vmem:[%s1380 + $0xd8] sm:$0xff]
        %v1469 = vld [vmem:[%s1380 + $0xe0] sm:$0xff]
        %v1470 = vld [vmem:[%s1380 + $0xe8] sm:$0xff]
        %v1471 = vld [vmem:[%s1380 + $0xf0] sm:$0xff]
        %v1472 = vld [vmem:[%s1380 + $0xf8] sm:$0xff]
        %v1473 = vld [vmem:[%s1380 + $0x100] sm:$0xff]
        %v1474 = vld [vmem:[%s1380 + $0x108] sm:$0xff]
        %v1475 = vld [vmem:[%s1380 + $0x110] sm:$0xff]
        %v1476 = vld [vmem:[%s1380 + $0x118] sm:$0xff]
        %v1477 = vld [vmem:[%s1380 + $0x120] sm:$0xff]
        %v1478 = vld [vmem:[%s1380 + $0x128] sm:$0xff]
        %v1479 = vld [vmem:[%s1380 + $0x130] sm:$0xff]
        %v1480 = vld [vmem:[%s1380 + $0x138] sm:$0xff]
        %v1481 = vld [vmem:[%s1380 + $0x140] sm:$0xff]
        %v1482 = vld [vmem:[%s1380 + $0x148] sm:$0xff]
        %v1483 = vld [vmem:[%s1380 + $0x150] sm:$0xff]
        %v1484 = vld [vmem:[%s1380 + $0x158] sm:$0xff]
        %v1485 = vld [vmem:[%s1380 + $0x160] sm:$0xff]
        %v1486 = vld [vmem:[%s1380 + $0x168] sm:$0xff]
        %v1487 = vld [vmem:[%s1380 + $0x170] sm:$0xff]
        %v1488 = vld [vmem:[%s1380 + $0x178] sm:$0xff]
        %v1489 = vld [vmem:[%s1380 + $0x180] sm:$0xff]
        %v1490 = vld [vmem:[%s1380 + $0x188] sm:$0xff]
        %v1491 = vld [vmem:[%s1380 + $0x190] sm:$0xff]
        %v1492 = vld [vmem:[%s1380 + $0x198] sm:$0xff]
        %v1493 = vld [vmem:[%s1380 + $0x1a0] sm:$0xff]
        %v1494 = vld [vmem:[%s1380 + $0x1a8] sm:$0xff]
        %v1495 = vld [vmem:[%s1380 + $0x1b0] sm:$0xff]
        %v1496 = vld [vmem:[%s1380 + $0x1b8] sm:$0xff]
        %v1497 = vld [vmem:[%s1380 + $0x1c0] sm:$0xff]
        %v1498 = vld [vmem:[%s1380 + $0x1c8] sm:$0xff]
        %v1499 = vld [vmem:[%s1380 + $0x1d0] sm:$0xff]
        %v1500 = vld [vmem:[%s1380 + $0x1d8] sm:$0xff]
        %v1501 = vld [vmem:[%s1380 + $0x1e0] sm:$0xff]
        %v1502 = vld [vmem:[%s1380 + $0x1e8] sm:$0xff]
        %v1503 = vld [vmem:[%s1380 + $0x1f0] sm:$0xff]
        %v1504 = vld [vmem:[%s1380 + $0x1f8] sm:$0xff]
        %v1505 = vld [vmem:[%s1380 + $0x200] sm:$0xff]
        %v1506 = vld [vmem:[%s1380 + $0x208] sm:$0xff]
        %v1507 = vld [vmem:[%s1380 + $0x210] sm:$0xff]
        %v1508 = vld [vmem:[%s1380 + $0x218] sm:$0xff]
        %v1509 = vld [vmem:[%s1380 + $0x220] sm:$0xff]
        %v1510 = vld [vmem:[%s1380 + $0x228] sm:$0xff]
        %v1511 = vld [vmem:[%s1380 + $0x230] sm:$0xff]
        %v1512 = vld [vmem:[%s1380 + $0x238] sm:$0xff]
        %v1513 = vld [vmem:[%s1380 + $0x240] sm:$0xff]
        %v1514 = vld [vmem:[%s1380 + $0x248] sm:$0xff]
        %v1515 = vld [vmem:[%s1380 + $0x250] sm:$0xff]
        %v1516 = vld [vmem:[%s1380 + $0x258] sm:$0xff]
        %v1517 = vld [vmem:[%s1380 + $0x260] sm:$0xff]
        %v1518 = vld [vmem:[%s1380 + $0x268] sm:$0xff]
        %v1519 = vld [vmem:[%s1380 + $0x270] sm:$0xff]
        %v1520 = vld [vmem:[%s1380 + $0x278] sm:$0xff]
        %v1521 = vld [vmem:[%s1380 + $0x280] sm:$0xff]
        %v1522 = vld [vmem:[%s1380 + $0x288] sm:$0xff]
        %v1523 = vld [vmem:[%s1380 + $0x290] sm:$0xff]
        %v1524 = vld [vmem:[%s1380 + $0x298] sm:$0xff]
        %v1525 = vld [vmem:[%s1380 + $0x2a0] sm:$0xff]
        %v1526 = vld [vmem:[%s1380 + $0x2a8] sm:$0xff]
        %v1527 = vld [vmem:[%s1380 + $0x2b0] sm:$0xff]
        %v1528 = vld [vmem:[%s1380 + $0x2b8] sm:$0xff]
        %v1529 = vld [vmem:[%s1380 + $0x2c0] sm:$0xff]
        %v1530 = vld [vmem:[%s1380 + $0x2c8] sm:$0xff]
        %v1531 = vld [vmem:[%s1380 + $0x2d0] sm:$0xff]
        %v1532 = vld [vmem:[%s1380 + $0x2d8] sm:$0xff]
        %v1533 = vld [vmem:[%s1380 + $0x2e0] sm:$0xff]
        %v1534 = vld [vmem:[%s1380 + $0x2e8] sm:$0xff]
        %v1535 = vld [vmem:[%s1380 + $0x2f0] sm:$0xff]
        %v1536 = vld [vmem:[%s1380 + $0x2f8] sm:$0xff]
        %v1537 = vld [vmem:[%s1380 + $0x300] sm:$0xff]
        %v1538 = vld [vmem:[%s1380 + $0x308] sm:$0xff]
        %v1539 = vld [vmem:[%s1380 + $0x310] sm:$0xff]
        %v1540 = vld [vmem:[%s1380 + $0x318] sm:$0xff]
        %v1541 = vld [vmem:[%s1380 + $0x320] sm:$0xff]
        %v1542 = vld [vmem:[%s1380 + $0x328] sm:$0xff]
        %v1543 = vld [vmem:[%s1380 + $0x330] sm:$0xff]
        %v1544 = vld [vmem:[%s1380 + $0x338] sm:$0xff]
        %v1545 = vld [vmem:[%s1380 + $0x340] sm:$0xff]
        %v1546 = vld [vmem:[%s1380 + $0x348] sm:$0xff]
        %v1547 = vld [vmem:[%s1380 + $0x350] sm:$0xff]
        %v1548 = vld [vmem:[%s1380 + $0x358] sm:$0xff]
        %v1549 = vld [vmem:[%s1380 + $0x360] sm:$0xff]
        %v1550 = vld [vmem:[%s1380 + $0x368] sm:$0xff]
        %v1551 = vld [vmem:[%s1380 + $0x370] sm:$0xff]
        %v1552 = vld [vmem:[%s1380 + $0x378] sm:$0xff]
        %v1553 = vld [vmem:[%s1380 + $0x380] sm:$0xff]
        %v1554 = vld [vmem:[%s1380 + $0x388] sm:$0xff]
        %v1555 = vld [vmem:[%s1380 + $0x390] sm:$0xff]
        %v1556 = vld [vmem:[%s1380 + $0x398] sm:$0xff]
        %v1557 = vld [vmem:[%s1380 + $0x3a0] sm:$0xff]
        %v1558 = vld [vmem:[%s1380 + $0x3a8] sm:$0xff]
        %v1559 = vld [vmem:[%s1380 + $0x3b0] sm:$0xff]
        %v1560 = vld [vmem:[%s1380 + $0x3b8] sm:$0xff]
        %v1561 = vld [vmem:[%s1380 + $0x3c0] sm:$0xff]
        %v1562 = vld [vmem:[%s1380 + $0x3c8] sm:$0xff]
        %v1563 = vld [vmem:[%s1380 + $0x3d0] sm:$0xff]
        %v1564 = vld [vmem:[%s1380 + $0x3d8] sm:$0xff]
        %v1565 = vld [vmem:[%s1380 + $0x3e0] sm:$0xff]
        %v1566 = vld [vmem:[%s1380 + $0x3e8] sm:$0xff]
        %v1567 = vld [vmem:[%s1380 + $0x3f0] sm:$0xff]
        %v1568 = vld [vmem:[%s1380 + $0x3f8] sm:$0xff]
        %v1569 = vld [vmem:[%s1380 + $0x400] sm:$0xff]
        %v1570 = vld [vmem:[%s1380 + $0x408] sm:$0xff]
        %v1571 = vld [vmem:[%s1380 + $0x410] sm:$0xff]
        %v1572 = vld [vmem:[%s1380 + $0x418] sm:$0xff]
        %v1573 = vld [vmem:[%s1380 + $0x420] sm:$0xff]
        %v1574 = vld [vmem:[%s1380 + $0x428] sm:$0xff]
        %v1575 = vld [vmem:[%s1380 + $0x430] sm:$0xff]
        %v1576 = vld [vmem:[%s1380 + $0x438] sm:$0xff]
        %v1577 = vld [vmem:[%s1380 + $0x440] sm:$0xff]
        %v1578 = vld [vmem:[%s1380 + $0x448] sm:$0xff]
        %v1579 = vld [vmem:[%s1380 + $0x450] sm:$0xff]
        %v1580 = vld [vmem:[%s1380 + $0x458] sm:$0xff]
        %v1581 = vld [vmem:[%s1380 + $0x460] sm:$0xff]
        %v1582 = vld [vmem:[%s1380 + $0x468] sm:$0xff]
        %v1583 = vld [vmem:[%s1380 + $0x470] sm:$0xff]
        %v1584 = vld [vmem:[%s1380 + $0x478] sm:$0xff]
        %v1585 = vld [vmem:[%s1380 + $0x480] sm:$0xff]
        %v1586 = vld [vmem:[%s1380 + $0x488] sm:$0xff]
        %v1587 = vld [vmem:[%s1380 + $0x490] sm:$0xff]
        %v1588 = vld [vmem:[%s1380 + $0x498] sm:$0xff]
        %v1589 = vld [vmem:[%s1380 + $0x4a0] sm:$0xff]
        %v1590 = vld [vmem:[%s1380 + $0x4a8] sm:$0xff]
        %v1591 = vld [vmem:[%s1380 + $0x4b0] sm:$0xff]
        %v1592 = vld [vmem:[%s1380 + $0x4b8] sm:$0xff]
        %v1593 = vld [vmem:[%s1380 + $0x4c0] sm:$0xff]
        %v1594 = vld [vmem:[%s1380 + $0x4c8] sm:$0xff]
        %v1595 = vld [vmem:[%s1380 + $0x4d0] sm:$0xff]
        %v1596 = vld [vmem:[%s1380 + $0x4d8] sm:$0xff]
        %v1597 = vld [vmem:[%s1380 + $0x4e0] sm:$0xff]
        %v1598 = vld [vmem:[%s1380 + $0x4e8] sm:$0xff]
        %v1599 = vld [vmem:[%s1380 + $0x4f0] sm:$0xff]
        %v1600 = vld [vmem:[%s1380 + $0x4f8] sm:$0xff]
        %v1601 = vld [vmem:[%s1380 + $0x500] sm:$0xff]
        %v1602 = vld [vmem:[%s1380 + $0x508] sm:$0xff]
        %v1603 = vld [vmem:[%s1380 + $0x510] sm:$0xff]
        %v1604 = vld [vmem:[%s1380 + $0x518] sm:$0xff]
        %v1605 = vld [vmem:[%s1380 + $0x520] sm:$0xff]
        %v1606 = vld [vmem:[%s1380 + $0x528] sm:$0xff]
        %v1607 = vld [vmem:[%s1380 + $0x530] sm:$0xff]
        %v1608 = vld [vmem:[%s1380 + $0x538] sm:$0xff]
        %v1609 = vld [vmem:[%s1380 + $0x540] sm:$0xff]
        %v1610 = vld [vmem:[%s1380 + $0x548] sm:$0xff]
        %v1611 = vld [vmem:[%s1380 + $0x550] sm:$0xff]
        %v1612 = vld [vmem:[%s1380 + $0x558] sm:$0xff]
        %v1613 = vld [vmem:[%s1380 + $0x560] sm:$0xff]
        %v1614 = vld [vmem:[%s1380 + $0x568] sm:$0xff]
        %v1615 = vld [vmem:[%s1380 + $0x570] sm:$0xff]
        %v1616 = vld [vmem:[%s1380 + $0x578] sm:$0xff]
        %v1617 = vld [vmem:[%s1380 + $0x580] sm:$0xff]
        %v1618 = vld [vmem:[%s1380 + $0x588] sm:$0xff]
        %v1619 = vld [vmem:[%s1380 + $0x590] sm:$0xff]
        %v1620 = vld [vmem:[%s1380 + $0x598] sm:$0xff]
        %v1621 = vld [vmem:[%s1380 + $0x5a0] sm:$0xff]
        %v1622 = vld [vmem:[%s1380 + $0x5a8] sm:$0xff]
        %v1623 = vld [vmem:[%s1380 + $0x5b0] sm:$0xff]
        %v1624 = vld [vmem:[%s1380 + $0x5b8] sm:$0xff]
        %v1625 = vld [vmem:[%s1380 + $0x5c0] sm:$0xff]
        %v1626 = vld [vmem:[%s1380 + $0x5c8] sm:$0xff]
        %v1627 = vld [vmem:[%s1380 + $0x5d0] sm:$0xff]
        %v1628 = vld [vmem:[%s1380 + $0x5d8] sm:$0xff]
        %v1629 = vld [vmem:[%s1380 + $0x5e0] sm:$0xff]
        %v1630 = vld [vmem:[%s1380 + $0x5e8] sm:$0xff]
        %v1631 = vld [vmem:[%s1380 + $0x5f0] sm:$0xff]
        %v1632 = vld [vmem:[%s1380 + $0x5f8] sm:$0xff]
        %v1633 = vld [vmem:[%s1380 + $0x600] sm:$0xff]
        %v1634 = vld [vmem:[%s1380 + $0x608] sm:$0xff]
        %v1635 = vld [vmem:[%s1380 + $0x610] sm:$0xff]
        %v1636 = vld [vmem:[%s1380 + $0x618] sm:$0xff]
        %v1637 = vld [vmem:[%s1380 + $0x620] sm:$0xff]
        %v1638 = vld [vmem:[%s1380 + $0x628] sm:$0xff]
        %v1639 = vld [vmem:[%s1380 + $0x630] sm:$0xff]
        %v1640 = vld [vmem:[%s1380 + $0x638] sm:$0xff]
        %v1641 = vld [vmem:[%s1380 + $0x640] sm:$0xff]
        %v1642 = vld [vmem:[%s1380 + $0x648] sm:$0xff]
        %v1643 = vld [vmem:[%s1380 + $0x650] sm:$0xff]
        %v1644 = vld [vmem:[%s1380 + $0x658] sm:$0xff]
        %v1645 = vld [vmem:[%s1380 + $0x660] sm:$0xff]
        %v1646 = vld [vmem:[%s1380 + $0x668] sm:$0xff]
        %v1647 = vld [vmem:[%s1380 + $0x670] sm:$0xff]
        %v1648 = vld [vmem:[%s1380 + $0x678] sm:$0xff]
        %v1649 = vld [vmem:[%s1380 + $0x680] sm:$0xff]
        %v1650 = vld [vmem:[%s1380 + $0x688] sm:$0xff]
        %v1651 = vld [vmem:[%s1380 + $0x690] sm:$0xff]
        %v1652 = vld [vmem:[%s1380 + $0x698] sm:$0xff]
        %v1653 = vld [vmem:[%s1380 + $0x6a0] sm:$0xff]
        %v1654 = vld [vmem:[%s1380 + $0x6a8] sm:$0xff]
        %v1655 = vld [vmem:[%s1380 + $0x6b0] sm:$0xff]
        %v1656 = vld [vmem:[%s1380 + $0x6b8] sm:$0xff]
        %v1657 = vld [vmem:[%s1380 + $0x6c0] sm:$0xff]
        %v1658 = vld [vmem:[%s1380 + $0x6c8] sm:$0xff]
        %v1659 = vld [vmem:[%s1380 + $0x6d0] sm:$0xff]
        %v1660 = vld [vmem:[%s1380 + $0x6d8] sm:$0xff]
        %v1661 = vld [vmem:[%s1380 + $0x6e0] sm:$0xff]
        %v1662 = vld [vmem:[%s1380 + $0x6e8] sm:$0xff]
        %v1663 = vld [vmem:[%s1380 + $0x6f0] sm:$0xff]
        %v1664 = vld [vmem:[%s1380 + $0x6f8] sm:$0xff]
        %v1665 = vld [vmem:[%s1380 + $0x700] sm:$0xff]
        %v1666 = vld [vmem:[%s1380 + $0x708] sm:$0xff]
        %v1667 = vld [vmem:[%s1380 + $0x710] sm:$0xff]
        %v1668 = vld [vmem:[%s1380 + $0x718] sm:$0xff]
        %v1669 = vld [vmem:[%s1380 + $0x720] sm:$0xff]
        %v1670 = vld [vmem:[%s1380 + $0x728] sm:$0xff]
        %v1671 = vld [vmem:[%s1380 + $0x730] sm:$0xff]
        %v1672 = vld [vmem:[%s1380 + $0x738] sm:$0xff]
        %v1673 = vld [vmem:[%s1380 + $0x740] sm:$0xff]
        %v1674 = vld [vmem:[%s1380 + $0x748] sm:$0xff]
        %v1675 = vld [vmem:[%s1380 + $0x750] sm:$0xff]
        %v1676 = vld [vmem:[%s1380 + $0x758] sm:$0xff]
        %v1677 = vld [vmem:[%s1380 + $0x760] sm:$0xff]
        %v1678 = vld [vmem:[%s1380 + $0x768] sm:$0xff]
        %v1679 = vld [vmem:[%s1380 + $0x770] sm:$0xff]
        %v1680 = vld [vmem:[%s1380 + $0x778] sm:$0xff]
        %v1681 = vld [vmem:[%s1380 + $0x780] sm:$0xff]
        %v1682 = vld [vmem:[%s1380 + $0x788] sm:$0xff]
        %v1683 = vld [vmem:[%s1380 + $0x790] sm:$0xff]
        %v1684 = vld [vmem:[%s1380 + $0x798] sm:$0xff]
        %v1685 = vld [vmem:[%s1380 + $0x7a0] sm:$0xff]
        %v1686 = vld [vmem:[%s1380 + $0x7a8] sm:$0xff]
        %v1687 = vld [vmem:[%s1380 + $0x7b0] sm:$0xff]
        %v1688 = vld [vmem:[%s1380 + $0x7b8] sm:$0xff]
        %v1689 = vld [vmem:[%s1380 + $0x7c0] sm:$0xff]
        %v1690 = vld [vmem:[%s1380 + $0x7c8] sm:$0xff]
        %v1691 = vld [vmem:[%s1380 + $0x7d0] sm:$0xff]
        %v1692 = vld [vmem:[%s1380 + $0x7d8] sm:$0xff]
        %v1693 = vld [vmem:[%s1380 + $0x7e0] sm:$0xff]
        %v1694 = vld [vmem:[%s1380 + $0x7e8] sm:$0xff]
        %v1695 = vld [vmem:[%s1380 + $0x7f0] sm:$0xff]
        %v1696 = vld [vmem:[%s1380 + $0x7f8] sm:$0xff]
        %v1697 = vld [vmem:[%s1380 + $0x800] sm:$0xff]
        %v1698 = vld [vmem:[%s1380 + $0x808] sm:$0xff]
        %v1699 = vld [vmem:[%s1380 + $0x810] sm:$0xff]
        %v1700 = vld [vmem:[%s1380 + $0x818] sm:$0xff]
        %v1701 = vld [vmem:[%s1380 + $0x820] sm:$0xff]
        %v1702 = vld [vmem:[%s1380 + $0x828] sm:$0xff]
        %v1703 = vld [vmem:[%s1380 + $0x830] sm:$0xff]
        %v1704 = vld [vmem:[%s1380 + $0x838] sm:$0xff]
        %v1705 = vld [vmem:[%s1380 + $0x840] sm:$0xff]
        %v1706 = vld [vmem:[%s1380 + $0x848] sm:$0xff]
        %v1707 = vld [vmem:[%s1380 + $0x850] sm:$0xff]
        %v1708 = vld [vmem:[%s1380 + $0x858] sm:$0xff]
        %v1709 = vld [vmem:[%s1380 + $0x860] sm:$0xff]
        %v1710 = vld [vmem:[%s1380 + $0x868] sm:$0xff]
        %v1711 = vld [vmem:[%s1380 + $0x870] sm:$0xff]
        %v1712 = vld [vmem:[%s1380 + $0x878] sm:$0xff]
        %v1713 = vld [vmem:[%s1380 + $0x880] sm:$0xff]
        %v1714 = vld [vmem:[%s1380 + $0x888] sm:$0xff]
        %v1715 = vld [vmem:[%s1380 + $0x890] sm:$0xff]
        %v1716 = vld [vmem:[%s1380 + $0x898] sm:$0xff]
        %v1717 = vld [vmem:[%s1380 + $0x8a0] sm:$0xff]
        %v1718 = vld [vmem:[%s1380 + $0x8a8] sm:$0xff]
        %v1719 = vld [vmem:[%s1380 + $0x8b0] sm:$0xff]
        %v1720 = vld [vmem:[%s1380 + $0x8b8] sm:$0xff]
        %v1721 = vld [vmem:[%s1380 + $0x8c0] sm:$0xff]
        %v1722 = vld [vmem:[%s1380 + $0x8c8] sm:$0xff]
        %v1723 = vld [vmem:[%s1380 + $0x8d0] sm:$0xff]
        %v1724 = vld [vmem:[%s1380 + $0x8d8] sm:$0xff]
        %v1725 = vld [vmem:[%s1380 + $0x8e0] sm:$0xff]
        %v1726 = vld [vmem:[%s1380 + $0x8e8] sm:$0xff]
        %v1727 = vld [vmem:[%s1380 + $0x8f0] sm:$0xff]
        %v1728 = vld [vmem:[%s1380 + $0x8f8] sm:$0xff]
        %v1729 = vld [vmem:[%s1380 + $0x900] sm:$0xff]
        %v1730 = vld [vmem:[%s1380 + $0x908] sm:$0xff]
        %v1731 = vld [vmem:[%s1380 + $0x910] sm:$0xff]
        %v1732 = vld [vmem:[%s1380 + $0x918] sm:$0xff]
        %v1733 = vld [vmem:[%s1380 + $0x920] sm:$0xff]
        %v1734 = vld [vmem:[%s1380 + $0x928] sm:$0xff]
        %v1735 = vld [vmem:[%s1380 + $0x930] sm:$0xff]
        %v1736 = vld [vmem:[%s1380 + $0x938] sm:$0xff]
        %v1737 = vld [vmem:[%s1380 + $0x940] sm:$0xff]
        %v1738 = vld [vmem:[%s1380 + $0x948] sm:$0xff]
        %v1739 = vld [vmem:[%s1380 + $0x950] sm:$0xff]
        %v1740 = vld [vmem:[%s1380 + $0x958] sm:$0xff]
        %v1741 = vld [vmem:[%s1380 + $0x960] sm:$0xff]
        %v1742 = vld [vmem:[%s1380 + $0x968] sm:$0xff]
        %v1743 = vld [vmem:[%s1380 + $0x970] sm:$0xff]
        %v1744 = vld [vmem:[%s1380 + $0x978] sm:$0xff]
        %v1745 = vld [vmem:[%s1380 + $0x980] sm:$0xff]
        %v1746 = vld [vmem:[%s1380 + $0x988] sm:$0xff]
        %v1747 = vld [vmem:[%s1380 + $0x990] sm:$0xff]
        %v1748 = vld [vmem:[%s1380 + $0x998] sm:$0xff]
        %v1749 = vld [vmem:[%s1380 + $0x9a0] sm:$0xff]
        %v1750 = vld [vmem:[%s1380 + $0x9a8] sm:$0xff]
        %v1751 = vld [vmem:[%s1380 + $0x9b0] sm:$0xff]
        %v1752 = vld [vmem:[%s1380 + $0x9b8] sm:$0xff]
        %v1753 = vld [vmem:[%s1380 + $0x9c0] sm:$0xff]
        %v1754 = vld [vmem:[%s1380 + $0x9c8] sm:$0xff]
        %v1755 = vld [vmem:[%s1380 + $0x9d0] sm:$0xff]
        %v1756 = vld [vmem:[%s1380 + $0x9d8] sm:$0xff]
        %v1757 = vld [vmem:[%s1380 + $0x9e0] sm:$0xff]
        %v1758 = vld [vmem:[%s1380 + $0x9e8] sm:$0xff]
        %v1759 = vld [vmem:[%s1380 + $0x9f0] sm:$0xff]
        %v1760 = vld [vmem:[%s1380 + $0x9f8] sm:$0xff]
        %v1761 = vld [vmem:[%s1380 + $0xa00] sm:$0xff]
        %v1762 = vld [vmem:[%s1380 + $0xa08] sm:$0xff]
        %v1763 = vld [vmem:[%s1380 + $0xa10] sm:$0xff]
        %v1764 = vld [vmem:[%s1380 + $0xa18] sm:$0xff]
        %v1765 = vld [vmem:[%s1380 + $0xa20] sm:$0xff]
        %v1766 = vld [vmem:[%s1380 + $0xa28] sm:$0xff]
        %v1767 = vld [vmem:[%s1380 + $0xa30] sm:$0xff]
        %v1768 = vld [vmem:[%s1380 + $0xa38] sm:$0xff]
        %v1769 = vld [vmem:[%s1380 + $0xa40] sm:$0xff]
        %v1770 = vld [vmem:[%s1380 + $0xa48] sm:$0xff]
        %v1771 = vld [vmem:[%s1380 + $0xa50] sm:$0xff]
        %v1772 = vld [vmem:[%s1380 + $0xa58] sm:$0xff]
        %v1773 = vld [vmem:[%s1380 + $0xa60] sm:$0xff]
        %v1774 = vld [vmem:[%s1380 + $0xa68] sm:$0xff]
        %v1775 = vld [vmem:[%s1380 + $0xa70] sm:$0xff]
        %v1776 = vld [vmem:[%s1380 + $0xa78] sm:$0xff]
        %v1777 = vld [vmem:[%s1380 + $0xa80] sm:$0xff]
        %v1778 = vld [vmem:[%s1380 + $0xa88] sm:$0xff]
        %v1779 = vld [vmem:[%s1380 + $0xa90] sm:$0xff]
        %v1780 = vld [vmem:[%s1380 + $0xa98] sm:$0xff]
        %v1781 = vld [vmem:[%s1380 + $0xaa0] sm:$0xff]
        %v1782 = vld [vmem:[%s1380 + $0xaa8] sm:$0xff]
        %v1783 = vld [vmem:[%s1380 + $0xab0] sm:$0xff]
        %v1784 = vld [vmem:[%s1380 + $0xab8] sm:$0xff]
        %v1785 = vld [vmem:[%s1380 + $0xac0] sm:$0xff]
        %v1786 = vld [vmem:[%s1380 + $0xac8] sm:$0xff]
        %v1787 = vld [vmem:[%s1380 + $0xad0] sm:$0xff]
        %v1788 = vld [vmem:[%s1380 + $0xad8] sm:$0xff]
        %v1789 = vld [vmem:[%s1380 + $0xae0] sm:$0xff]
        %v1790 = vld [vmem:[%s1380 + $0xae8] sm:$0xff]
        %v1791 = vld [vmem:[%s1380 + $0xaf0] sm:$0xff]
        %v1792 = vld [vmem:[%s1380 + $0xaf8] sm:$0xff]
        %v1793 = vld [vmem:[%s1380 + $0xb00] sm:$0xff]
        %v1794 = vld [vmem:[%s1380 + $0xb08] sm:$0xff]
        %v1795 = vld [vmem:[%s1380 + $0xb10] sm:$0xff]
        %v1796 = vld [vmem:[%s1380 + $0xb18] sm:$0xff]
        %v1797 = vld [vmem:[%s1380 + $0xb20] sm:$0xff]
        %v1798 = vld [vmem:[%s1380 + $0xb28] sm:$0xff]
        %v1799 = vld [vmem:[%s1380 + $0xb30] sm:$0xff]
        %v1800 = vld [vmem:[%s1380 + $0xb38] sm:$0xff]
        %v1801 = vld [vmem:[%s1380 + $0xb40] sm:$0xff]
        %v1802 = vld [vmem:[%s1380 + $0xb48] sm:$0xff]
        %v1803 = vld [vmem:[%s1380 + $0xb50] sm:$0xff]
        %v1804 = vld [vmem:[%s1380 + $0xb58] sm:$0xff]
        %v1805 = vld [vmem:[%s1380 + $0xb60] sm:$0xff]
        %v1806 = vld [vmem:[%s1380 + $0xb68] sm:$0xff]
        %v1807 = vld [vmem:[%s1380 + $0xb70] sm:$0xff]
        %v1808 = vld [vmem:[%s1380 + $0xb78] sm:$0xff]
        %v1809 = vld [vmem:[%s1380 + $0xb80] sm:$0xff]
        %v1810 = vld [vmem:[%s1380 + $0xb88] sm:$0xff]
        %v1811 = vld [vmem:[%s1380 + $0xb90] sm:$0xff]
        %v1812 = vld [vmem:[%s1380 + $0xb98] sm:$0xff]
        %v1813 = vld [vmem:[%s1380 + $0xba0] sm:$0xff]
        %v1814 = vld [vmem:[%s1380 + $0xba8] sm:$0xff]
        %v1815 = vld [vmem:[%s1380 + $0xbb0] sm:$0xff]
        %v1816 = vld [vmem:[%s1380 + $0xbb8] sm:$0xff]
        %v1817 = vld [vmem:[%s1380 + $0xbc0] sm:$0xff]
        %v1818 = vld [vmem:[%s1380 + $0xbc8] sm:$0xff]
        %v1819 = vld [vmem:[%s1380 + $0xbd0] sm:$0xff]
        %v1820 = vld [vmem:[%s1380 + $0xbd8] sm:$0xff]
        %v1821 = vld [vmem:[%s1380 + $0xbe0] sm:$0xff]
        %v1822 = vld [vmem:[%s1380 + $0xbe8] sm:$0xff]
        %v1823 = vld [vmem:[%s1380 + $0xbf0] sm:$0xff]
        %v1824 = vld [vmem:[%s1380 + $0xbf8] sm:$0xff]
        %v1825 = vld [vmem:[%s1380 + $0xc00] sm:$0xff]
        %v1826 = vld [vmem:[%s1380 + $0xc08] sm:$0xff]
        %v1827 = vld [vmem:[%s1380 + $0xc10] sm:$0xff]
        %v1828 = vld [vmem:[%s1380 + $0xc18] sm:$0xff]
        %v1829 = vld [vmem:[%s1380 + $0xc20] sm:$0xff]
        %v1830 = vld [vmem:[%s1380 + $0xc28] sm:$0xff]
        %v1831 = vld [vmem:[%s1380 + $0xc30] sm:$0xff]
        %v1832 = vld [vmem:[%s1380 + $0xc38] sm:$0xff]
        %v1833 = vld [vmem:[%s1380 + $0xc40] sm:$0xff]
        %v1834 = vld [vmem:[%s1380 + $0xc48] sm:$0xff]
        %v1835 = vld [vmem:[%s1380 + $0xc50] sm:$0xff]
        %v1836 = vld [vmem:[%s1380 + $0xc58] sm:$0xff]
        %v1837 = vld [vmem:[%s1380 + $0xc60] sm:$0xff]
        %v1838 = vld [vmem:[%s1380 + $0xc68] sm:$0xff]
        %v1839 = vld [vmem:[%s1380 + $0xc70] sm:$0xff]
        %v1840 = vld [vmem:[%s1380 + $0xc78] sm:$0xff]
        %v1841 = vld [vmem:[%s1380 + $0xc80] sm:$0xff]
        %v1842 = vld [vmem:[%s1380 + $0xc88] sm:$0xff]
        %v1843 = vld [vmem:[%s1380 + $0xc90] sm:$0xff]
        %v1844 = vld [vmem:[%s1380 + $0xc98] sm:$0xff]
        %v1845 = vld [vmem:[%s1380 + $0xca0] sm:$0xff]
        %v1846 = vld [vmem:[%s1380 + $0xca8] sm:$0xff]
        %v1847 = vld [vmem:[%s1380 + $0xcb0] sm:$0xff]
        %v1848 = vld [vmem:[%s1380 + $0xcb8] sm:$0xff]
        %v1849 = vld [vmem:[%s1380 + $0xcc0] sm:$0xff]
        %v1850 = vld [vmem:[%s1380 + $0xcc8] sm:$0xff]
        %v1851 = vld [vmem:[%s1380 + $0xcd0] sm:$0xff]
        %v1852 = vld [vmem:[%s1380 + $0xcd8] sm:$0xff]
        %v1853 = vld [vmem:[%s1380 + $0xce0] sm:$0xff]
        %v1854 = vld [vmem:[%s1380 + $0xce8] sm:$0xff]
        %v1855 = vld [vmem:[%s1380 + $0xcf0] sm:$0xff]
        %v1856 = vld [vmem:[%s1380 + $0xcf8] sm:$0xff]
        %v1857 = vld [vmem:[%s1380 + $0xd00] sm:$0xff]
        %v1858 = vld [vmem:[%s1380 + $0xd08] sm:$0xff]
        %v1859 = vld [vmem:[%s1380 + $0xd10] sm:$0xff]
        %v1860 = vld [vmem:[%s1380 + $0xd18] sm:$0xff]
        %v1861 = vld [vmem:[%s1380 + $0xd20] sm:$0xff]
        %v1862 = vld [vmem:[%s1380 + $0xd28] sm:$0xff]
        %v1863 = vld [vmem:[%s1380 + $0xd30] sm:$0xff]
        %v1864 = vld [vmem:[%s1380 + $0xd38] sm:$0xff]
        %v1865 = vld [vmem:[%s1380 + $0xd40] sm:$0xff]
        %v1866 = vld [vmem:[%s1380 + $0xd48] sm:$0xff]
        %v1867 = vld [vmem:[%s1380 + $0xd50] sm:$0xff]
        %v1868 = vld [vmem:[%s1380 + $0xd58] sm:$0xff]
        %v1869 = vld [vmem:[%s1380 + $0xd60] sm:$0xff]
        %v1870 = vld [vmem:[%s1380 + $0xd68] sm:$0xff]
        %v1871 = vld [vmem:[%s1380 + $0xd70] sm:$0xff]
        %v1872 = vld [vmem:[%s1380 + $0xd78] sm:$0xff]
        %v1873 = vld [vmem:[%s1380 + $0xd80] sm:$0xff]
        %v1874 = vld [vmem:[%s1380 + $0xd88] sm:$0xff]
        %v1875 = vld [vmem:[%s1380 + $0xd90] sm:$0xff]
        %v1876 = vld [vmem:[%s1380 + $0xd98] sm:$0xff]
        %v1877 = vld [vmem:[%s1380 + $0xda0] sm:$0xff]
        %v1878 = vld [vmem:[%s1380 + $0xda8] sm:$0xff]
        %v1879 = vld [vmem:[%s1380 + $0xdb0] sm:$0xff]
        %v1880 = vld [vmem:[%s1380 + $0xdb8] sm:$0xff]
        %v1881 = vld [vmem:[%s1380 + $0xdc0] sm:$0xff]
        %v1882 = vld [vmem:[%s1380 + $0xdc8] sm:$0xff]
        %v1883 = vld [vmem:[%s1380 + $0xdd0] sm:$0xff]
        %v1884 = vld [vmem:[%s1380 + $0xdd8] sm:$0xff]
        %v1885 = vld [vmem:[%s1380 + $0xde0] sm:$0xff]
        %v1886 = vld [vmem:[%s1380 + $0xde8] sm:$0xff]
        %v1887 = vld [vmem:[%s1380 + $0xdf0] sm:$0xff]
        %v1888 = vld [vmem:[%s1380 + $0xdf8] sm:$0xff]
        %v1889 = vld [vmem:[%s1380 + $0xe00] sm:$0xff]
        %v1890 = vld [vmem:[%s1380 + $0xe08] sm:$0xff]
        %v1891 = vld [vmem:[%s1380 + $0xe10] sm:$0xff]
        %v1892 = vld [vmem:[%s1380 + $0xe18] sm:$0xff]
        %v1893 = vld [vmem:[%s1380 + $0xe20] sm:$0xff]
        %v1894 = vld [vmem:[%s1380 + $0xe28] sm:$0xff]
        %v1895 = vld [vmem:[%s1380 + $0xe30] sm:$0xff]
        %v1896 = vld [vmem:[%s1380 + $0xe38] sm:$0xff]
        %v1897 = vld [vmem:[%s1380 + $0xe40] sm:$0xff]
        %v1898 = vld [vmem:[%s1380 + $0xe48] sm:$0xff]
        %v1899 = vld [vmem:[%s1380 + $0xe50] sm:$0xff]
        %v1900 = vld [vmem:[%s1380 + $0xe58] sm:$0xff]
        %v1901 = vld [vmem:[%s1380 + $0xe60] sm:$0xff]
        %v1902 = vld [vmem:[%s1380 + $0xe68] sm:$0xff]
        %v1903 = vld [vmem:[%s1380 + $0xe70] sm:$0xff]
        %v1904 = vld [vmem:[%s1380 + $0xe78] sm:$0xff]
        %v1905 = vld [vmem:[%s1380 + $0xe80] sm:$0xff]
        %v1906 = vld [vmem:[%s1380 + $0xe88] sm:$0xff]
        %v1907 = vld [vmem:[%s1380 + $0xe90] sm:$0xff]
        %v1908 = vld [vmem:[%s1380 + $0xe98] sm:$0xff]
        %v1909 = vld [vmem:[%s1380 + $0xea0] sm:$0xff]
        %v1910 = vld [vmem:[%s1380 + $0xea8] sm:$0xff]
        %v1911 = vld [vmem:[%s1380 + $0xeb0] sm:$0xff]
        %v1912 = vld [vmem:[%s1380 + $0xeb8] sm:$0xff]
        %v1913 = vld [vmem:[%s1380 + $0xec0] sm:$0xff]
        %v1914 = vld [vmem:[%s1380 + $0xec8] sm:$0xff]
        %v1915 = vld [vmem:[%s1380 + $0xed0] sm:$0xff]
        %v1916 = vld [vmem:[%s1380 + $0xed8] sm:$0xff]
        %v1917 = vld [vmem:[%s1380 + $0xee0] sm:$0xff]
        %v1918 = vld [vmem:[%s1380 + $0xee8] sm:$0xff]
        %v1919 = vld [vmem:[%s1380 + $0xef0] sm:$0xff]
        %v1920 = vld [vmem:[%s1380 + $0xef8] sm:$0xff]
        %v1921 = vld [vmem:[%s1380 + $0xf00] sm:$0xff]
        %v1922 = vld [vmem:[%s1380 + $0xf08] sm:$0xff]
        %v1923 = vld [vmem:[%s1380 + $0xf10] sm:$0xff]
        %v1924 = vld [vmem:[%s1380 + $0xf18] sm:$0xff]
        %v1925 = vld [vmem:[%s1380 + $0xf20] sm:$0xff]
        %v1926 = vld [vmem:[%s1380 + $0xf28] sm:$0xff]
        %v1927 = vld [vmem:[%s1380 + $0xf30] sm:$0xff]
        %v1928 = vld [vmem:[%s1380 + $0xf38] sm:$0xff]
        %v1929 = vld [vmem:[%s1380 + $0xf40] sm:$0xff]
        %v1930 = vld [vmem:[%s1380 + $0xf48] sm:$0xff]
        %v1931 = vld [vmem:[%s1380 + $0xf50] sm:$0xff]
        %v1932 = vld [vmem:[%s1380 + $0xf58] sm:$0xff]
        %v1933 = vld [vmem:[%s1380 + $0xf60] sm:$0xff]
        %v1934 = vld [vmem:[%s1380 + $0xf68] sm:$0xff]
        %v1935 = vld [vmem:[%s1380 + $0xf70] sm:$0xff]
        %v1936 = vld [vmem:[%s1380 + $0xf78] sm:$0xff]
        %v1937 = vld [vmem:[%s1380 + $0xf80] sm:$0xff]
        %v1938 = vld [vmem:[%s1380 + $0xf88] sm:$0xff]
        %v1939 = vld [vmem:[%s1380 + $0xf90] sm:$0xff]
        %v1940 = vld [vmem:[%s1380 + $0xf98] sm:$0xff]
        %v1941 = vld [vmem:[%s1380 + $0xfa0] sm:$0xff]
        %v1942 = vld [vmem:[%s1380 + $0xfa8] sm:$0xff]
        %v1943 = vld [vmem:[%s1380 + $0xfb0] sm:$0xff]
        %v1944 = vld [vmem:[%s1380 + $0xfb8] sm:$0xff]
        %v1945 = vld [vmem:[%s1380 + $0xfc0] sm:$0xff]
        %v1946 = vld [vmem:[%s1380 + $0xfc8] sm:$0xff]
        %v1947 = vld [vmem:[%s1380 + $0xfd0] sm:$0xff]
        %v1948 = vld [vmem:[%s1380 + $0xfd8] sm:$0xff]
        %v1949 = vld [vmem:[%s1380 + $0xfe0] sm:$0xff]
        %v1950 = vld [vmem:[%s1380 + $0xfe8] sm:$0xff]
        %v1951 = vld [vmem:[%s1380 + $0xff0] sm:$0xff]
        %v1952 = vld [vmem:[%s1380 + $0xff8] sm:$0xff]
        %v1953 = vadd.f32 %v1441, %v1442
        %v1954 = vadd.f32 %v1953, %v1443
        %vm1955 = vcmask 64512
        %v1956 = vsel %vm1955, %v1444, 0.0
        %v1957 = vadd.f32 %v1954, %v1956
        %1958 = vadd.xlane.f32.xlu0 %v1957
        %v1959 = vpop.xlane.xlu0 %1958
        %v1960 = vadd.f32 %v1445, %v1446
        %v1961 = vadd.f32 %v1960, %v1447
        %v1962 = vsel %vm1955, %v1448, 0.0
        %v1963 = vadd.f32 %v1961, %v1962
        %1964 = vadd.xlane.f32.xlu0 %v1963
        %v1965 = vpop.xlane.xlu0 %1964
        %v1966 = vadd.f32 %v1449, %v1450
        %v1967 = vadd.f32 %v1966, %v1451
        %v1968 = vsel %vm1955, %v1452, 0.0
        %v1969 = vadd.f32 %v1967, %v1968
        %1970 = vadd.xlane.f32.xlu0 %v1969
        %v1971 = vpop.xlane.xlu0 %1970
        %v1972 = vadd.f32 %v1453, %v1454
        %v1973 = vadd.f32 %v1972, %v1455
        %v1974 = vsel %vm1955, %v1456, 0.0
        %v1975 = vadd.f32 %v1973, %v1974
        %1976 = vadd.xlane.f32.xlu0 %v1975
        %v1977 = vpop.xlane.xlu0 %1976
        %v1978 = vadd.f32 %v1457, %v1458
        %v1979 = vadd.f32 %v1978, %v1459
        %v1980 = vsel %vm1955, %v1460, 0.0
        %v1981 = vadd.f32 %v1979, %v1980
        %1982 = vadd.xlane.f32.xlu0 %v1981
        %v1983 = vpop.xlane.xlu0 %1982
        %v1984 = vadd.f32 %v1461, %v1462
        %v1985 = vadd.f32 %v1984, %v1463
        %v1986 = vsel %vm1955, %v1464, 0.0
        %v1987 = vadd.f32 %v1985, %v1986
        %1988 = vadd.xlane.f32.xlu0 %v1987
        %v1989 = vpop.xlane.xlu0 %1988
        %v1990 = vadd.f32 %v1465, %v1466
        %v1991 = vadd.f32 %v1990, %v1467
        %v1992 = vsel %vm1955, %v1468, 0.0
        %v1993 = vadd.f32 %v1991, %v1992
        %1994 = vadd.xlane.f32.xlu0 %v1993
        %v1995 = vpop.xlane.xlu0 %1994
        %v1996 = vadd.f32 %v1469, %v1470
        %v1997 = vadd.f32 %v1996, %v1471
        %v1998 = vsel %vm1955, %v1472, 0.0
        %v1999 = vadd.f32 %v1997, %v1998
        %2000 = vadd.xlane.f32.xlu0 %v1999
        %v2001 = vpop.xlane.xlu0 %2000
        %v2002 = vadd.f32 %v1473, %v1474
        %v2003 = vadd.f32 %v2002, %v1475
        %v2004 = vsel %vm1955, %v1476, 0.0
        %v2005 = vadd.f32 %v2003, %v2004
        %2006 = vadd.xlane.f32.xlu0 %v2005
        %v2007 = vpop.xlane.xlu0 %2006
        %v2008 = vadd.f32 %v1477, %v1478
        %v2009 = vadd.f32 %v2008, %v1479
        %v2010 = vsel %vm1955, %v1480, 0.0
        %v2011 = vadd.f32 %v2009, %v2010
        %2012 = vadd.xlane.f32.xlu0 %v2011
        %v2013 = vpop.xlane.xlu0 %2012
        %v2014 = vadd.f32 %v1481, %v1482
        %v2015 = vadd.f32 %v2014, %v1483
        %v2016 = vsel %vm1955, %v1484, 0.0
        %v2017 = vadd.f32 %v2015, %v2016
        %2018 = vadd.xlane.f32.xlu0 %v2017
        %v2019 = vpop.xlane.xlu0 %2018
        %v2020 = vadd.f32 %v1485, %v1486
        %v2021 = vadd.f32 %v2020, %v1487
        %v2022 = vsel %vm1955, %v1488, 0.0
        %v2023 = vadd.f32 %v2021, %v2022
        %2024 = vadd.xlane.f32.xlu0 %v2023
        %v2025 = vpop.xlane.xlu0 %2024
        %v2026 = vadd.f32 %v1489, %v1490
        %v2027 = vadd.f32 %v2026, %v1491
        %v2028 = vsel %vm1955, %v1492, 0.0
        %v2029 = vadd.f32 %v2027, %v2028
        %2030 = vadd.xlane.f32.xlu0 %v2029
        %v2031 = vpop.xlane.xlu0 %2030
        %v2032 = vadd.f32 %v1493, %v1494
        %v2033 = vadd.f32 %v2032, %v1495
        %v2034 = vsel %vm1955, %v1496, 0.0
        %v2035 = vadd.f32 %v2033, %v2034
        %2036 = vadd.xlane.f32.xlu0 %v2035
        %v2037 = vpop.xlane.xlu0 %2036
        %v2038 = vadd.f32 %v1497, %v1498
        %v2039 = vadd.f32 %v2038, %v1499
        %v2040 = vsel %vm1955, %v1500, 0.0
        %v2041 = vadd.f32 %v2039, %v2040
        %2042 = vadd.xlane.f32.xlu0 %v2041
        %v2043 = vpop.xlane.xlu0 %2042
        %v2044 = vadd.f32 %v1501, %v1502
        %v2045 = vadd.f32 %v2044, %v1503
        %v2046 = vsel %vm1955, %v1504, 0.0
        %v2047 = vadd.f32 %v2045, %v2046
        %2048 = vadd.xlane.f32.xlu0 %v2047
        %v2049 = vpop.xlane.xlu0 %2048
        %v2050 = vadd.f32 %v1505, %v1506
        %v2051 = vadd.f32 %v2050, %v1507
        %v2052 = vsel %vm1955, %v1508, 0.0
        %v2053 = vadd.f32 %v2051, %v2052
        %2054 = vadd.xlane.f32.xlu0 %v2053
        %v2055 = vpop.xlane.xlu0 %2054
        %v2056 = vadd.f32 %v1509, %v1510
        %v2057 = vadd.f32 %v2056, %v1511
        %v2058 = vsel %vm1955, %v1512, 0.0
        %v2059 = vadd.f32 %v2057, %v2058
        %2060 = vadd.xlane.f32.xlu0 %v2059
        %v2061 = vpop.xlane.xlu0 %2060
        %v2062 = vadd.f32 %v1513, %v1514
        %v2063 = vadd.f32 %v2062, %v1515
        %v2064 = vsel %vm1955, %v1516, 0.0
        %v2065 = vadd.f32 %v2063, %v2064
        %2066 = vadd.xlane.f32.xlu0 %v2065
        %v2067 = vpop.xlane.xlu0 %2066
        %v2068 = vadd.f32 %v1517, %v1518
        %v2069 = vadd.f32 %v2068, %v1519
        %v2070 = vsel %vm1955, %v1520, 0.0
        %v2071 = vadd.f32 %v2069, %v2070
        %2072 = vadd.xlane.f32.xlu0 %v2071
        %v2073 = vpop.xlane.xlu0 %2072
        %v2074 = vadd.f32 %v1521, %v1522
        %v2075 = vadd.f32 %v2074, %v1523
        %v2076 = vsel %vm1955, %v1524, 0.0
        %v2077 = vadd.f32 %v2075, %v2076
        %2078 = vadd.xlane.f32.xlu0 %v2077
        %v2079 = vpop.xlane.xlu0 %2078
        %v2080 = vadd.f32 %v1525, %v1526
        %v2081 = vadd.f32 %v2080, %v1527
        %v2082 = vsel %vm1955, %v1528, 0.0
        %v2083 = vadd.f32 %v2081, %v2082
        %2084 = vadd.xlane.f32.xlu0 %v2083
        %v2085 = vpop.xlane.xlu0 %2084
        %v2086 = vadd.f32 %v1529, %v1530
        %v2087 = vadd.f32 %v2086, %v1531
        %v2088 = vsel %vm1955, %v1532, 0.0
        %v2089 = vadd.f32 %v2087, %v2088
        %2090 = vadd.xlane.f32.xlu0 %v2089
        %v2091 = vpop.xlane.xlu0 %2090
        %v2092 = vadd.f32 %v1533, %v1534
        %v2093 = vadd.f32 %v2092, %v1535
        %v2094 = vsel %vm1955, %v1536, 0.0
        %v2095 = vadd.f32 %v2093, %v2094
        %2096 = vadd.xlane.f32.xlu0 %v2095
        %v2097 = vpop.xlane.xlu0 %2096
        %v2098 = vadd.f32 %v1537, %v1538
        %v2099 = vadd.f32 %v2098, %v1539
        %v2100 = vsel %vm1955, %v1540, 0.0
        %v2101 = vadd.f32 %v2099, %v2100
        %2102 = vadd.xlane.f32.xlu0 %v2101
        %v2103 = vpop.xlane.xlu0 %2102
        %v2104 = vadd.f32 %v1541, %v1542
        %v2105 = vadd.f32 %v2104, %v1543
        %v2106 = vsel %vm1955, %v1544, 0.0
        %v2107 = vadd.f32 %v2105, %v2106
        %2108 = vadd.xlane.f32.xlu0 %v2107
        %v2109 = vpop.xlane.xlu0 %2108
        %v2110 = vadd.f32 %v1545, %v1546
        %v2111 = vadd.f32 %v2110, %v1547
        %v2112 = vsel %vm1955, %v1548, 0.0
        %v2113 = vadd.f32 %v2111, %v2112
        %2114 = vadd.xlane.f32.xlu0 %v2113
        %v2115 = vpop.xlane.xlu0 %2114
        %v2116 = vadd.f32 %v1549, %v1550
        %v2117 = vadd.f32 %v2116, %v1551
        %v2118 = vsel %vm1955, %v1552, 0.0
        %v2119 = vadd.f32 %v2117, %v2118
        %2120 = vadd.xlane.f32.xlu0 %v2119
        %v2121 = vpop.xlane.xlu0 %2120
        %v2122 = vadd.f32 %v1553, %v1554
        %v2123 = vadd.f32 %v2122, %v1555
        %v2124 = vsel %vm1955, %v1556, 0.0
        %v2125 = vadd.f32 %v2123, %v2124
        %2126 = vadd.xlane.f32.xlu0 %v2125
        %v2127 = vpop.xlane.xlu0 %2126
        %v2128 = vadd.f32 %v1557, %v1558
        %v2129 = vadd.f32 %v2128, %v1559
        %v2130 = vsel %vm1955, %v1560, 0.0
        %v2131 = vadd.f32 %v2129, %v2130
        %2132 = vadd.xlane.f32.xlu0 %v2131
        %v2133 = vpop.xlane.xlu0 %2132
        %v2134 = vadd.f32 %v1561, %v1562
        %v2135 = vadd.f32 %v2134, %v1563
        %v2136 = vsel %vm1955, %v1564, 0.0
        %v2137 = vadd.f32 %v2135, %v2136
        %2138 = vadd.xlane.f32.xlu0 %v2137
        %v2139 = vpop.xlane.xlu0 %2138
        %v2140 = vadd.f32 %v1565, %v1566
        %v2141 = vadd.f32 %v2140, %v1567
        %v2142 = vsel %vm1955, %v1568, 0.0
        %v2143 = vadd.f32 %v2141, %v2142
        %2144 = vadd.xlane.f32.xlu0 %v2143
        %v2145 = vpop.xlane.xlu0 %2144
        %v2146 = vadd.f32 %v1569, %v1570
        %v2147 = vadd.f32 %v2146, %v1571
        %v2148 = vsel %vm1955, %v1572, 0.0
        %v2149 = vadd.f32 %v2147, %v2148
        %2150 = vadd.xlane.f32.xlu0 %v2149
        %v2151 = vpop.xlane.xlu0 %2150
        %v2152 = vadd.f32 %v1573, %v1574
        %v2153 = vadd.f32 %v2152, %v1575
        %v2154 = vsel %vm1955, %v1576, 0.0
        %v2155 = vadd.f32 %v2153, %v2154
        %2156 = vadd.xlane.f32.xlu0 %v2155
        %v2157 = vpop.xlane.xlu0 %2156
        %v2158 = vadd.f32 %v1577, %v1578
        %v2159 = vadd.f32 %v2158, %v1579
        %v2160 = vsel %vm1955, %v1580, 0.0
        %v2161 = vadd.f32 %v2159, %v2160
        %2162 = vadd.xlane.f32.xlu0 %v2161
        %v2163 = vpop.xlane.xlu0 %2162
        %v2164 = vadd.f32 %v1581, %v1582
        %v2165 = vadd.f32 %v2164, %v1583
        %v2166 = vsel %vm1955, %v1584, 0.0
        %v2167 = vadd.f32 %v2165, %v2166
        %2168 = vadd.xlane.f32.xlu0 %v2167
        %v2169 = vpop.xlane.xlu0 %2168
        %v2170 = vadd.f32 %v1585, %v1586
        %v2171 = vadd.f32 %v2170, %v1587
        %v2172 = vsel %vm1955, %v1588, 0.0
        %v2173 = vadd.f32 %v2171, %v2172
        %2174 = vadd.xlane.f32.xlu0 %v2173
        %v2175 = vpop.xlane.xlu0 %2174
        %v2176 = vadd.f32 %v1589, %v1590
        %v2177 = vadd.f32 %v2176, %v1591
        %v2178 = vsel %vm1955, %v1592, 0.0
        %v2179 = vadd.f32 %v2177, %v2178
        %2180 = vadd.xlane.f32.xlu0 %v2179
        %v2181 = vpop.xlane.xlu0 %2180
        %v2182 = vadd.f32 %v1593, %v1594
        %v2183 = vadd.f32 %v2182, %v1595
        %v2184 = vsel %vm1955, %v1596, 0.0
        %v2185 = vadd.f32 %v2183, %v2184
        %2186 = vadd.xlane.f32.xlu0 %v2185
        %v2187 = vpop.xlane.xlu0 %2186
        %v2188 = vadd.f32 %v1597, %v1598
        %v2189 = vadd.f32 %v2188, %v1599
        %v2190 = vsel %vm1955, %v1600, 0.0
        %v2191 = vadd.f32 %v2189, %v2190
        %2192 = vadd.xlane.f32.xlu0 %v2191
        %v2193 = vpop.xlane.xlu0 %2192
        %v2194 = vadd.f32 %v1601, %v1602
        %v2195 = vadd.f32 %v2194, %v1603
        %v2196 = vsel %vm1955, %v1604, 0.0
        %v2197 = vadd.f32 %v2195, %v2196
        %2198 = vadd.xlane.f32.xlu0 %v2197
        %v2199 = vpop.xlane.xlu0 %2198
        %v2200 = vadd.f32 %v1605, %v1606
        %v2201 = vadd.f32 %v2200, %v1607
        %v2202 = vsel %vm1955, %v1608, 0.0
        %v2203 = vadd.f32 %v2201, %v2202
        %2204 = vadd.xlane.f32.xlu0 %v2203
        %v2205 = vpop.xlane.xlu0 %2204
        %v2206 = vadd.f32 %v1609, %v1610
        %v2207 = vadd.f32 %v2206, %v1611
        %v2208 = vsel %vm1955, %v1612, 0.0
        %v2209 = vadd.f32 %v2207, %v2208
        %2210 = vadd.xlane.f32.xlu0 %v2209
        %v2211 = vpop.xlane.xlu0 %2210
        %v2212 = vadd.f32 %v1613, %v1614
        %v2213 = vadd.f32 %v2212, %v1615
        %v2214 = vsel %vm1955, %v1616, 0.0
        %v2215 = vadd.f32 %v2213, %v2214
        %2216 = vadd.xlane.f32.xlu0 %v2215
        %v2217 = vpop.xlane.xlu0 %2216
        %v2218 = vadd.f32 %v1617, %v1618
        %v2219 = vadd.f32 %v2218, %v1619
        %v2220 = vsel %vm1955, %v1620, 0.0
        %v2221 = vadd.f32 %v2219, %v2220
        %2222 = vadd.xlane.f32.xlu0 %v2221
        %v2223 = vpop.xlane.xlu0 %2222
        %v2224 = vadd.f32 %v1621, %v1622
        %v2225 = vadd.f32 %v2224, %v1623
        %v2226 = vsel %vm1955, %v1624, 0.0
        %v2227 = vadd.f32 %v2225, %v2226
        %2228 = vadd.xlane.f32.xlu0 %v2227
        %v2229 = vpop.xlane.xlu0 %2228
        %v2230 = vadd.f32 %v1625, %v1626
        %v2231 = vadd.f32 %v2230, %v1627
        %v2232 = vsel %vm1955, %v1628, 0.0
        %v2233 = vadd.f32 %v2231, %v2232
        %2234 = vadd.xlane.f32.xlu0 %v2233
        %v2235 = vpop.xlane.xlu0 %2234
        %v2236 = vadd.f32 %v1629, %v1630
        %v2237 = vadd.f32 %v2236, %v1631
        %v2238 = vsel %vm1955, %v1632, 0.0
        %v2239 = vadd.f32 %v2237, %v2238
        %2240 = vadd.xlane.f32.xlu0 %v2239
        %v2241 = vpop.xlane.xlu0 %2240
        %v2242 = vadd.f32 %v1633, %v1634
        %v2243 = vadd.f32 %v2242, %v1635
        %v2244 = vsel %vm1955, %v1636, 0.0
        %v2245 = vadd.f32 %v2243, %v2244
        %2246 = vadd.xlane.f32.xlu0 %v2245
        %v2247 = vpop.xlane.xlu0 %2246
        %v2248 = vadd.f32 %v1637, %v1638
        %v2249 = vadd.f32 %v2248, %v1639
        %v2250 = vsel %vm1955, %v1640, 0.0
        %v2251 = vadd.f32 %v2249, %v2250
        %2252 = vadd.xlane.f32.xlu0 %v2251
        %v2253 = vpop.xlane.xlu0 %2252
        %v2254 = vadd.f32 %v1641, %v1642
        %v2255 = vadd.f32 %v2254, %v1643
        %v2256 = vsel %vm1955, %v1644, 0.0
        %v2257 = vadd.f32 %v2255, %v2256
        %2258 = vadd.xlane.f32.xlu0 %v2257
        %v2259 = vpop.xlane.xlu0 %2258
        %v2260 = vadd.f32 %v1645, %v1646
        %v2261 = vadd.f32 %v2260, %v1647
        %v2262 = vsel %vm1955, %v1648, 0.0
        %v2263 = vadd.f32 %v2261, %v2262
        %2264 = vadd.xlane.f32.xlu0 %v2263
        %v2265 = vpop.xlane.xlu0 %2264
        %v2266 = vadd.f32 %v1649, %v1650
        %v2267 = vadd.f32 %v2266, %v1651
        %v2268 = vsel %vm1955, %v1652, 0.0
        %v2269 = vadd.f32 %v2267, %v2268
        %2270 = vadd.xlane.f32.xlu0 %v2269
        %v2271 = vpop.xlane.xlu0 %2270
        %v2272 = vadd.f32 %v1653, %v1654
        %v2273 = vadd.f32 %v2272, %v1655
        %v2274 = vsel %vm1955, %v1656, 0.0
        %v2275 = vadd.f32 %v2273, %v2274
        %2276 = vadd.xlane.f32.xlu0 %v2275
        %v2277 = vpop.xlane.xlu0 %2276
        %v2278 = vadd.f32 %v1657, %v1658
        %v2279 = vadd.f32 %v2278, %v1659
        %v2280 = vsel %vm1955, %v1660, 0.0
        %v2281 = vadd.f32 %v2279, %v2280
        %2282 = vadd.xlane.f32.xlu0 %v2281
        %v2283 = vpop.xlane.xlu0 %2282
        %v2284 = vadd.f32 %v1661, %v1662
        %v2285 = vadd.f32 %v2284, %v1663
        %v2286 = vsel %vm1955, %v1664, 0.0
        %v2287 = vadd.f32 %v2285, %v2286
        %2288 = vadd.xlane.f32.xlu0 %v2287
        %v2289 = vpop.xlane.xlu0 %2288
        %v2290 = vadd.f32 %v1665, %v1666
        %v2291 = vadd.f32 %v2290, %v1667
        %v2292 = vsel %vm1955, %v1668, 0.0
        %v2293 = vadd.f32 %v2291, %v2292
        %2294 = vadd.xlane.f32.xlu0 %v2293
        %v2295 = vpop.xlane.xlu0 %2294
        %v2296 = vadd.f32 %v1669, %v1670
        %v2297 = vadd.f32 %v2296, %v1671
        %v2298 = vsel %vm1955, %v1672, 0.0
        %v2299 = vadd.f32 %v2297, %v2298
        %2300 = vadd.xlane.f32.xlu0 %v2299
        %v2301 = vpop.xlane.xlu0 %2300
        %v2302 = vadd.f32 %v1673, %v1674
        %v2303 = vadd.f32 %v2302, %v1675
        %v2304 = vsel %vm1955, %v1676, 0.0
        %v2305 = vadd.f32 %v2303, %v2304
        %2306 = vadd.xlane.f32.xlu0 %v2305
        %v2307 = vpop.xlane.xlu0 %2306
        %v2308 = vadd.f32 %v1677, %v1678
        %v2309 = vadd.f32 %v2308, %v1679
        %v2310 = vsel %vm1955, %v1680, 0.0
        %v2311 = vadd.f32 %v2309, %v2310
        %2312 = vadd.xlane.f32.xlu0 %v2311
        %v2313 = vpop.xlane.xlu0 %2312
        %v2314 = vadd.f32 %v1681, %v1682
        %v2315 = vadd.f32 %v2314, %v1683
        %v2316 = vsel %vm1955, %v1684, 0.0
        %v2317 = vadd.f32 %v2315, %v2316
        %2318 = vadd.xlane.f32.xlu0 %v2317
        %v2319 = vpop.xlane.xlu0 %2318
        %v2320 = vadd.f32 %v1685, %v1686
        %v2321 = vadd.f32 %v2320, %v1687
        %v2322 = vsel %vm1955, %v1688, 0.0
        %v2323 = vadd.f32 %v2321, %v2322
        %2324 = vadd.xlane.f32.xlu0 %v2323
        %v2325 = vpop.xlane.xlu0 %2324
        %v2326 = vadd.f32 %v1689, %v1690
        %v2327 = vadd.f32 %v2326, %v1691
        %v2328 = vsel %vm1955, %v1692, 0.0
        %v2329 = vadd.f32 %v2327, %v2328
        %2330 = vadd.xlane.f32.xlu0 %v2329
        %v2331 = vpop.xlane.xlu0 %2330
        %v2332 = vadd.f32 %v1693, %v1694
        %v2333 = vadd.f32 %v2332, %v1695
        %v2334 = vsel %vm1955, %v1696, 0.0
        %v2335 = vadd.f32 %v2333, %v2334
        %2336 = vadd.xlane.f32.xlu0 %v2335
        %v2337 = vpop.xlane.xlu0 %2336
        %v2338 = vadd.f32 %v1697, %v1698
        %v2339 = vadd.f32 %v2338, %v1699
        %v2340 = vsel %vm1955, %v1700, 0.0
        %v2341 = vadd.f32 %v2339, %v2340
        %2342 = vadd.xlane.f32.xlu0 %v2341
        %v2343 = vpop.xlane.xlu0 %2342
        %v2344 = vadd.f32 %v1701, %v1702
        %v2345 = vadd.f32 %v2344, %v1703
        %v2346 = vsel %vm1955, %v1704, 0.0
        %v2347 = vadd.f32 %v2345, %v2346
        %2348 = vadd.xlane.f32.xlu0 %v2347
        %v2349 = vpop.xlane.xlu0 %2348
        %v2350 = vadd.f32 %v1705, %v1706
        %v2351 = vadd.f32 %v2350, %v1707
        %v2352 = vsel %vm1955, %v1708, 0.0
        %v2353 = vadd.f32 %v2351, %v2352
        %2354 = vadd.xlane.f32.xlu0 %v2353
        %v2355 = vpop.xlane.xlu0 %2354
        %v2356 = vadd.f32 %v1709, %v1710
        %v2357 = vadd.f32 %v2356, %v1711
        %v2358 = vsel %vm1955, %v1712, 0.0
        %v2359 = vadd.f32 %v2357, %v2358
        %2360 = vadd.xlane.f32.xlu0 %v2359
        %v2361 = vpop.xlane.xlu0 %2360
        %v2362 = vadd.f32 %v1713, %v1714
        %v2363 = vadd.f32 %v2362, %v1715
        %v2364 = vsel %vm1955, %v1716, 0.0
        %v2365 = vadd.f32 %v2363, %v2364
        %2366 = vadd.xlane.f32.xlu0 %v2365
        %v2367 = vpop.xlane.xlu0 %2366
        %v2368 = vadd.f32 %v1717, %v1718
        %v2369 = vadd.f32 %v2368, %v1719
        %v2370 = vsel %vm1955, %v1720, 0.0
        %v2371 = vadd.f32 %v2369, %v2370
        %2372 = vadd.xlane.f32.xlu0 %v2371
        %v2373 = vpop.xlane.xlu0 %2372
        %v2374 = vadd.f32 %v1721, %v1722
        %v2375 = vadd.f32 %v2374, %v1723
        %v2376 = vsel %vm1955, %v1724, 0.0
        %v2377 = vadd.f32 %v2375, %v2376
        %2378 = vadd.xlane.f32.xlu0 %v2377
        %v2379 = vpop.xlane.xlu0 %2378
        %v2380 = vadd.f32 %v1725, %v1726
        %v2381 = vadd.f32 %v2380, %v1727
        %v2382 = vsel %vm1955, %v1728, 0.0
        %v2383 = vadd.f32 %v2381, %v2382
        %2384 = vadd.xlane.f32.xlu0 %v2383
        %v2385 = vpop.xlane.xlu0 %2384
        %v2386 = vadd.f32 %v1729, %v1730
        %v2387 = vadd.f32 %v2386, %v1731
        %v2388 = vsel %vm1955, %v1732, 0.0
        %v2389 = vadd.f32 %v2387, %v2388
        %2390 = vadd.xlane.f32.xlu0 %v2389
        %v2391 = vpop.xlane.xlu0 %2390
        %v2392 = vadd.f32 %v1733, %v1734
        %v2393 = vadd.f32 %v2392, %v1735
        %v2394 = vsel %vm1955, %v1736, 0.0
        %v2395 = vadd.f32 %v2393, %v2394
        %2396 = vadd.xlane.f32.xlu0 %v2395
        %v2397 = vpop.xlane.xlu0 %2396
        %v2398 = vadd.f32 %v1737, %v1738
        %v2399 = vadd.f32 %v2398, %v1739
        %v2400 = vsel %vm1955, %v1740, 0.0
        %v2401 = vadd.f32 %v2399, %v2400
        %2402 = vadd.xlane.f32.xlu0 %v2401
        %v2403 = vpop.xlane.xlu0 %2402
        %v2404 = vadd.f32 %v1741, %v1742
        %v2405 = vadd.f32 %v2404, %v1743
        %v2406 = vsel %vm1955, %v1744, 0.0
        %v2407 = vadd.f32 %v2405, %v2406
        %2408 = vadd.xlane.f32.xlu0 %v2407
        %v2409 = vpop.xlane.xlu0 %2408
        %v2410 = vadd.f32 %v1745, %v1746
        %v2411 = vadd.f32 %v2410, %v1747
        %v2412 = vsel %vm1955, %v1748, 0.0
        %v2413 = vadd.f32 %v2411, %v2412
        %2414 = vadd.xlane.f32.xlu0 %v2413
        %v2415 = vpop.xlane.xlu0 %2414
        %v2416 = vadd.f32 %v1749, %v1750
        %v2417 = vadd.f32 %v2416, %v1751
        %v2418 = vsel %vm1955, %v1752, 0.0
        %v2419 = vadd.f32 %v2417, %v2418
        %2420 = vadd.xlane.f32.xlu0 %v2419
        %v2421 = vpop.xlane.xlu0 %2420
        %v2422 = vadd.f32 %v1753, %v1754
        %v2423 = vadd.f32 %v2422, %v1755
        %v2424 = vsel %vm1955, %v1756, 0.0
        %v2425 = vadd.f32 %v2423, %v2424
        %2426 = vadd.xlane.f32.xlu0 %v2425
        %v2427 = vpop.xlane.xlu0 %2426
        %v2428 = vadd.f32 %v1757, %v1758
        %v2429 = vadd.f32 %v2428, %v1759
        %v2430 = vsel %vm1955, %v1760, 0.0
        %v2431 = vadd.f32 %v2429, %v2430
        %2432 = vadd.xlane.f32.xlu0 %v2431
        %v2433 = vpop.xlane.xlu0 %2432
        %v2434 = vadd.f32 %v1761, %v1762
        %v2435 = vadd.f32 %v2434, %v1763
        %v2436 = vsel %vm1955, %v1764, 0.0
        %v2437 = vadd.f32 %v2435, %v2436
        %2438 = vadd.xlane.f32.xlu0 %v2437
        %v2439 = vpop.xlane.xlu0 %2438
        %v2440 = vadd.f32 %v1765, %v1766
        %v2441 = vadd.f32 %v2440, %v1767
        %v2442 = vsel %vm1955, %v1768, 0.0
        %v2443 = vadd.f32 %v2441, %v2442
        %2444 = vadd.xlane.f32.xlu0 %v2443
        %v2445 = vpop.xlane.xlu0 %2444
        %v2446 = vadd.f32 %v1769, %v1770
        %v2447 = vadd.f32 %v2446, %v1771
        %v2448 = vsel %vm1955, %v1772, 0.0
        %v2449 = vadd.f32 %v2447, %v2448
        %2450 = vadd.xlane.f32.xlu0 %v2449
        %v2451 = vpop.xlane.xlu0 %2450
        %v2452 = vadd.f32 %v1773, %v1774
        %v2453 = vadd.f32 %v2452, %v1775
        %v2454 = vsel %vm1955, %v1776, 0.0
        %v2455 = vadd.f32 %v2453, %v2454
        %2456 = vadd.xlane.f32.xlu0 %v2455
        %v2457 = vpop.xlane.xlu0 %2456
        %v2458 = vadd.f32 %v1777, %v1778
        %v2459 = vadd.f32 %v2458, %v1779
        %v2460 = vsel %vm1955, %v1780, 0.0
        %v2461 = vadd.f32 %v2459, %v2460
        %2462 = vadd.xlane.f32.xlu0 %v2461
        %v2463 = vpop.xlane.xlu0 %2462
        %v2464 = vadd.f32 %v1781, %v1782
        %v2465 = vadd.f32 %v2464, %v1783
        %v2466 = vsel %vm1955, %v1784, 0.0
        %v2467 = vadd.f32 %v2465, %v2466
        %2468 = vadd.xlane.f32.xlu0 %v2467
        %v2469 = vpop.xlane.xlu0 %2468
        %v2470 = vadd.f32 %v1785, %v1786
        %v2471 = vadd.f32 %v2470, %v1787
        %v2472 = vsel %vm1955, %v1788, 0.0
        %v2473 = vadd.f32 %v2471, %v2472
        %2474 = vadd.xlane.f32.xlu0 %v2473
        %v2475 = vpop.xlane.xlu0 %2474
        %v2476 = vadd.f32 %v1789, %v1790
        %v2477 = vadd.f32 %v2476, %v1791
        %v2478 = vsel %vm1955, %v1792, 0.0
        %v2479 = vadd.f32 %v2477, %v2478
        %2480 = vadd.xlane.f32.xlu0 %v2479
        %v2481 = vpop.xlane.xlu0 %2480
        %v2482 = vadd.f32 %v1793, %v1794
        %v2483 = vadd.f32 %v2482, %v1795
        %v2484 = vsel %vm1955, %v1796, 0.0
        %v2485 = vadd.f32 %v2483, %v2484
        %2486 = vadd.xlane.f32.xlu0 %v2485
        %v2487 = vpop.xlane.xlu0 %2486
        %v2488 = vadd.f32 %v1797, %v1798
        %v2489 = vadd.f32 %v2488, %v1799
        %v2490 = vsel %vm1955, %v1800, 0.0
        %v2491 = vadd.f32 %v2489, %v2490
        %2492 = vadd.xlane.f32.xlu0 %v2491
        %v2493 = vpop.xlane.xlu0 %2492
        %v2494 = vadd.f32 %v1801, %v1802
        %v2495 = vadd.f32 %v2494, %v1803
        %v2496 = vsel %vm1955, %v1804, 0.0
        %v2497 = vadd.f32 %v2495, %v2496
        %2498 = vadd.xlane.f32.xlu0 %v2497
        %v2499 = vpop.xlane.xlu0 %2498
        %v2500 = vadd.f32 %v1805, %v1806
        %v2501 = vadd.f32 %v2500, %v1807
        %v2502 = vsel %vm1955, %v1808, 0.0
        %v2503 = vadd.f32 %v2501, %v2502
        %2504 = vadd.xlane.f32.xlu0 %v2503
        %v2505 = vpop.xlane.xlu0 %2504
        %v2506 = vadd.f32 %v1809, %v1810
        %v2507 = vadd.f32 %v2506, %v1811
        %v2508 = vsel %vm1955, %v1812, 0.0
        %v2509 = vadd.f32 %v2507, %v2508
        %2510 = vadd.xlane.f32.xlu0 %v2509
        %v2511 = vpop.xlane.xlu0 %2510
        %v2512 = vadd.f32 %v1813, %v1814
        %v2513 = vadd.f32 %v2512, %v1815
        %v2514 = vsel %vm1955, %v1816, 0.0
        %v2515 = vadd.f32 %v2513, %v2514
        %2516 = vadd.xlane.f32.xlu0 %v2515
        %v2517 = vpop.xlane.xlu0 %2516
        %v2518 = vadd.f32 %v1817, %v1818
        %v2519 = vadd.f32 %v2518, %v1819
        %v2520 = vsel %vm1955, %v1820, 0.0
        %v2521 = vadd.f32 %v2519, %v2520
        %2522 = vadd.xlane.f32.xlu0 %v2521
        %v2523 = vpop.xlane.xlu0 %2522
        %v2524 = vadd.f32 %v1821, %v1822
        %v2525 = vadd.f32 %v2524, %v1823
        %v2526 = vsel %vm1955, %v1824, 0.0
        %v2527 = vadd.f32 %v2525, %v2526
        %2528 = vadd.xlane.f32.xlu0 %v2527
        %v2529 = vpop.xlane.xlu0 %2528
        %v2530 = vadd.f32 %v1825, %v1826
        %v2531 = vadd.f32 %v2530, %v1827
        %v2532 = vsel %vm1955, %v1828, 0.0
        %v2533 = vadd.f32 %v2531, %v2532
        %2534 = vadd.xlane.f32.xlu0 %v2533
        %v2535 = vpop.xlane.xlu0 %2534
        %v2536 = vadd.f32 %v1829, %v1830
        %v2537 = vadd.f32 %v2536, %v1831
        %v2538 = vsel %vm1955, %v1832, 0.0
        %v2539 = vadd.f32 %v2537, %v2538
        %2540 = vadd.xlane.f32.xlu0 %v2539
        %v2541 = vpop.xlane.xlu0 %2540
        %v2542 = vadd.f32 %v1833, %v1834
        %v2543 = vadd.f32 %v2542, %v1835
        %v2544 = vsel %vm1955, %v1836, 0.0
        %v2545 = vadd.f32 %v2543, %v2544
        %2546 = vadd.xlane.f32.xlu0 %v2545
        %v2547 = vpop.xlane.xlu0 %2546
        %v2548 = vadd.f32 %v1837, %v1838
        %v2549 = vadd.f32 %v2548, %v1839
        %v2550 = vsel %vm1955, %v1840, 0.0
        %v2551 = vadd.f32 %v2549, %v2550
        %2552 = vadd.xlane.f32.xlu0 %v2551
        %v2553 = vpop.xlane.xlu0 %2552
        %v2554 = vadd.f32 %v1841, %v1842
        %v2555 = vadd.f32 %v2554, %v1843
        %v2556 = vsel %vm1955, %v1844, 0.0
        %v2557 = vadd.f32 %v2555, %v2556
        %2558 = vadd.xlane.f32.xlu0 %v2557
        %v2559 = vpop.xlane.xlu0 %2558
        %v2560 = vadd.f32 %v1845, %v1846
        %v2561 = vadd.f32 %v2560, %v1847
        %v2562 = vsel %vm1955, %v1848, 0.0
        %v2563 = vadd.f32 %v2561, %v2562
        %2564 = vadd.xlane.f32.xlu0 %v2563
        %v2565 = vpop.xlane.xlu0 %2564
        %v2566 = vadd.f32 %v1849, %v1850
        %v2567 = vadd.f32 %v2566, %v1851
        %v2568 = vsel %vm1955, %v1852, 0.0
        %v2569 = vadd.f32 %v2567, %v2568
        %2570 = vadd.xlane.f32.xlu0 %v2569
        %v2571 = vpop.xlane.xlu0 %2570
        %v2572 = vadd.f32 %v1853, %v1854
        %v2573 = vadd.f32 %v2572, %v1855
        %v2574 = vsel %vm1955, %v1856, 0.0
        %v2575 = vadd.f32 %v2573, %v2574
        %2576 = vadd.xlane.f32.xlu0 %v2575
        %v2577 = vpop.xlane.xlu0 %2576
        %v2578 = vadd.f32 %v1857, %v1858
        %v2579 = vadd.f32 %v2578, %v1859
        %v2580 = vsel %vm1955, %v1860, 0.0
        %v2581 = vadd.f32 %v2579, %v2580
        %2582 = vadd.xlane.f32.xlu0 %v2581
        %v2583 = vpop.xlane.xlu0 %2582
        %v2584 = vadd.f32 %v1861, %v1862
        %v2585 = vadd.f32 %v2584, %v1863
        %v2586 = vsel %vm1955, %v1864, 0.0
        %v2587 = vadd.f32 %v2585, %v2586
        %2588 = vadd.xlane.f32.xlu0 %v2587
        %v2589 = vpop.xlane.xlu0 %2588
        %v2590 = vadd.f32 %v1865, %v1866
        %v2591 = vadd.f32 %v2590, %v1867
        %v2592 = vsel %vm1955, %v1868, 0.0
        %v2593 = vadd.f32 %v2591, %v2592
        %2594 = vadd.xlane.f32.xlu0 %v2593
        %v2595 = vpop.xlane.xlu0 %2594
        %v2596 = vadd.f32 %v1869, %v1870
        %v2597 = vadd.f32 %v2596, %v1871
        %v2598 = vsel %vm1955, %v1872, 0.0
        %v2599 = vadd.f32 %v2597, %v2598
        %2600 = vadd.xlane.f32.xlu0 %v2599
        %v2601 = vpop.xlane.xlu0 %2600
        %v2602 = vadd.f32 %v1873, %v1874
        %v2603 = vadd.f32 %v2602, %v1875
        %v2604 = vsel %vm1955, %v1876, 0.0
        %v2605 = vadd.f32 %v2603, %v2604
        %2606 = vadd.xlane.f32.xlu0 %v2605
        %v2607 = vpop.xlane.xlu0 %2606
        %v2608 = vadd.f32 %v1877, %v1878
        %v2609 = vadd.f32 %v2608, %v1879
        %v2610 = vsel %vm1955, %v1880, 0.0
        %v2611 = vadd.f32 %v2609, %v2610
        %2612 = vadd.xlane.f32.xlu0 %v2611
        %v2613 = vpop.xlane.xlu0 %2612
        %v2614 = vadd.f32 %v1881, %v1882
        %v2615 = vadd.f32 %v2614, %v1883
        %v2616 = vsel %vm1955, %v1884, 0.0
        %v2617 = vadd.f32 %v2615, %v2616
        %2618 = vadd.xlane.f32.xlu0 %v2617
        %v2619 = vpop.xlane.xlu0 %2618
        %v2620 = vadd.f32 %v1885, %v1886
        %v2621 = vadd.f32 %v2620, %v1887
        %v2622 = vsel %vm1955, %v1888, 0.0
        %v2623 = vadd.f32 %v2621, %v2622
        %2624 = vadd.xlane.f32.xlu0 %v2623
        %v2625 = vpop.xlane.xlu0 %2624
        %v2626 = vadd.f32 %v1889, %v1890
        %v2627 = vadd.f32 %v2626, %v1891
        %v2628 = vsel %vm1955, %v1892, 0.0
        %v2629 = vadd.f32 %v2627, %v2628
        %2630 = vadd.xlane.f32.xlu0 %v2629
        %v2631 = vpop.xlane.xlu0 %2630
        %v2632 = vadd.f32 %v1893, %v1894
        %v2633 = vadd.f32 %v2632, %v1895
        %v2634 = vsel %vm1955, %v1896, 0.0
        %v2635 = vadd.f32 %v2633, %v2634
        %2636 = vadd.xlane.f32.xlu0 %v2635
        %v2637 = vpop.xlane.xlu0 %2636
        %v2638 = vadd.f32 %v1897, %v1898
        %v2639 = vadd.f32 %v2638, %v1899
        %v2640 = vsel %vm1955, %v1900, 0.0
        %v2641 = vadd.f32 %v2639, %v2640
        %2642 = vadd.xlane.f32.xlu0 %v2641
        %v2643 = vpop.xlane.xlu0 %2642
        %v2644 = vadd.f32 %v1901, %v1902
        %v2645 = vadd.f32 %v2644, %v1903
        %v2646 = vsel %vm1955, %v1904, 0.0
        %v2647 = vadd.f32 %v2645, %v2646
        %2648 = vadd.xlane.f32.xlu0 %v2647
        %v2649 = vpop.xlane.xlu0 %2648
        %v2650 = vadd.f32 %v1905, %v1906
        %v2651 = vadd.f32 %v2650, %v1907
        %v2652 = vsel %vm1955, %v1908, 0.0
        %v2653 = vadd.f32 %v2651, %v2652
        %2654 = vadd.xlane.f32.xlu0 %v2653
        %v2655 = vpop.xlane.xlu0 %2654
        %v2656 = vadd.f32 %v1909, %v1910
        %v2657 = vadd.f32 %v2656, %v1911
        %v2658 = vsel %vm1955, %v1912, 0.0
        %v2659 = vadd.f32 %v2657, %v2658
        %2660 = vadd.xlane.f32.xlu0 %v2659
        %v2661 = vpop.xlane.xlu0 %2660
        %v2662 = vadd.f32 %v1913, %v1914
        %v2663 = vadd.f32 %v2662, %v1915
        %v2664 = vsel %vm1955, %v1916, 0.0
        %v2665 = vadd.f32 %v2663, %v2664
        %2666 = vadd.xlane.f32.xlu0 %v2665
        %v2667 = vpop.xlane.xlu0 %2666
        %v2668 = vadd.f32 %v1917, %v1918
        %v2669 = vadd.f32 %v2668, %v1919
        %v2670 = vsel %vm1955, %v1920, 0.0
        %v2671 = vadd.f32 %v2669, %v2670
        %2672 = vadd.xlane.f32.xlu0 %v2671
        %v2673 = vpop.xlane.xlu0 %2672
        %v2674 = vadd.f32 %v1921, %v1922
        %v2675 = vadd.f32 %v2674, %v1923
        %v2676 = vsel %vm1955, %v1924, 0.0
        %v2677 = vadd.f32 %v2675, %v2676
        %2678 = vadd.xlane.f32.xlu0 %v2677
        %v2679 = vpop.xlane.xlu0 %2678
        %v2680 = vadd.f32 %v1925, %v1926
        %v2681 = vadd.f32 %v2680, %v1927
        %v2682 = vsel %vm1955, %v1928, 0.0
        %v2683 = vadd.f32 %v2681, %v2682
        %2684 = vadd.xlane.f32.xlu0 %v2683
        %v2685 = vpop.xlane.xlu0 %2684
        %v2686 = vadd.f32 %v1929, %v1930
        %v2687 = vadd.f32 %v2686, %v1931
        %v2688 = vsel %vm1955, %v1932, 0.0
        %v2689 = vadd.f32 %v2687, %v2688
        %2690 = vadd.xlane.f32.xlu0 %v2689
        %v2691 = vpop.xlane.xlu0 %2690
        %v2692 = vadd.f32 %v1933, %v1934
        %v2693 = vadd.f32 %v2692, %v1935
        %v2694 = vsel %vm1955, %v1936, 0.0
        %v2695 = vadd.f32 %v2693, %v2694
        %2696 = vadd.xlane.f32.xlu0 %v2695
        %v2697 = vpop.xlane.xlu0 %2696
        %v2698 = vadd.f32 %v1937, %v1938
        %v2699 = vadd.f32 %v2698, %v1939
        %v2700 = vsel %vm1955, %v1940, 0.0
        %v2701 = vadd.f32 %v2699, %v2700
        %2702 = vadd.xlane.f32.xlu0 %v2701
        %v2703 = vpop.xlane.xlu0 %2702
        %v2704 = vadd.f32 %v1941, %v1942
        %v2705 = vadd.f32 %v2704, %v1943
        %v2706 = vsel %vm1955, %v1944, 0.0
        %v2707 = vadd.f32 %v2705, %v2706
        %2708 = vadd.xlane.f32.xlu0 %v2707
        %v2709 = vpop.xlane.xlu0 %2708
        %v2710 = vadd.f32 %v1945, %v1946
        %v2711 = vadd.f32 %v2710, %v1947
        %v2712 = vsel %vm1955, %v1948, 0.0
        %v2713 = vadd.f32 %v2711, %v2712
        %2714 = vadd.xlane.f32.xlu0 %v2713
        %v2715 = vpop.xlane.xlu0 %2714
        %v2716 = vadd.f32 %v1949, %v1950
        %v2717 = vadd.f32 %v2716, %v1951
        %v2718 = vsel %vm1955, %v1952, 0.0
        %v2719 = vadd.f32 %v2717, %v2718
        %2720 = vadd.xlane.f32.xlu0 %v2719
        %v2721 = vpop.xlane.xlu0 %2720
        %v2722 = vmul.f32 %v1959, 0.0025510204
        %v2723 = vmul.f32 %v1965, 0.0025510204
        %v2724 = vmul.f32 %v1971, 0.0025510204
        %v2725 = vmul.f32 %v1977, 0.0025510204
        %v2726 = vmul.f32 %v1983, 0.0025510204
        %v2727 = vmul.f32 %v1989, 0.0025510204
        %v2728 = vmul.f32 %v1995, 0.0025510204
        %v2729 = vmul.f32 %v2001, 0.0025510204
        %v2730 = vmul.f32 %v2007, 0.0025510204
        %v2731 = vmul.f32 %v2013, 0.0025510204
        %v2732 = vmul.f32 %v2019, 0.0025510204
        %v2733 = vmul.f32 %v2025, 0.0025510204
        %v2734 = vmul.f32 %v2031, 0.0025510204
        %v2735 = vmul.f32 %v2037, 0.0025510204
        %v2736 = vmul.f32 %v2043, 0.0025510204
        %v2737 = vmul.f32 %v2049, 0.0025510204
        %v2738 = vmul.f32 %v2055, 0.0025510204
        %v2739 = vmul.f32 %v2061, 0.0025510204
        %v2740 = vmul.f32 %v2067, 0.0025510204
        %v2741 = vmul.f32 %v2073, 0.0025510204
        %v2742 = vmul.f32 %v2079, 0.0025510204
        %v2743 = vmul.f32 %v2085, 0.0025510204
        %v2744 = vmul.f32 %v2091, 0.0025510204
        %v2745 = vmul.f32 %v2097, 0.0025510204
        %v2746 = vmul.f32 %v2103, 0.0025510204
        %v2747 = vmul.f32 %v2109, 0.0025510204
        %v2748 = vmul.f32 %v2115, 0.0025510204
        %v2749 = vmul.f32 %v2121, 0.0025510204
        %v2750 = vmul.f32 %v2127, 0.0025510204
        %v2751 = vmul.f32 %v2133, 0.0025510204
        %v2752 = vmul.f32 %v2139, 0.0025510204
        %v2753 = vmul.f32 %v2145, 0.0025510204
        %v2754 = vmul.f32 %v2151, 0.0025510204
        %v2755 = vmul.f32 %v2157, 0.0025510204
        %v2756 = vmul.f32 %v2163, 0.0025510204
        %v2757 = vmul.f32 %v2169, 0.0025510204
        %v2758 = vmul.f32 %v2175, 0.0025510204
        %v2759 = vmul.f32 %v2181, 0.0025510204
        %v2760 = vmul.f32 %v2187, 0.0025510204
        %v2761 = vmul.f32 %v2193, 0.0025510204
        %v2762 = vmul.f32 %v2199, 0.0025510204
        %v2763 = vmul.f32 %v2205, 0.0025510204
        %v2764 = vmul.f32 %v2211, 0.0025510204
        %v2765 = vmul.f32 %v2217, 0.0025510204
        %v2766 = vmul.f32 %v2223, 0.0025510204
        %v2767 = vmul.f32 %v2229, 0.0025510204
        %v2768 = vmul.f32 %v2235, 0.0025510204
        %v2769 = vmul.f32 %v2241, 0.0025510204
        %v2770 = vmul.f32 %v2247, 0.0025510204
        %v2771 = vmul.f32 %v2253, 0.0025510204
        %v2772 = vmul.f32 %v2259, 0.0025510204
        %v2773 = vmul.f32 %v2265, 0.0025510204
        %v2774 = vmul.f32 %v2271, 0.0025510204
        %v2775 = vmul.f32 %v2277, 0.0025510204
        %v2776 = vmul.f32 %v2283, 0.0025510204
        %v2777 = vmul.f32 %v2289, 0.0025510204
        %v2778 = vmul.f32 %v2295, 0.0025510204
        %v2779 = vmul.f32 %v2301, 0.0025510204
        %v2780 = vmul.f32 %v2307, 0.0025510204
        %v2781 = vmul.f32 %v2313, 0.0025510204
        %v2782 = vmul.f32 %v2319, 0.0025510204
        %v2783 = vmul.f32 %v2325, 0.0025510204
        %v2784 = vmul.f32 %v2331, 0.0025510204
        %v2785 = vmul.f32 %v2337, 0.0025510204
        %v2786 = vmul.f32 %v2343, 0.0025510204
        %v2787 = vmul.f32 %v2349, 0.0025510204
        %v2788 = vmul.f32 %v2355, 0.0025510204
        %v2789 = vmul.f32 %v2361, 0.0025510204
        %v2790 = vmul.f32 %v2367, 0.0025510204
        %v2791 = vmul.f32 %v2373, 0.0025510204
        %v2792 = vmul.f32 %v2379, 0.0025510204
        %v2793 = vmul.f32 %v2385, 0.0025510204
        %v2794 = vmul.f32 %v2391, 0.0025510204
        %v2795 = vmul.f32 %v2397, 0.0025510204
        %v2796 = vmul.f32 %v2403, 0.0025510204
        %v2797 = vmul.f32 %v2409, 0.0025510204
        %v2798 = vmul.f32 %v2415, 0.0025510204
        %v2799 = vmul.f32 %v2421, 0.0025510204
        %v2800 = vmul.f32 %v2427, 0.0025510204
        %v2801 = vmul.f32 %v2433, 0.0025510204
        %v2802 = vmul.f32 %v2439, 0.0025510204
        %v2803 = vmul.f32 %v2445, 0.0025510204
        %v2804 = vmul.f32 %v2451, 0.0025510204
        %v2805 = vmul.f32 %v2457, 0.0025510204
        %v2806 = vmul.f32 %v2463, 0.0025510204
        %v2807 = vmul.f32 %v2469, 0.0025510204
        %v2808 = vmul.f32 %v2475, 0.0025510204
        %v2809 = vmul.f32 %v2481, 0.0025510204
        %v2810 = vmul.f32 %v2487, 0.0025510204
        %v2811 = vmul.f32 %v2493, 0.0025510204
        %v2812 = vmul.f32 %v2499, 0.0025510204
        %v2813 = vmul.f32 %v2505, 0.0025510204
        %v2814 = vmul.f32 %v2511, 0.0025510204
        %v2815 = vmul.f32 %v2517, 0.0025510204
        %v2816 = vmul.f32 %v2523, 0.0025510204
        %v2817 = vmul.f32 %v2529, 0.0025510204
        %v2818 = vmul.f32 %v2535, 0.0025510204
        %v2819 = vmul.f32 %v2541, 0.0025510204
        %v2820 = vmul.f32 %v2547, 0.0025510204
        %v2821 = vmul.f32 %v2553, 0.0025510204
        %v2822 = vmul.f32 %v2559, 0.0025510204
        %v2823 = vmul.f32 %v2565, 0.0025510204
        %v2824 = vmul.f32 %v2571, 0.0025510204
        %v2825 = vmul.f32 %v2577, 0.0025510204
        %v2826 = vmul.f32 %v2583, 0.0025510204
        %v2827 = vmul.f32 %v2589, 0.0025510204
        %v2828 = vmul.f32 %v2595, 0.0025510204
        %v2829 = vmul.f32 %v2601, 0.0025510204
        %v2830 = vmul.f32 %v2607, 0.0025510204
        %v2831 = vmul.f32 %v2613, 0.0025510204
        %v2832 = vmul.f32 %v2619, 0.0025510204
        %v2833 = vmul.f32 %v2625, 0.0025510204
        %v2834 = vmul.f32 %v2631, 0.0025510204
        %v2835 = vmul.f32 %v2637, 0.0025510204
        %v2836 = vmul.f32 %v2643, 0.0025510204
        %v2837 = vmul.f32 %v2649, 0.0025510204
        %v2838 = vmul.f32 %v2655, 0.0025510204
        %v2839 = vmul.f32 %v2661, 0.0025510204
        %v2840 = vmul.f32 %v2667, 0.0025510204
        %v2841 = vmul.f32 %v2673, 0.0025510204
        %v2842 = vmul.f32 %v2679, 0.0025510204
        %v2843 = vmul.f32 %v2685, 0.0025510204
        %v2844 = vmul.f32 %v2691, 0.0025510204
        %v2845 = vmul.f32 %v2697, 0.0025510204
        %v2846 = vmul.f32 %v2703, 0.0025510204
        %v2847 = vmul.f32 %v2709, 0.0025510204
        %v2848 = vmul.f32 %v2715, 0.0025510204
        %v2849 = vmul.f32 %v2721, 0.0025510204
        %v2850 = vld [vmem:[#allocation2] sm:$0xf]
        %v2851 = vld [vmem:[%s1431] sm:$0xff]
        %v2852 = vld [vmem:[%s1431 + $0x8] sm:$0xff]
        %v2853 = vld [vmem:[%s1431 + $0x10] sm:$0xff]
        %v2854 = vld [vmem:[%s1431 + $0x18] sm:$0xff]
        %v2855 = vld [vmem:[%s1431 + $0x20] sm:$0xff]
        %v2856 = vld [vmem:[%s1431 + $0x28] sm:$0xff]
        %v2857 = vld [vmem:[%s1431 + $0x30] sm:$0xff]
        %v2858 = vld [vmem:[%s1431 + $0x38] sm:$0xff]
        %v2859 = vld [vmem:[%s1431 + $0x40] sm:$0xff]
        %v2860 = vld [vmem:[%s1431 + $0x48] sm:$0xff]
        %v2861 = vld [vmem:[%s1431 + $0x50] sm:$0xff]
        %v2862 = vld [vmem:[%s1431 + $0x58] sm:$0xff]
        %v2863 = vld [vmem:[%s1431 + $0x60] sm:$0xff]
        %v2864 = vld [vmem:[%s1431 + $0x68] sm:$0xff]
        %v2865 = vld [vmem:[%s1431 + $0x70] sm:$0xff]
        %v2866 = vld [vmem:[%s1431 + $0x78] sm:$0xff]
        %v2867 = vld [vmem:[%s1431 + $0x80] sm:$0xff]
        %v2868 = vld [vmem:[%s1431 + $0x88] sm:$0xff]
        %v2869 = vld [vmem:[%s1431 + $0x90] sm:$0xff]
        %v2870 = vld [vmem:[%s1431 + $0x98] sm:$0xff]
        %v2871 = vld [vmem:[%s1431 + $0xa0] sm:$0xff]
        %v2872 = vld [vmem:[%s1431 + $0xa8] sm:$0xff]
        %v2873 = vld [vmem:[%s1431 + $0xb0] sm:$0xff]
        %v2874 = vld [vmem:[%s1431 + $0xb8] sm:$0xff]
        %v2875 = vld [vmem:[%s1431 + $0xc0] sm:$0xff]
        %v2876 = vld [vmem:[%s1431 + $0xc8] sm:$0xff]
        %v2877 = vld [vmem:[%s1431 + $0xd0] sm:$0xff]
        %v2878 = vld [vmem:[%s1431 + $0xd8] sm:$0xff]
        %v2879 = vld [vmem:[%s1431 + $0xe0] sm:$0xff]
        %v2880 = vld [vmem:[%s1431 + $0xe8] sm:$0xff]
        %v2881 = vld [vmem:[%s1431 + $0xf0] sm:$0xff]
        %v2882 = vld [vmem:[%s1431 + $0xf8] sm:$0xff]
        %v2883 = vld [vmem:[%s1431 + $0x100] sm:$0xff]
        %v2884 = vld [vmem:[%s1431 + $0x108] sm:$0xff]
        %v2885 = vld [vmem:[%s1431 + $0x110] sm:$0xff]
        %v2886 = vld [vmem:[%s1431 + $0x118] sm:$0xff]
        %v2887 = vld [vmem:[%s1431 + $0x120] sm:$0xff]
        %v2888 = vld [vmem:[%s1431 + $0x128] sm:$0xff]
        %v2889 = vld [vmem:[%s1431 + $0x130] sm:$0xff]
        %v2890 = vld [vmem:[%s1431 + $0x138] sm:$0xff]
        %v2891 = vld [vmem:[%s1431 + $0x140] sm:$0xff]
        %v2892 = vld [vmem:[%s1431 + $0x148] sm:$0xff]
        %v2893 = vld [vmem:[%s1431 + $0x150] sm:$0xff]
        %v2894 = vld [vmem:[%s1431 + $0x158] sm:$0xff]
        %v2895 = vld [vmem:[%s1431 + $0x160] sm:$0xff]
        %v2896 = vld [vmem:[%s1431 + $0x168] sm:$0xff]
        %v2897 = vld [vmem:[%s1431 + $0x170] sm:$0xff]
        %v2898 = vld [vmem:[%s1431 + $0x178] sm:$0xff]
        %v2899 = vld [vmem:[%s1431 + $0x180] sm:$0xff]
        %v2900 = vld [vmem:[%s1431 + $0x188] sm:$0xff]
        %v2901 = vld [vmem:[%s1431 + $0x190] sm:$0xff]
        %v2902 = vld [vmem:[%s1431 + $0x198] sm:$0xff]
        %v2903 = vld [vmem:[%s1431 + $0x1a0] sm:$0xff]
        %v2904 = vld [vmem:[%s1431 + $0x1a8] sm:$0xff]
        %v2905 = vld [vmem:[%s1431 + $0x1b0] sm:$0xff]
        %v2906 = vld [vmem:[%s1431 + $0x1b8] sm:$0xff]
        %v2907 = vld [vmem:[%s1431 + $0x1c0] sm:$0xff]
        %v2908 = vld [vmem:[%s1431 + $0x1c8] sm:$0xff]
        %v2909 = vld [vmem:[%s1431 + $0x1d0] sm:$0xff]
        %v2910 = vld [vmem:[%s1431 + $0x1d8] sm:$0xff]
        %v2911 = vld [vmem:[%s1431 + $0x1e0] sm:$0xff]
        %v2912 = vld [vmem:[%s1431 + $0x1e8] sm:$0xff]
        %v2913 = vld [vmem:[%s1431 + $0x1f0] sm:$0xff]
        %v2914 = vld [vmem:[%s1431 + $0x1f8] sm:$0xff]
        %v2915 = vld [vmem:[%s1431 + $0x200] sm:$0xff]
        %v2916 = vld [vmem:[%s1431 + $0x208] sm:$0xff]
        %v2917 = vld [vmem:[%s1431 + $0x210] sm:$0xff]
        %v2918 = vld [vmem:[%s1431 + $0x218] sm:$0xff]
        %v2919 = vld [vmem:[%s1431 + $0x220] sm:$0xff]
        %v2920 = vld [vmem:[%s1431 + $0x228] sm:$0xff]
        %v2921 = vld [vmem:[%s1431 + $0x230] sm:$0xff]
        %v2922 = vld [vmem:[%s1431 + $0x238] sm:$0xff]
        %v2923 = vld [vmem:[%s1431 + $0x240] sm:$0xff]
        %v2924 = vld [vmem:[%s1431 + $0x248] sm:$0xff]
        %v2925 = vld [vmem:[%s1431 + $0x250] sm:$0xff]
        %v2926 = vld [vmem:[%s1431 + $0x258] sm:$0xff]
        %v2927 = vld [vmem:[%s1431 + $0x260] sm:$0xff]
        %v2928 = vld [vmem:[%s1431 + $0x268] sm:$0xff]
        %v2929 = vld [vmem:[%s1431 + $0x270] sm:$0xff]
        %v2930 = vld [vmem:[%s1431 + $0x278] sm:$0xff]
        %v2931 = vld [vmem:[%s1431 + $0x280] sm:$0xff]
        %v2932 = vld [vmem:[%s1431 + $0x288] sm:$0xff]
        %v2933 = vld [vmem:[%s1431 + $0x290] sm:$0xff]
        %v2934 = vld [vmem:[%s1431 + $0x298] sm:$0xff]
        %v2935 = vld [vmem:[%s1431 + $0x2a0] sm:$0xff]
        %v2936 = vld [vmem:[%s1431 + $0x2a8] sm:$0xff]
        %v2937 = vld [vmem:[%s1431 + $0x2b0] sm:$0xff]
        %v2938 = vld [vmem:[%s1431 + $0x2b8] sm:$0xff]
        %v2939 = vld [vmem:[%s1431 + $0x2c0] sm:$0xff]
        %v2940 = vld [vmem:[%s1431 + $0x2c8] sm:$0xff]
        %v2941 = vld [vmem:[%s1431 + $0x2d0] sm:$0xff]
        %v2942 = vld [vmem:[%s1431 + $0x2d8] sm:$0xff]
        %v2943 = vld [vmem:[%s1431 + $0x2e0] sm:$0xff]
        %v2944 = vld [vmem:[%s1431 + $0x2e8] sm:$0xff]
        %v2945 = vld [vmem:[%s1431 + $0x2f0] sm:$0xff]
        %v2946 = vld [vmem:[%s1431 + $0x2f8] sm:$0xff]
        %v2947 = vld [vmem:[%s1431 + $0x300] sm:$0xff]
        %v2948 = vld [vmem:[%s1431 + $0x308] sm:$0xff]
        %v2949 = vld [vmem:[%s1431 + $0x310] sm:$0xff]
        %v2950 = vld [vmem:[%s1431 + $0x318] sm:$0xff]
        %v2951 = vld [vmem:[%s1431 + $0x320] sm:$0xff]
        %v2952 = vld [vmem:[%s1431 + $0x328] sm:$0xff]
        %v2953 = vld [vmem:[%s1431 + $0x330] sm:$0xff]
        %v2954 = vld [vmem:[%s1431 + $0x338] sm:$0xff]
        %v2955 = vld [vmem:[%s1431 + $0x340] sm:$0xff]
        %v2956 = vld [vmem:[%s1431 + $0x348] sm:$0xff]
        %v2957 = vld [vmem:[%s1431 + $0x350] sm:$0xff]
        %v2958 = vld [vmem:[%s1431 + $0x358] sm:$0xff]
        %v2959 = vld [vmem:[%s1431 + $0x360] sm:$0xff]
        %v2960 = vld [vmem:[%s1431 + $0x368] sm:$0xff]
        %v2961 = vld [vmem:[%s1431 + $0x370] sm:$0xff]
        %v2962 = vld [vmem:[%s1431 + $0x378] sm:$0xff]
        %v2963 = vld [vmem:[%s1431 + $0x380] sm:$0xff]
        %v2964 = vld [vmem:[%s1431 + $0x388] sm:$0xff]
        %v2965 = vld [vmem:[%s1431 + $0x390] sm:$0xff]
        %v2966 = vld [vmem:[%s1431 + $0x398] sm:$0xff]
        %v2967 = vld [vmem:[%s1431 + $0x3a0] sm:$0xff]
        %v2968 = vld [vmem:[%s1431 + $0x3a8] sm:$0xff]
        %v2969 = vld [vmem:[%s1431 + $0x3b0] sm:$0xff]
        %v2970 = vld [vmem:[%s1431 + $0x3b8] sm:$0xff]
        %v2971 = vld [vmem:[%s1431 + $0x3c0] sm:$0xff]
        %v2972 = vld [vmem:[%s1431 + $0x3c8] sm:$0xff]
        %v2973 = vld [vmem:[%s1431 + $0x3d0] sm:$0xff]
        %v2974 = vld [vmem:[%s1431 + $0x3d8] sm:$0xff]
        %v2975 = vld [vmem:[%s1431 + $0x3e0] sm:$0xff]
        %v2976 = vld [vmem:[%s1431 + $0x3e8] sm:$0xff]
        %v2977 = vld [vmem:[%s1431 + $0x3f0] sm:$0xff]
        %v2978 = vld [vmem:[%s1431 + $0x3f8] sm:$0xff]
        %v3107 = vlaneseq
        %v3108 = vand.u32 %v3107, 127
        %v3109 = vlaneseq
        %v3110 = vshrl.u32 %v3109, 7
        %v3111 = vsub.s32 %v3108, %v3110
        %v3112 = vrot.slane %v2722, %v3111
        %v3113 = vadd.s32 %v3108, 4294967288
        %v3114 = vlaneseq
        %v3115 = vshrl.u32 %v3114, 7
        %v3116 = vsub.s32 %v3113, %v3115
        %v3117 = vrot.slane %v2723, %v3116
        %vm3118 = vcmask 130112
        %v3119 = vsel %vm3118, %v3117, %v3112
        %v3120 = vadd.s32 %v3108, 4294967280
        %v3121 = vlaneseq
        %v3122 = vshrl.u32 %v3121, 7
        %v3123 = vsub.s32 %v3120, %v3122
        %v3124 = vrot.slane %v2724, %v3123
        %vm3125 = vcmask 195712
        %v3126 = vsel %vm3125, %v3124, %v3119
        %v3127 = vadd.s32 %v3108, 4294967272
        %v3128 = vlaneseq
        %v3129 = vshrl.u32 %v3128, 7
        %v3130 = vsub.s32 %v3127, %v3129
        %v3131 = vrot.slane %v2725, %v3130
        %vm3132 = vcmask 261312
        %v3133 = vsel %vm3132, %v3131, %v3126
        %v3134 = vadd.s32 %v3108, 4294967264
        %v3135 = vlaneseq
        %v3136 = vshrl.u32 %v3135, 7
        %v3137 = vsub.s32 %v3134, %v3136
        %v3138 = vrot.slane %v2726, %v3137
        %vm3139 = vcmask 326912
        %v3140 = vsel %vm3139, %v3138, %v3133
        %v3141 = vadd.s32 %v3108, 4294967256
        %v3142 = vlaneseq
        %v3143 = vshrl.u32 %v3142, 7
        %v3144 = vsub.s32 %v3141, %v3143
        %v3145 = vrot.slane %v2727, %v3144
        %vm3146 = vcmask 392512
        %v3147 = vsel %vm3146, %v3145, %v3140
        %v3148 = vadd.s32 %v3108, 4294967248
        %v3149 = vlaneseq
        %v3150 = vshrl.u32 %v3149, 7
        %v3151 = vsub.s32 %v3148, %v3150
        %v3152 = vrot.slane %v2728, %v3151
        %vm3153 = vcmask 458112
        %v3154 = vsel %vm3153, %v3152, %v3147
        %v3155 = vadd.s32 %v3108, 4294967240
        %v3156 = vlaneseq
        %v3157 = vshrl.u32 %v3156, 7
        %v3158 = vsub.s32 %v3155, %v3157
        %v3159 = vrot.slane %v2729, %v3158
        %vm3160 = vcmask 523712
        %v3161 = vsel %vm3160, %v3159, %v3154
        %v3162 = vadd.s32 %v3108, 4294967232
        %v3163 = vlaneseq
        %v3164 = vshrl.u32 %v3163, 7
        %v3165 = vsub.s32 %v3162, %v3164
        %v3166 = vrot.slane %v2730, %v3165
        %vm3167 = vcmask 589312
        %v3168 = vsel %vm3167, %v3166, %v3161
        %v3169 = vadd.s32 %v3108, 4294967224
        %v3170 = vlaneseq
        %v3171 = vshrl.u32 %v3170, 7
        %v3172 = vsub.s32 %v3169, %v3171
        %v3173 = vrot.slane %v2731, %v3172
        %vm3174 = vcmask 654912
        %v3175 = vsel %vm3174, %v3173, %v3168
        %v3176 = vadd.s32 %v3108, 4294967216
        %v3177 = vlaneseq
        %v3178 = vshrl.u32 %v3177, 7
        %v3179 = vsub.s32 %v3176, %v3178
        %v3180 = vrot.slane %v2732, %v3179
        %vm3181 = vcmask 720512
        %v3182 = vsel %vm3181, %v3180, %v3175
        %v3183 = vadd.s32 %v3108, 4294967208
        %v3184 = vlaneseq
        %v3185 = vshrl.u32 %v3184, 7
        %v3186 = vsub.s32 %v3183, %v3185
        %v3187 = vrot.slane %v2733, %v3186
        %vm3188 = vcmask 786112
        %v3189 = vsel %vm3188, %v3187, %v3182
        %v3190 = vadd.s32 %v3108, 4294967200
        %v3191 = vlaneseq
        %v3192 = vshrl.u32 %v3191, 7
        %v3193 = vsub.s32 %v3190, %v3192
        %v3194 = vrot.slane %v2734, %v3193
        %vm3195 = vcmask 851712
        %v3196 = vsel %vm3195, %v3194, %v3189
        %v3197 = vadd.s32 %v3108, 4294967192
        %v3198 = vlaneseq
        %v3199 = vshrl.u32 %v3198, 7
        %v3200 = vsub.s32 %v3197, %v3199
        %v3201 = vrot.slane %v2735, %v3200
        %vm3202 = vcmask 917312
        %v3203 = vsel %vm3202, %v3201, %v3196
        %v3204 = vadd.s32 %v3108, 4294967184
        %v3205 = vlaneseq
        %v3206 = vshrl.u32 %v3205, 7
        %v3207 = vsub.s32 %v3204, %v3206
        %v3208 = vrot.slane %v2736, %v3207
        %vm3209 = vcmask 982912
        %v3210 = vsel %vm3209, %v3208, %v3203
        %v3211 = vadd.s32 %v3108, 4294967176
        %v3212 = vlaneseq
        %v3213 = vshrl.u32 %v3212, 7
        %v3214 = vsub.s32 %v3211, %v3213
        %v3215 = vrot.slane %v2737, %v3214
        %vm3216 = vcmask 1048512
        %v3217 = vsel %vm3216, %v3215, %v3210
        %v3218 = vlaneseq
        %v3219 = vshrl.u32 %v3218, 7
        %v3220 = vsub.s32 %v3108, %v3219
        %v3221 = vrot.slane %v2738, %v3220
        %v3222 = vlaneseq
        %v3223 = vshrl.u32 %v3222, 7
        %v3224 = vsub.s32 %v3113, %v3223
        %v3225 = vrot.slane %v2739, %v3224
        %v3226 = vsel %vm3118, %v3225, %v3221
        %v3227 = vlaneseq
        %v3228 = vshrl.u32 %v3227, 7
        %v3229 = vsub.s32 %v3120, %v3228
        %v3230 = vrot.slane %v2740, %v3229
        %v3231 = vsel %vm3125, %v3230, %v3226
        %v3232 = vlaneseq
        %v3233 = vshrl.u32 %v3232, 7
        %v3234 = vsub.s32 %v3127, %v3233
        %v3235 = vrot.slane %v2741, %v3234
        %v3236 = vsel %vm3132, %v3235, %v3231
        %v3237 = vlaneseq
        %v3238 = vshrl.u32 %v3237, 7
        %v3239 = vsub.s32 %v3134, %v3238
        %v3240 = vrot.slane %v2742, %v3239
        %v3241 = vsel %vm3139, %v3240, %v3236
        %v3242 = vlaneseq
        %v3243 = vshrl.u32 %v3242, 7
        %v3244 = vsub.s32 %v3141, %v3243
        %v3245 = vrot.slane %v2743, %v3244
        %v3246 = vsel %vm3146, %v3245, %v3241
        %v3247 = vlaneseq
        %v3248 = vshrl.u32 %v3247, 7
        %v3249 = vsub.s32 %v3148, %v3248
        %v3250 = vrot.slane %v2744, %v3249
        %v3251 = vsel %vm3153, %v3250, %v3246
        %v3252 = vlaneseq
        %v3253 = vshrl.u32 %v3252, 7
        %v3254 = vsub.s32 %v3155, %v3253
        %v3255 = vrot.slane %v2745, %v3254
        %v3256 = vsel %vm3160, %v3255, %v3251
        %v3257 = vlaneseq
        %v3258 = vshrl.u32 %v3257, 7
        %v3259 = vsub.s32 %v3162, %v3258
        %v3260 = vrot.slane %v2746, %v3259
        %v3261 = vsel %vm3167, %v3260, %v3256
        %v3262 = vlaneseq
        %v3263 = vshrl.u32 %v3262, 7
        %v3264 = vsub.s32 %v3169, %v3263
        %v3265 = vrot.slane %v2747, %v3264
        %v3266 = vsel %vm3174, %v3265, %v3261
        %v3267 = vlaneseq
        %v3268 = vshrl.u32 %v3267, 7
        %v3269 = vsub.s32 %v3176, %v3268
        %v3270 = vrot.slane %v2748, %v3269
        %v3271 = vsel %vm3181, %v3270, %v3266
        %v3272 = vlaneseq
        %v3273 = vshrl.u32 %v3272, 7
        %v3274 = vsub.s32 %v3183, %v3273
        %v3275 = vrot.slane %v2749, %v3274
        %v3276 = vsel %vm3188, %v3275, %v3271
        %v3277 = vlaneseq
        %v3278 = vshrl.u32 %v3277, 7
        %v3279 = vsub.s32 %v3190, %v3278
        %v3280 = vrot.slane %v2750, %v3279
        %v3281 = vsel %vm3195, %v3280, %v3276
        %v3282 = vlaneseq
        %v3283 = vshrl.u32 %v3282, 7
        %v3284 = vsub.s32 %v3197, %v3283
        %v3285 = vrot.slane %v2751, %v3284
        %v3286 = vsel %vm3202, %v3285, %v3281
        %v3287 = vlaneseq
        %v3288 = vshrl.u32 %v3287, 7
        %v3289 = vsub.s32 %v3204, %v3288
        %v3290 = vrot.slane %v2752, %v3289
        %v3291 = vsel %vm3209, %v3290, %v3286
        %v3292 = vlaneseq
        %v3293 = vshrl.u32 %v3292, 7
        %v3294 = vsub.s32 %v3211, %v3293
        %v3295 = vrot.slane %v2753, %v3294
        %v3296 = vsel %vm3216, %v3295, %v3291
        %v3297 = vlaneseq
        %v3298 = vshrl.u32 %v3297, 7
        %v3299 = vsub.s32 %v3108, %v3298
        %v3300 = vrot.slane %v2754, %v3299
        %v3301 = vlaneseq
        %v3302 = vshrl.u32 %v3301, 7
        %v3303 = vsub.s32 %v3113, %v3302
        %v3304 = vrot.slane %v2755, %v3303
        %v3305 = vsel %vm3118, %v3304, %v3300
        %v3306 = vlaneseq
        %v3307 = vshrl.u32 %v3306, 7
        %v3308 = vsub.s32 %v3120, %v3307
        %v3309 = vrot.slane %v2756, %v3308
        %v3310 = vsel %vm3125, %v3309, %v3305
        %v3311 = vlaneseq
        %v3312 = vshrl.u32 %v3311, 7
        %v3313 = vsub.s32 %v3127, %v3312
        %v3314 = vrot.slane %v2757, %v3313
        %v3315 = vsel %vm3132, %v3314, %v3310
        %v3316 = vlaneseq
        %v3317 = vshrl.u32 %v3316, 7
        %v3318 = vsub.s32 %v3134, %v3317
        %v3319 = vrot.slane %v2758, %v3318
        %v3320 = vsel %vm3139, %v3319, %v3315
        %v3321 = vlaneseq
        %v3322 = vshrl.u32 %v3321, 7
        %v3323 = vsub.s32 %v3141, %v3322
        %v3324 = vrot.slane %v2759, %v3323
        %v3325 = vsel %vm3146, %v3324, %v3320
        %v3326 = vlaneseq
        %v3327 = vshrl.u32 %v3326, 7
        %v3328 = vsub.s32 %v3148, %v3327
        %v3329 = vrot.slane %v2760, %v3328
        %v3330 = vsel %vm3153, %v3329, %v3325
        %v3331 = vlaneseq
        %v3332 = vshrl.u32 %v3331, 7
        %v3333 = vsub.s32 %v3155, %v3332
        %v3334 = vrot.slane %v2761, %v3333
        %v3335 = vsel %vm3160, %v3334, %v3330
        %v3336 = vlaneseq
        %v3337 = vshrl.u32 %v3336, 7
        %v3338 = vsub.s32 %v3162, %v3337
        %v3339 = vrot.slane %v2762, %v3338
        %v3340 = vsel %vm3167, %v3339, %v3335
        %v3341 = vlaneseq
        %v3342 = vshrl.u32 %v3341, 7
        %v3343 = vsub.s32 %v3169, %v3342
        %v3344 = vrot.slane %v2763, %v3343
        %v3345 = vsel %vm3174, %v3344, %v3340
        %v3346 = vlaneseq
        %v3347 = vshrl.u32 %v3346, 7
        %v3348 = vsub.s32 %v3176, %v3347
        %v3349 = vrot.slane %v2764, %v3348
        %v3350 = vsel %vm3181, %v3349, %v3345
        %v3351 = vlaneseq
        %v3352 = vshrl.u32 %v3351, 7
        %v3353 = vsub.s32 %v3183, %v3352
        %v3354 = vrot.slane %v2765, %v3353
        %v3355 = vsel %vm3188, %v3354, %v3350
        %v3356 = vlaneseq
        %v3357 = vshrl.u32 %v3356, 7
        %v3358 = vsub.s32 %v3190, %v3357
        %v3359 = vrot.slane %v2766, %v3358
        %v3360 = vsel %vm3195, %v3359, %v3355
        %v3361 = vlaneseq
        %v3362 = vshrl.u32 %v3361, 7
        %v3363 = vsub.s32 %v3197, %v3362
        %v3364 = vrot.slane %v2767, %v3363
        %v3365 = vsel %vm3202, %v3364, %v3360
        %v3366 = vlaneseq
        %v3367 = vshrl.u32 %v3366, 7
        %v3368 = vsub.s32 %v3204, %v3367
        %v3369 = vrot.slane %v2768, %v3368
        %v3370 = vsel %vm3209, %v3369, %v3365
        %v3371 = vlaneseq
        %v3372 = vshrl.u32 %v3371, 7
        %v3373 = vsub.s32 %v3211, %v3372
        %v3374 = vrot.slane %v2769, %v3373
        %v3375 = vsel %vm3216, %v3374, %v3370
        %v3376 = vlaneseq
        %v3377 = vshrl.u32 %v3376, 7
        %v3378 = vsub.s32 %v3108, %v3377
        %v3379 = vrot.slane %v2770, %v3378
        %v3380 = vlaneseq
        %v3381 = vshrl.u32 %v3380, 7
        %v3382 = vsub.s32 %v3113, %v3381
        %v3383 = vrot.slane %v2771, %v3382
        %v3384 = vsel %vm3118, %v3383, %v3379
        %v3385 = vlaneseq
        %v3386 = vshrl.u32 %v3385, 7
        %v3387 = vsub.s32 %v3120, %v3386
        %v3388 = vrot.slane %v2772, %v3387
        %v3389 = vsel %vm3125, %v3388, %v3384
        %v3390 = vlaneseq
        %v3391 = vshrl.u32 %v3390, 7
        %v3392 = vsub.s32 %v3127, %v3391
        %v3393 = vrot.slane %v2773, %v3392
        %v3394 = vsel %vm3132, %v3393, %v3389
        %v3395 = vlaneseq
        %v3396 = vshrl.u32 %v3395, 7
        %v3397 = vsub.s32 %v3134, %v3396
        %v3398 = vrot.slane %v2774, %v3397
        %v3399 = vsel %vm3139, %v3398, %v3394
        %v3400 = vlaneseq
        %v3401 = vshrl.u32 %v3400, 7
        %v3402 = vsub.s32 %v3141, %v3401
        %v3403 = vrot.slane %v2775, %v3402
        %v3404 = vsel %vm3146, %v3403, %v3399
        %v3405 = vlaneseq
        %v3406 = vshrl.u32 %v3405, 7
        %v3407 = vsub.s32 %v3148, %v3406
        %v3408 = vrot.slane %v2776, %v3407
        %v3409 = vsel %vm3153, %v3408, %v3404
        %v3410 = vlaneseq
        %v3411 = vshrl.u32 %v3410, 7
        %v3412 = vsub.s32 %v3155, %v3411
        %v3413 = vrot.slane %v2777, %v3412
        %v3414 = vsel %vm3160, %v3413, %v3409
        %v3415 = vlaneseq
        %v3416 = vshrl.u32 %v3415, 7
        %v3417 = vsub.s32 %v3162, %v3416
        %v3418 = vrot.slane %v2778, %v3417
        %v3419 = vsel %vm3167, %v3418, %v3414
        %v3420 = vlaneseq
        %v3421 = vshrl.u32 %v3420, 7
        %v3422 = vsub.s32 %v3169, %v3421
        %v3423 = vrot.slane %v2779, %v3422
        %v3424 = vsel %vm3174, %v3423, %v3419
        %v3425 = vlaneseq
        %v3426 = vshrl.u32 %v3425, 7
        %v3427 = vsub.s32 %v3176, %v3426
        %v3428 = vrot.slane %v2780, %v3427
        %v3429 = vsel %vm3181, %v3428, %v3424
        %v3430 = vlaneseq
        %v3431 = vshrl.u32 %v3430, 7
        %v3432 = vsub.s32 %v3183, %v3431
        %v3433 = vrot.slane %v2781, %v3432
        %v3434 = vsel %vm3188, %v3433, %v3429
        %v3435 = vlaneseq
        %v3436 = vshrl.u32 %v3435, 7
        %v3437 = vsub.s32 %v3190, %v3436
        %v3438 = vrot.slane %v2782, %v3437
        %v3439 = vsel %vm3195, %v3438, %v3434
        %v3440 = vlaneseq
        %v3441 = vshrl.u32 %v3440, 7
        %v3442 = vsub.s32 %v3197, %v3441
        %v3443 = vrot.slane %v2783, %v3442
        %v3444 = vsel %vm3202, %v3443, %v3439
        %v3445 = vlaneseq
        %v3446 = vshrl.u32 %v3445, 7
        %v3447 = vsub.s32 %v3204, %v3446
        %v3448 = vrot.slane %v2784, %v3447
        %v3449 = vsel %vm3209, %v3448, %v3444
        %v3450 = vlaneseq
        %v3451 = vshrl.u32 %v3450, 7
        %v3452 = vsub.s32 %v3211, %v3451
        %v3453 = vrot.slane %v2785, %v3452
        %v3454 = vsel %vm3216, %v3453, %v3449
        %v3455 = vlaneseq
        %v3456 = vshrl.u32 %v3455, 7
        %v3457 = vsub.s32 %v3108, %v3456
        %v3458 = vrot.slane %v2786, %v3457
        %v3459 = vlaneseq
        %v3460 = vshrl.u32 %v3459, 7
        %v3461 = vsub.s32 %v3113, %v3460
        %v3462 = vrot.slane %v2787, %v3461
        %v3463 = vsel %vm3118, %v3462, %v3458
        %v3464 = vlaneseq
        %v3465 = vshrl.u32 %v3464, 7
        %v3466 = vsub.s32 %v3120, %v3465
        %v3467 = vrot.slane %v2788, %v3466
        %v3468 = vsel %vm3125, %v3467, %v3463
        %v3469 = vlaneseq
        %v3470 = vshrl.u32 %v3469, 7
        %v3471 = vsub.s32 %v3127, %v3470
        %v3472 = vrot.slane %v2789, %v3471
        %v3473 = vsel %vm3132, %v3472, %v3468
        %v3474 = vlaneseq
        %v3475 = vshrl.u32 %v3474, 7
        %v3476 = vsub.s32 %v3134, %v3475
        %v3477 = vrot.slane %v2790, %v3476
        %v3478 = vsel %vm3139, %v3477, %v3473
        %v3479 = vlaneseq
        %v3480 = vshrl.u32 %v3479, 7
        %v3481 = vsub.s32 %v3141, %v3480
        %v3482 = vrot.slane %v2791, %v3481
        %v3483 = vsel %vm3146, %v3482, %v3478
        %v3484 = vlaneseq
        %v3485 = vshrl.u32 %v3484, 7
        %v3486 = vsub.s32 %v3148, %v3485
        %v3487 = vrot.slane %v2792, %v3486
        %v3488 = vsel %vm3153, %v3487, %v3483
        %v3489 = vlaneseq
        %v3490 = vshrl.u32 %v3489, 7
        %v3491 = vsub.s32 %v3155, %v3490
        %v3492 = vrot.slane %v2793, %v3491
        %v3493 = vsel %vm3160, %v3492, %v3488
        %v3494 = vlaneseq
        %v3495 = vshrl.u32 %v3494, 7
        %v3496 = vsub.s32 %v3162, %v3495
        %v3497 = vrot.slane %v2794, %v3496
        %v3498 = vsel %vm3167, %v3497, %v3493
        %v3499 = vlaneseq
        %v3500 = vshrl.u32 %v3499, 7
        %v3501 = vsub.s32 %v3169, %v3500
        %v3502 = vrot.slane %v2795, %v3501
        %v3503 = vsel %vm3174, %v3502, %v3498
        %v3504 = vlaneseq
        %v3505 = vshrl.u32 %v3504, 7
        %v3506 = vsub.s32 %v3176, %v3505
        %v3507 = vrot.slane %v2796, %v3506
        %v3508 = vsel %vm3181, %v3507, %v3503
        %v3509 = vlaneseq
        %v3510 = vshrl.u32 %v3509, 7
        %v3511 = vsub.s32 %v3183, %v3510
        %v3512 = vrot.slane %v2797, %v3511
        %v3513 = vsel %vm3188, %v3512, %v3508
        %v3514 = vlaneseq
        %v3515 = vshrl.u32 %v3514, 7
        %v3516 = vsub.s32 %v3190, %v3515
        %v3517 = vrot.slane %v2798, %v3516
        %v3518 = vsel %vm3195, %v3517, %v3513
        %v3519 = vlaneseq
        %v3520 = vshrl.u32 %v3519, 7
        %v3521 = vsub.s32 %v3197, %v3520
        %v3522 = vrot.slane %v2799, %v3521
        %v3523 = vsel %vm3202, %v3522, %v3518
        %v3524 = vlaneseq
        %v3525 = vshrl.u32 %v3524, 7
        %v3526 = vsub.s32 %v3204, %v3525
        %v3527 = vrot.slane %v2800, %v3526
        %v3528 = vsel %vm3209, %v3527, %v3523
        %v3529 = vlaneseq
        %v3530 = vshrl.u32 %v3529, 7
        %v3531 = vsub.s32 %v3211, %v3530
        %v3532 = vrot.slane %v2801, %v3531
        %v3533 = vsel %vm3216, %v3532, %v3528
        %v3534 = vlaneseq
        %v3535 = vshrl.u32 %v3534, 7
        %v3536 = vsub.s32 %v3108, %v3535
        %v3537 = vrot.slane %v2802, %v3536
        %v3538 = vlaneseq
        %v3539 = vshrl.u32 %v3538, 7
        %v3540 = vsub.s32 %v3113, %v3539
        %v3541 = vrot.slane %v2803, %v3540
        %v3542 = vsel %vm3118, %v3541, %v3537
        %v3543 = vlaneseq
        %v3544 = vshrl.u32 %v3543, 7
        %v3545 = vsub.s32 %v3120, %v3544
        %v3546 = vrot.slane %v2804, %v3545
        %v3547 = vsel %vm3125, %v3546, %v3542
        %v3548 = vlaneseq
        %v3549 = vshrl.u32 %v3548, 7
        %v3550 = vsub.s32 %v3127, %v3549
        %v3551 = vrot.slane %v2805, %v3550
        %v3552 = vsel %vm3132, %v3551, %v3547
        %v3553 = vlaneseq
        %v3554 = vshrl.u32 %v3553, 7
        %v3555 = vsub.s32 %v3134, %v3554
        %v3556 = vrot.slane %v2806, %v3555
        %v3557 = vsel %vm3139, %v3556, %v3552
        %v3558 = vlaneseq
        %v3559 = vshrl.u32 %v3558, 7
        %v3560 = vsub.s32 %v3141, %v3559
        %v3561 = vrot.slane %v2807, %v3560
        %v3562 = vsel %vm3146, %v3561, %v3557
        %v3563 = vlaneseq
        %v3564 = vshrl.u32 %v3563, 7
        %v3565 = vsub.s32 %v3148, %v3564
        %v3566 = vrot.slane %v2808, %v3565
        %v3567 = vsel %vm3153, %v3566, %v3562
        %v3568 = vlaneseq
        %v3569 = vshrl.u32 %v3568, 7
        %v3570 = vsub.s32 %v3155, %v3569
        %v3571 = vrot.slane %v2809, %v3570
        %v3572 = vsel %vm3160, %v3571, %v3567
        %v3573 = vlaneseq
        %v3574 = vshrl.u32 %v3573, 7
        %v3575 = vsub.s32 %v3162, %v3574
        %v3576 = vrot.slane %v2810, %v3575
        %v3577 = vsel %vm3167, %v3576, %v3572
        %v3578 = vlaneseq
        %v3579 = vshrl.u32 %v3578, 7
        %v3580 = vsub.s32 %v3169, %v3579
        %v3581 = vrot.slane %v2811, %v3580
        %v3582 = vsel %vm3174, %v3581, %v3577
        %v3583 = vlaneseq
        %v3584 = vshrl.u32 %v3583, 7
        %v3585 = vsub.s32 %v3176, %v3584
        %v3586 = vrot.slane %v2812, %v3585
        %v3587 = vsel %vm3181, %v3586, %v3582
        %v3588 = vlaneseq
        %v3589 = vshrl.u32 %v3588, 7
        %v3590 = vsub.s32 %v3183, %v3589
        %v3591 = vrot.slane %v2813, %v3590
        %v3592 = vsel %vm3188, %v3591, %v3587
        %v3593 = vlaneseq
        %v3594 = vshrl.u32 %v3593, 7
        %v3595 = vsub.s32 %v3190, %v3594
        %v3596 = vrot.slane %v2814, %v3595
        %v3597 = vsel %vm3195, %v3596, %v3592
        %v3598 = vlaneseq
        %v3599 = vshrl.u32 %v3598, 7
        %v3600 = vsub.s32 %v3197, %v3599
        %v3601 = vrot.slane %v2815, %v3600
        %v3602 = vsel %vm3202, %v3601, %v3597
        %v3603 = vlaneseq
        %v3604 = vshrl.u32 %v3603, 7
        %v3605 = vsub.s32 %v3204, %v3604
        %v3606 = vrot.slane %v2816, %v3605
        %v3607 = vsel %vm3209, %v3606, %v3602
        %v3608 = vlaneseq
        %v3609 = vshrl.u32 %v3608, 7
        %v3610 = vsub.s32 %v3211, %v3609
        %v3611 = vrot.slane %v2817, %v3610
        %v3612 = vsel %vm3216, %v3611, %v3607
        %v3613 = vlaneseq
        %v3614 = vshrl.u32 %v3613, 7
        %v3615 = vsub.s32 %v3108, %v3614
        %v3616 = vrot.slane %v2818, %v3615
        %v3617 = vlaneseq
        %v3618 = vshrl.u32 %v3617, 7
        %v3619 = vsub.s32 %v3113, %v3618
        %v3620 = vrot.slane %v2819, %v3619
        %v3621 = vsel %vm3118, %v3620, %v3616
        %v3622 = vlaneseq
        %v3623 = vshrl.u32 %v3622, 7
        %v3624 = vsub.s32 %v3120, %v3623
        %v3625 = vrot.slane %v2820, %v3624
        %v3626 = vsel %vm3125, %v3625, %v3621
        %v3627 = vlaneseq
        %v3628 = vshrl.u32 %v3627, 7
        %v3629 = vsub.s32 %v3127, %v3628
        %v3630 = vrot.slane %v2821, %v3629
        %v3631 = vsel %vm3132, %v3630, %v3626
        %v3632 = vlaneseq
        %v3633 = vshrl.u32 %v3632, 7
        %v3634 = vsub.s32 %v3134, %v3633
        %v3635 = vrot.slane %v2822, %v3634
        %v3636 = vsel %vm3139, %v3635, %v3631
        %v3637 = vlaneseq
        %v3638 = vshrl.u32 %v3637, 7
        %v3639 = vsub.s32 %v3141, %v3638
        %v3640 = vrot.slane %v2823, %v3639
        %v3641 = vsel %vm3146, %v3640, %v3636
        %v3642 = vlaneseq
        %v3643 = vshrl.u32 %v3642, 7
        %v3644 = vsub.s32 %v3148, %v3643
        %v3645 = vrot.slane %v2824, %v3644
        %v3646 = vsel %vm3153, %v3645, %v3641
        %v3647 = vlaneseq
        %v3648 = vshrl.u32 %v3647, 7
        %v3649 = vsub.s32 %v3155, %v3648
        %v3650 = vrot.slane %v2825, %v3649
        %v3651 = vsel %vm3160, %v3650, %v3646
        %v3652 = vlaneseq
        %v3653 = vshrl.u32 %v3652, 7
        %v3654 = vsub.s32 %v3162, %v3653
        %v3655 = vrot.slane %v2826, %v3654
        %v3656 = vsel %vm3167, %v3655, %v3651
        %v3657 = vlaneseq
        %v3658 = vshrl.u32 %v3657, 7
        %v3659 = vsub.s32 %v3169, %v3658
        %v3660 = vrot.slane %v2827, %v3659
        %v3661 = vsel %vm3174, %v3660, %v3656
        %v3662 = vlaneseq
        %v3663 = vshrl.u32 %v3662, 7
        %v3664 = vsub.s32 %v3176, %v3663
        %v3665 = vrot.slane %v2828, %v3664
        %v3666 = vsel %vm3181, %v3665, %v3661
        %v3667 = vlaneseq
        %v3668 = vshrl.u32 %v3667, 7
        %v3669 = vsub.s32 %v3183, %v3668
        %v3670 = vrot.slane %v2829, %v3669
        %v3671 = vsel %vm3188, %v3670, %v3666
        %v3672 = vlaneseq
        %v3673 = vshrl.u32 %v3672, 7
        %v3674 = vsub.s32 %v3190, %v3673
        %v3675 = vrot.slane %v2830, %v3674
        %v3676 = vsel %vm3195, %v3675, %v3671
        %v3677 = vlaneseq
        %v3678 = vshrl.u32 %v3677, 7
        %v3679 = vsub.s32 %v3197, %v3678
        %v3680 = vrot.slane %v2831, %v3679
        %v3681 = vsel %vm3202, %v3680, %v3676
        %v3682 = vlaneseq
        %v3683 = vshrl.u32 %v3682, 7
        %v3684 = vsub.s32 %v3204, %v3683
        %v3685 = vrot.slane %v2832, %v3684
        %v3686 = vsel %vm3209, %v3685, %v3681
        %v3687 = vlaneseq
        %v3688 = vshrl.u32 %v3687, 7
        %v3689 = vsub.s32 %v3211, %v3688
        %v3690 = vrot.slane %v2833, %v3689
        %v3691 = vsel %vm3216, %v3690, %v3686
        %v3692 = vlaneseq
        %v3693 = vshrl.u32 %v3692, 7
        %v3694 = vsub.s32 %v3108, %v3693
        %v3695 = vrot.slane %v2834, %v3694
        %v3696 = vlaneseq
        %v3697 = vshrl.u32 %v3696, 7
        %v3698 = vsub.s32 %v3113, %v3697
        %v3699 = vrot.slane %v2835, %v3698
        %v3700 = vsel %vm3118, %v3699, %v3695
        %v3701 = vlaneseq
        %v3702 = vshrl.u32 %v3701, 7
        %v3703 = vsub.s32 %v3120, %v3702
        %v3704 = vrot.slane %v2836, %v3703
        %v3705 = vsel %vm3125, %v3704, %v3700
        %v3706 = vlaneseq
        %v3707 = vshrl.u32 %v3706, 7
        %v3708 = vsub.s32 %v3127, %v3707
        %v3709 = vrot.slane %v2837, %v3708
        %v3710 = vsel %vm3132, %v3709, %v3705
        %v3711 = vlaneseq
        %v3712 = vshrl.u32 %v3711, 7
        %v3713 = vsub.s32 %v3134, %v3712
        %v3714 = vrot.slane %v2838, %v3713
        %v3715 = vsel %vm3139, %v3714, %v3710
        %v3716 = vlaneseq
        %v3717 = vshrl.u32 %v3716, 7
        %v3718 = vsub.s32 %v3141, %v3717
        %v3719 = vrot.slane %v2839, %v3718
        %v3720 = vsel %vm3146, %v3719, %v3715
        %v3721 = vlaneseq
        %v3722 = vshrl.u32 %v3721, 7
        %v3723 = vsub.s32 %v3148, %v3722
        %v3724 = vrot.slane %v2840, %v3723
        %v3725 = vsel %vm3153, %v3724, %v3720
        %v3726 = vlaneseq
        %v3727 = vshrl.u32 %v3726, 7
        %v3728 = vsub.s32 %v3155, %v3727
        %v3729 = vrot.slane %v2841, %v3728
        %v3730 = vsel %vm3160, %v3729, %v3725
        %v3731 = vlaneseq
        %v3732 = vshrl.u32 %v3731, 7
        %v3733 = vsub.s32 %v3162, %v3732
        %v3734 = vrot.slane %v2842, %v3733
        %v3735 = vsel %vm3167, %v3734, %v3730
        %v3736 = vlaneseq
        %v3737 = vshrl.u32 %v3736, 7
        %v3738 = vsub.s32 %v3169, %v3737
        %v3739 = vrot.slane %v2843, %v3738
        %v3740 = vsel %vm3174, %v3739, %v3735
        %v3741 = vlaneseq
        %v3742 = vshrl.u32 %v3741, 7
        %v3743 = vsub.s32 %v3176, %v3742
        %v3744 = vrot.slane %v2844, %v3743
        %v3745 = vsel %vm3181, %v3744, %v3740
        %v3746 = vlaneseq
        %v3747 = vshrl.u32 %v3746, 7
        %v3748 = vsub.s32 %v3183, %v3747
        %v3749 = vrot.slane %v2845, %v3748
        %v3750 = vsel %vm3188, %v3749, %v3745
        %v3751 = vlaneseq
        %v3752 = vshrl.u32 %v3751, 7
        %v3753 = vsub.s32 %v3190, %v3752
        %v3754 = vrot.slane %v2846, %v3753
        %v3755 = vsel %vm3195, %v3754, %v3750
        %v3756 = vlaneseq
        %v3757 = vshrl.u32 %v3756, 7
        %v3758 = vsub.s32 %v3197, %v3757
        %v3759 = vrot.slane %v2847, %v3758
        %v3760 = vsel %vm3202, %v3759, %v3755
        %v3761 = vlaneseq
        %v3762 = vshrl.u32 %v3761, 7
        %v3763 = vsub.s32 %v3204, %v3762
        %v3764 = vrot.slane %v2848, %v3763
        %v3765 = vsel %vm3209, %v3764, %v3760
        %v3766 = vlaneseq
        %v3767 = vshrl.u32 %v3766, 7
        %v3768 = vsub.s32 %v3211, %v3767
        %v3769 = vrot.slane %v2849, %v3768
        %v3770 = vsel %vm3216, %v3769, %v3765
        %vm3771 = vcmask 1041409
        %v3772 = vsel %vm3771, %v3533, %v3217
        %v3773 = vsel %vm3771, %v3612, %v3296
        %v3774 = vsel %vm3771, %v3691, %v3375
        %v3775 = vsel %vm3771, %v3770, %v3454
        %3780 = vmatprep.subr.mxu0 %v2852
        %3781 = vmatpush1.msra.mxu0 %v2851
        %3782 = vmatprep.subr.mxu0 %v2854
        %3783 = vmatpush1.msra.mxu0 %v2853
        %3784 = vmatprep.subr.mxu0 %v2856
        %3785 = vmatpush1.msra.mxu0 %v2855
        %3786 = vmatprep.subr.mxu0 %v2858
        %3787 = vmatpush1.msra.mxu0 %v2857
        %3788 = vmatprep.subr.mxu0 %v2860
        %3789 = vmatpush1.msra.mxu0 %v2859
        %3790 = vmatprep.subr.mxu0 %v2862
        %3791 = vmatpush1.msra.mxu0 %v2861
        %3792 = vmatprep.subr.mxu0 %v2864
        %3793 = vmatpush1.msra.mxu0 %v2863
        %3794 = vmatprep.subr.mxu0 %v2866
        %3795 = vmatpush1.msra.mxu0 %v2865
        %3796 = vmatprep.subr.mxu0 %v2868
        %3797 = vmatpush1.msra.mxu0 %v2867
        %3798 = vmatprep.subr.mxu0 %v2870
        %3799 = vmatpush1.msra.mxu0 %v2869
        %3800 = vmatprep.subr.mxu0 %v2872
        %3801 = vmatpush1.msra.mxu0 %v2871
        %3802 = vmatprep.subr.mxu0 %v2874
        %3803 = vmatpush1.msra.mxu0 %v2873
        %3804 = vmatprep.subr.mxu0 %v2876
        %3805 = vmatpush1.msra.mxu0 %v2875
        %3806 = vmatprep.subr.mxu0 %v2878
        %3807 = vmatpush1.msra.mxu0 %v2877
        %3808 = vmatprep.subr.mxu0 %v2880
        %3809 = vmatpush1.msra.mxu0 %v2879
        %3810 = vmatprep.subr.mxu0 %v2882
        %3811 = vmatpush1.msra.mxu0 %v2881
        %3812 = vmatprep.subr.mxu0 %v2884
        %3813 = vmatpush1.msra.mxu0 %v2883
        %3814 = vmatprep.subr.mxu0 %v2886
        %3815 = vmatpush1.msra.mxu0 %v2885
        %3816 = vmatprep.subr.mxu0 %v2888
        %3817 = vmatpush1.msra.mxu0 %v2887
        %3818 = vmatprep.subr.mxu0 %v2890
        %3819 = vmatpush1.msra.mxu0 %v2889
        %3820 = vmatprep.subr.mxu0 %v2892
        %3821 = vmatpush1.msra.mxu0 %v2891
        %3822 = vmatprep.subr.mxu0 %v2894
        %3823 = vmatpush1.msra.mxu0 %v2893
        %3824 = vmatprep.subr.mxu0 %v2896
        %3825 = vmatpush1.msra.mxu0 %v2895
        %3826 = vmatprep.subr.mxu0 %v2898
        %3827 = vmatpush1.msra.mxu0 %v2897
        %3828 = vmatprep.subr.mxu0 %v2900
        %3829 = vmatpush1.msra.mxu0 %v2899
        %3830 = vmatprep.subr.mxu0 %v2902
        %3831 = vmatpush1.msra.mxu0 %v2901
        %3832 = vmatprep.subr.mxu0 %v2904
        %3833 = vmatpush1.msra.mxu0 %v2903
        %3834 = vmatprep.subr.mxu0 %v2906
        %3835 = vmatpush1.msra.mxu0 %v2905
        %3836 = vmatprep.subr.mxu0 %v2908
        %3837 = vmatpush1.msra.mxu0 %v2907
        %3838 = vmatprep.subr.mxu0 %v2910
        %3839 = vmatpush1.msra.mxu0 %v2909
        %3840 = vmatprep.subr.mxu0 %v2912
        %3841 = vmatpush1.msra.mxu0 %v2911
        %3842 = vmatprep.subr.mxu0 %v2914
        %3843 = vmatpush1.msra.mxu0 %v2913
        %3844 = vmatprep.mubr.f32.mxu0 %v3773
        %3845 = vmatmul.mubr.f32.gmra.mrb[0].mxu0 %v3772
        %v3846 = vpop.f32.mrb[0].mxu0
        %v3847 = vadd.f32 0.0, %v3846
        %v3848 = vpop.f32.mrb[0].mxu0
        %v3849 = vadd.f32 0.0, %v3848
        %3850 = vdwg.mxu0
        %3851 = vmatprep.subr.mxu0 %v2916
        %3852 = vmatpush1.msra.mxu0 %v2915
        %3853 = vmatprep.subr.mxu0 %v2918
        %3854 = vmatpush1.msra.mxu0 %v2917
        %3855 = vmatprep.subr.mxu0 %v2920
        %3856 = vmatpush1.msra.mxu0 %v2919
        %3857 = vmatprep.subr.mxu0 %v2922
        %3858 = vmatpush1.msra.mxu0 %v2921
        %3859 = vmatprep.subr.mxu0 %v2924
        %3860 = vmatpush1.msra.mxu0 %v2923
        %3861 = vmatprep.subr.mxu0 %v2926
        %3862 = vmatpush1.msra.mxu0 %v2925
        %3863 = vmatprep.subr.mxu0 %v2928
        %3864 = vmatpush1.msra.mxu0 %v2927
        %3865 = vmatprep.subr.mxu0 %v2930
        %3866 = vmatpush1.msra.mxu0 %v2929
        %3867 = vmatprep.subr.mxu0 %v2932
        %3868 = vmatpush1.msra.mxu0 %v2931
        %3869 = vmatprep.subr.mxu0 %v2934
        %3870 = vmatpush1.msra.mxu0 %v2933
        %3871 = vmatprep.subr.mxu0 %v2936
        %3872 = vmatpush1.msra.mxu0 %v2935
        %3873 = vmatprep.subr.mxu0 %v2938
        %3874 = vmatpush1.msra.mxu0 %v2937
        %3875 = vmatprep.subr.mxu0 %v2940
        %3876 = vmatpush1.msra.mxu0 %v2939
        %3877 = vmatprep.subr.mxu0 %v2942
        %3878 = vmatpush1.msra.mxu0 %v2941
        %3879 = vmatprep.subr.mxu0 %v2944
        %3880 = vmatpush1.msra.mxu0 %v2943
        %3881 = vmatprep.subr.mxu0 %v2946
        %3882 = vmatpush1.msra.mxu0 %v2945
        %3883 = vmatprep.subr.mxu0 %v2948
        %3884 = vmatpush1.msra.mxu0 %v2947
        %3885 = vmatprep.subr.mxu0 %v2950
        %3886 = vmatpush1.msra.mxu0 %v2949
        %3887 = vmatprep.subr.mxu0 %v2952
        %3888 = vmatpush1.msra.mxu0 %v2951
        %3889 = vmatprep.subr.mxu0 %v2954
        %3890 = vmatpush1.msra.mxu0 %v2953
        %3891 = vmatprep.subr.mxu0 %v2956
        %3892 = vmatpush1.msra.mxu0 %v2955
        %3893 = vmatprep.subr.mxu0 %v2958
        %3894 = vmatpush1.msra.mxu0 %v2957
        %3895 = vmatprep.subr.mxu0 %v2960
        %3896 = vmatpush1.msra.mxu0 %v2959
        %3897 = vmatprep.subr.mxu0 %v2962
        %3898 = vmatpush1.msra.mxu0 %v2961
        %3899 = vmatprep.subr.mxu0 %v2964
        %3900 = vmatpush1.msra.mxu0 %v2963
        %3901 = vmatprep.subr.mxu0 %v2966
        %3902 = vmatpush1.msra.mxu0 %v2965
        %3903 = vmatprep.subr.mxu0 %v2968
        %3904 = vmatpush1.msra.mxu0 %v2967
        %3905 = vmatprep.subr.mxu0 %v2970
        %3906 = vmatpush1.msra.mxu0 %v2969
        %3907 = vmatprep.subr.mxu0 %v2972
        %3908 = vmatpush1.msra.mxu0 %v2971
        %3909 = vmatprep.subr.mxu0 %v2974
        %3910 = vmatpush1.msra.mxu0 %v2973
        %3911 = vmatprep.subr.mxu0 %v2976
        %3912 = vmatpush1.msra.mxu0 %v2975
        %3913 = vmatprep.subr.mxu0 %v2978
        %3914 = vmatpush1.msra.mxu0 %v2977
        %3915 = vmatprep.mubr.f32.mxu0 %v3775
        %3916 = vmatmul.mubr.f32.gmra.mrb[0].mxu0 %v3774
        %v3917 = vpop.f32.mrb[0].mxu0
        %v3918 = vadd.f32 %v3847, %v3917
        %v3919 = vpop.f32.mrb[0].mxu0
        %v3920 = vadd.f32 %v3849, %v3919
        %3921 = vdwg.mxu0
        %v3924 = vcombine.low %v3918, %v3920
        %v3926 = vunpack.c.l.s4 1983009808
        %v3927 = vunpack.c.0.s8 %v3926
        %v3928 = vlaneseq
        %v3929 = vshrl.u32 %v3928, 7
        %v3930 = vsub.s32 %v3927, %v3929
        %v3931 = vrot.slane %v3924, %v3930
        %v3933 = vadd.f32 %v2850, %v3931
        %vm3934 = vcmask 1041408
        %vm3935 = vcmask 3074
        %vm3936 = vmor %vm3935, %vm3934
        %3937 = vst.msk [vmem:[#allocation2] sm:$0xf] %vm3936, %v3933
        %p3938 = scmp.eq.s32.totalorder %s28, 3
        // Predicated region
        $region84: #{tpu_custom_call.1} parent=74 // pred_check
          %p3939 = pneg %p3938
        $region85: #{tpu_custom_call.1} parent=74 // pred_check_branch
          %3941 = sbr.rel (%p3939) target = $region87
        $region86: #{tpu_custom_call.1} parent=74 // pred_region
          %v3942 = vld [vmem:[%s1425] sm:$0xf]
          %v3943 = vld [vmem:[%s3] sm:$0xff]
          %v3944 = vld [vmem:[%s3 + $0x8] sm:$0xff]
          %v3945 = vld [vmem:[%s3 + $0x10] sm:$0xff]
          %v3946 = vld [vmem:[%s3 + $0x18] sm:$0xff]
          %v3947 = vld [vmem:[%s3 + $0x20] sm:$0xff]
          %v3948 = vld [vmem:[%s3 + $0x28] sm:$0xff]
          %v3949 = vld [vmem:[%s3 + $0x30] sm:$0xff]
          %v3950 = vld [vmem:[%s3 + $0x38] sm:$0xff]
          %v3951 = vld [vmem:[%s3 + $0x40] sm:$0xff]
          %v3952 = vld [vmem:[%s3 + $0x48] sm:$0xff]
          %v3953 = vld [vmem:[%s3 + $0x50] sm:$0xff]
          %v3954 = vld [vmem:[%s3 + $0x58] sm:$0xff]
          %v3955 = vld [vmem:[%s3 + $0x60] sm:$0xff]
          %v3956 = vld [vmem:[%s3 + $0x68] sm:$0xff]
          %v3957 = vld [vmem:[%s3 + $0x70] sm:$0xff]
          %v3958 = vld [vmem:[%s3 + $0x78] sm:$0xff]
          %v3959 = vld [vmem:[%s3 + $0x80] sm:$0xff]
          %v3960 = vld [vmem:[%s3 + $0x88] sm:$0xff]
          %v3961 = vld [vmem:[%s3 + $0x90] sm:$0xff]
          %v3962 = vld [vmem:[%s3 + $0x98] sm:$0xff]
          %v3963 = vld [vmem:[%s3 + $0xa0] sm:$0xff]
          %v3964 = vld [vmem:[%s3 + $0xa8] sm:$0xff]
          %v3965 = vld [vmem:[%s3 + $0xb0] sm:$0xff]
          %v3966 = vld [vmem:[%s3 + $0xb8] sm:$0xff]
          %v3967 = vld [vmem:[%s3 + $0xc0] sm:$0xff]
          %v3968 = vld [vmem:[%s3 + $0xc8] sm:$0xff]
          %v3969 = vld [vmem:[%s3 + $0xd0] sm:$0xff]
          %v3970 = vld [vmem:[%s3 + $0xd8] sm:$0xff]
          %v3971 = vld [vmem:[%s3 + $0xe0] sm:$0xff]
          %v3972 = vld [vmem:[%s3 + $0xe8] sm:$0xff]
          %v3973 = vld [vmem:[%s3 + $0xf0] sm:$0xff]
          %v3974 = vld [vmem:[%s3 + $0xf8] sm:$0xff]
          %v3975 = vld [vmem:[%s3 + $0x100] sm:$0xff]
          %v3976 = vld [vmem:[%s3 + $0x108] sm:$0xff]
          %v3977 = vld [vmem:[%s3 + $0x110] sm:$0xff]
          %v3978 = vld [vmem:[%s3 + $0x118] sm:$0xff]
          %v3979 = vld [vmem:[%s3 + $0x120] sm:$0xff]
          %v3980 = vld [vmem:[%s3 + $0x128] sm:$0xff]
          %v3981 = vld [vmem:[%s3 + $0x130] sm:$0xff]
          %v3982 = vld [vmem:[%s3 + $0x138] sm:$0xff]
          %v3983 = vld [vmem:[%s3 + $0x140] sm:$0xff]
          %v3984 = vld [vmem:[%s3 + $0x148] sm:$0xff]
          %v3985 = vld [vmem:[%s3 + $0x150] sm:$0xff]
          %v3986 = vld [vmem:[%s3 + $0x158] sm:$0xff]
          %v3987 = vld [vmem:[%s3 + $0x160] sm:$0xff]
          %v3988 = vld [vmem:[%s3 + $0x168] sm:$0xff]
          %v3989 = vld [vmem:[%s3 + $0x170] sm:$0xff]
          %v3990 = vld [vmem:[%s3 + $0x178] sm:$0xff]
          %v3991 = vld [vmem:[%s3 + $0x180] sm:$0xff]
          %v3992 = vld [vmem:[%s3 + $0x188] sm:$0xff]
          %v3993 = vld [vmem:[%s3 + $0x190] sm:$0xff]
          %v3994 = vld [vmem:[%s3 + $0x198] sm:$0xff]
          %v3995 = vld [vmem:[%s3 + $0x1a0] sm:$0xff]
          %v3996 = vld [vmem:[%s3 + $0x1a8] sm:$0xff]
          %v3997 = vld [vmem:[%s3 + $0x1b0] sm:$0xff]
          %v3998 = vld [vmem:[%s3 + $0x1b8] sm:$0xff]
          %v3999 = vld [vmem:[%s3 + $0x1c0] sm:$0xff]
          %v4000 = vld [vmem:[%s3 + $0x1c8] sm:$0xff]
          %v4001 = vld [vmem:[%s3 + $0x1d0] sm:$0xff]
          %v4002 = vld [vmem:[%s3 + $0x1d8] sm:$0xff]
          %v4003 = vld [vmem:[%s3 + $0x1e0] sm:$0xff]
          %v4004 = vld [vmem:[%s3 + $0x1e8] sm:$0xff]
          %v4005 = vld [vmem:[%s3 + $0x1f0] sm:$0xff]
          %v4006 = vld [vmem:[%s3 + $0x1f8] sm:$0xff]
          %v4009 = vunpack.c.l.s4 1983009808
          %v4010 = vunpack.c.0.s8 %v4009
          %v4011 = vlaneseq
          %v4012 = vshrl.u32 %v4011, 7
          %v4013 = vsub.s32 %v4010, %v4012
          %v4014 = vrot.slane %v3942, %v4013
          %v4015 = vcombine.high %v4014, %v4014
          %4018 = vmatprep.subr.mxu0 %v3944
          %4019 = vmatpush1.msra.mxu0 %v3943
          %4020 = vmatprep.subr.mxu0 %v3946
          %4021 = vmatpush1.msra.mxu0 %v3945
          %4022 = vmatprep.subr.mxu0 %v3948
          %4023 = vmatpush1.msra.mxu0 %v3947
          %4024 = vmatprep.subr.mxu0 %v3950
          %4025 = vmatpush1.msra.mxu0 %v3949
          %4026 = vmatprep.subr.mxu0 %v3952
          %4027 = vmatpush1.msra.mxu0 %v3951
          %4028 = vmatprep.subr.mxu0 %v3954
          %4029 = vmatpush1.msra.mxu0 %v3953
          %4030 = vmatprep.subr.mxu0 %v3956
          %4031 = vmatpush1.msra.mxu0 %v3955
          %4032 = vmatprep.subr.mxu0 %v3958
          %4033 = vmatpush1.msra.mxu0 %v3957
          %4034 = vmatprep.subr.mxu0 %v3960
          %4035 = vmatpush1.msra.mxu0 %v3959
          %4036 = vmatprep.subr.mxu0 %v3962
          %4037 = vmatpush1.msra.mxu0 %v3961
          %4038 = vmatprep.subr.mxu0 %v3964
          %4039 = vmatpush1.msra.mxu0 %v3963
          %4040 = vmatprep.subr.mxu0 %v3966
          %4041 = vmatpush1.msra.mxu0 %v3965
          %4042 = vmatprep.subr.mxu0 %v3968
          %4043 = vmatpush1.msra.mxu0 %v3967
          %4044 = vmatprep.subr.mxu0 %v3970
          %4045 = vmatpush1.msra.mxu0 %v3969
          %4046 = vmatprep.subr.mxu0 %v3972
          %4047 = vmatpush1.msra.mxu0 %v3971
          %4048 = vmatprep.subr.mxu0 %v3974
          %4049 = vmatpush1.msra.mxu0 %v3973
          %4050 = vmatprep.subr.mxu0 %v3976
          %4051 = vmatpush1.msra.mxu0 %v3975
          %4052 = vmatprep.subr.mxu0 %v3978
          %4053 = vmatpush1.msra.mxu0 %v3977
          %4054 = vmatprep.subr.mxu0 %v3980
          %4055 = vmatpush1.msra.mxu0 %v3979
          %4056 = vmatprep.subr.mxu0 %v3982
          %4057 = vmatpush1.msra.mxu0 %v3981
          %4058 = vmatprep.subr.mxu0 %v3984
          %4059 = vmatpush1.msra.mxu0 %v3983
          %4060 = vmatprep.subr.mxu0 %v3986
          %4061 = vmatpush1.msra.mxu0 %v3985
          %4062 = vmatprep.subr.mxu0 %v3988
          %4063 = vmatpush1.msra.mxu0 %v3987
          %4064 = vmatprep.subr.mxu0 %v3990
          %4065 = vmatpush1.msra.mxu0 %v3989
          %4066 = vmatprep.subr.mxu0 %v3992
          %4067 = vmatpush1.msra.mxu0 %v3991
          %4068 = vmatprep.subr.mxu0 %v3994
          %4069 = vmatpush1.msra.mxu0 %v3993
          %4070 = vmatprep.subr.mxu0 %v3996
          %4071 = vmatpush1.msra.mxu0 %v3995
          %4072 = vmatprep.subr.mxu0 %v3998
          %4073 = vmatpush1.msra.mxu0 %v3997
          %4074 = vmatprep.subr.mxu0 %v4000
          %4075 = vmatpush1.msra.mxu0 %v3999
          %4076 = vmatprep.subr.mxu0 %v4002
          %4077 = vmatpush1.msra.mxu0 %v4001
          %4078 = vmatprep.subr.mxu0 %v4004
          %4079 = vmatpush1.msra.mxu0 %v4003
          %4080 = vmatprep.subr.mxu0 %v4006
          %4081 = vmatpush1.msra.mxu0 %v4005
          %4082 = vmatprep.mubr.f32.mxu0 %v4015
          %4083 = vmatmul.mubr.f32.gmra.mrb[0].mxu0 %v4014
          %v4084 = vpop.f32.mrb[0].mxu0
          %v4085 = vadd.f32 0.0, %v4084
          %v4086 = vpop.f32.mrb[0].mxu0
          %v4087 = vadd.f32 0.0, %v4086
          %4088 = vdwg.mxu0
          %v4089 = vld [vmem:[#allocation2] sm:$0xf]
          %v4091 = vrot.slane %v4089, 2
          %v4093 = vadd.f32 %v4091, %v4087
          %v4094 = vld [vmem:[#allocation3] sm:$0x1]
          %v4096 = vlaneseq
          %v4097 = vshrl.u32 %v4096, 7
          %v4098 = vsub.s32 0, %v4097
          %v4099 = vrot.slane %v4094, %v4098
          %v4101 = vadd.f32 %v4093, %v4099
          %v4102 = vxor.u32 %v4101, 2147483648
          %v4103 = vmul.f32 %v4102, 1.442695
          %v4104 = vpow.pop %v4103
          %v4105 = vadd.f32 %v4104, 1.0
          %v4106 = vrcp.pop %v4105
          %v4107 = vmul.f32 1.0, %v4106
          %v4108 = vld [vmem:[%s4] sm:$0x1]
          %v4110 = vlaneseq
          %v4111 = vshrl.u32 %v4110, 7
          %v4112 = vsub.s32 0, %v4111
          %v4113 = vrot.slane %v4108, %v4112
          %v4115 = vadd.f32 %v4089, %v4113
          %v4116 = vmax.f32 %v4115, 0.0
          %v4117 = vld [vmem:[%s5] sm:$0x1]
          %v4119 = vlaneseq
          %v4120 = vshrl.u32 %v4119, 7
          %v4121 = vsub.s32 0, %v4120
          %v4122 = vrot.slane %v4117, %v4121
          %v4124 = vadd.f32 %v4085, %v4122
          %v4125 = vmax.f32 %v4124, 0.0
          %4127 = vset.pattern.permute.xlu0 0
          %4128 = vperm.xlu0 %4127, %v4107
          %v4129 = vpop.permute.xlu0 %4128
          %v4132 = vunpack.c.l.s4 269488144
          %v4133 = vunpack.c.0.s8 %v4132
          %v4134 = vlaneseq
          %v4135 = vshrl.u32 %v4134, 7
          %v4136 = vsub.s32 %v4133, %v4135
          %v4137 = vrot.slane %v4129, %v4136
          %v4138 = vmul.f32 %v4137, %v4125
          %v4139 = vsub.f32 1.0, %v4107
          %4141 = vset.pattern.permute.xlu0 0
          %4142 = vperm.xlu0 %4141, %v4139
          %v4143 = vpop.permute.xlu0 %4142
          %v4146 = vunpack.c.l.s4 269488144
          %v4147 = vunpack.c.0.s8 %v4146
          %v4148 = vlaneseq
          %v4149 = vshrl.u32 %v4148, 7
          %v4150 = vsub.s32 %v4147, %v4149
          %v4151 = vrot.slane %v4143, %v4150
          %v4152 = vmul.f32 %v4151, %v4116
          %v4153 = vadd.f32 %v4138, %v4152
          %v4154 = vld [vmem:[%s7] sm:$0xff]
          %v4155 = vld [vmem:[%s7 + $0x8] sm:$0xff]
          %v4156 = vld [vmem:[%s7 + $0x10] sm:$0xff]
          %v4157 = vld [vmem:[%s7 + $0x18] sm:$0xff]
          %v4158 = vld [vmem:[%s7 + $0x20] sm:$0xff]
          %v4159 = vld [vmem:[%s7 + $0x28] sm:$0xff]
          %v4160 = vld [vmem:[%s7 + $0x30] sm:$0xff]
          %v4161 = vld [vmem:[%s7 + $0x38] sm:$0xff]
          %v4162 = vld [vmem:[%s7 + $0x40] sm:$0xff]
          %v4163 = vld [vmem:[%s7 + $0x48] sm:$0xff]
          %v4164 = vld [vmem:[%s7 + $0x50] sm:$0xff]
          %v4165 = vld [vmem:[%s7 + $0x58] sm:$0xff]
          %v4166 = vld [vmem:[%s7 + $0x60] sm:$0xff]
          %v4167 = vld [vmem:[%s7 + $0x68] sm:$0xff]
          %v4168 = vld [vmem:[%s7 + $0x70] sm:$0xff]
          %v4169 = vld [vmem:[%s7 + $0x78] sm:$0xff]
          %v4170 = vld [vmem:[%s8] sm:$0x1]
          %v4172 = vlaneseq
          %v4173 = vshrl.u32 %v4172, 7
          %v4174 = vsub.s32 0, %v4173
          %v4175 = vrot.slane %v4170, %v4174
          %4177 = vmatprep.subr.mxu0 0.0
          %4178 = vmatpush1.msra.mxu0 %v4154
          %4179 = vmatprep.subr.mxu0 0.0
          %4180 = vmatpush1.msra.mxu0 %v4155
          %4181 = vmatprep.subr.mxu0 0.0
          %4182 = vmatpush1.msra.mxu0 %v4156
          %4183 = vmatprep.subr.mxu0 0.0
          %4184 = vmatpush1.msra.mxu0 %v4157
          %4185 = vmatprep.subr.mxu0 0.0
          %4186 = vmatpush1.msra.mxu0 %v4158
          %4187 = vmatprep.subr.mxu0 0.0
          %4188 = vmatpush1.msra.mxu0 %v4159
          %4189 = vmatprep.subr.mxu0 0.0
          %4190 = vmatpush1.msra.mxu0 %v4160
          %4191 = vmatprep.subr.mxu0 0.0
          %4192 = vmatpush1.msra.mxu0 %v4161
          %4193 = vmatprep.subr.mxu0 0.0
          %4194 = vmatpush1.msra.mxu0 %v4162
          %4195 = vmatprep.subr.mxu0 0.0
          %4196 = vmatpush1.msra.mxu0 %v4163
          %4197 = vmatprep.subr.mxu0 0.0
          %4198 = vmatpush1.msra.mxu0 %v4164
          %4199 = vmatprep.subr.mxu0 0.0
          %4200 = vmatpush1.msra.mxu0 %v4165
          %4201 = vmatprep.subr.mxu0 0.0
          %4202 = vmatpush1.msra.mxu0 %v4166
          %4203 = vmatprep.subr.mxu0 0.0
          %4204 = vmatpush1.msra.mxu0 %v4167
          %4205 = vmatprep.subr.mxu0 0.0
          %4206 = vmatpush1.msra.mxu0 %v4168
          %4207 = vmatprep.subr.mxu0 0.0
          %4208 = vmatpush1.msra.mxu0 %v4169
          %4209 = vmatprep.subr.mxu0 0.0
          %4210 = vmatpush1.msra.mxu0 0.0
          %4211 = vmatprep.subr.mxu0 0.0
          %4212 = vmatpush1.msra.mxu0 0.0
          %4213 = vmatprep.subr.mxu0 0.0
          %4214 = vmatpush1.msra.mxu0 0.0
          %4215 = vmatprep.subr.mxu0 0.0
          %4216 = vmatpush1.msra.mxu0 0.0
          %4217 = vmatprep.subr.mxu0 0.0
          %4218 = vmatpush1.msra.mxu0 0.0
          %4219 = vmatprep.subr.mxu0 0.0
          %4220 = vmatpush1.msra.mxu0 0.0
          %4221 = vmatprep.subr.mxu0 0.0
          %4222 = vmatpush1.msra.mxu0 0.0
          %4223 = vmatprep.subr.mxu0 0.0
          %4224 = vmatpush1.msra.mxu0 0.0
          %4225 = vmatprep.subr.mxu0 0.0
          %4226 = vmatpush1.msra.mxu0 0.0
          %4227 = vmatprep.subr.mxu0 0.0
          %4228 = vmatpush1.msra.mxu0 0.0
          %4229 = vmatprep.subr.mxu0 0.0
          %4230 = vmatpush1.msra.mxu0 0.0
          %4231 = vmatprep.subr.mxu0 0.0
          %4232 = vmatpush1.msra.mxu0 0.0
          %4233 = vmatprep.subr.mxu0 0.0
          %4234 = vmatpush1.msra.mxu0 0.0
          %4235 = vmatprep.subr.mxu0 0.0
          %4236 = vmatpush1.msra.mxu0 0.0
          %4237 = vmatprep.subr.mxu0 0.0
          %4238 = vmatpush1.msra.mxu0 0.0
          %4239 = vmatprep.subr.mxu0 0.0
          %4240 = vmatpush1.msra.mxu0 0.0
          %4241 = vmatprep.mubr.f32.mxu0 0.0
          %4242 = vmatmul.mubr.f32.gmra.mrb[0].mxu0 %v4153
          %v4243 = vpop.f32.mrb[0].mxu0
          %v4244 = vadd.f32 %v4175, %v4243
          %v4245 = vpop.f32.mrb[0].mxu0
          %4246 = vdwg.mxu0
          %4247 = vst [vmem:[#allocation5] sm:$0x3] %v4244
        $region87: #{tpu_custom_call.1} parent=74 // pred_fallthru
          _
        // Predicated region
        $region88: #{tpu_custom_call.1} parent=74 // pred_check
          %p4248 = pneg %p259
        $region89: #{tpu_custom_call.1} parent=74 // pred_check_branch
          %4250 = sbr.rel (%p4248) target = $region91
        $region90: #{tpu_custom_call.1} parent=74 // pred_region
          %s4252 = ssub.s32 32, 32
          %4253 = vsyncadd [#allocation6], %s4252
          %s4254 = smul.addr %s27, 32
          %s4255 = scalar_lea.hbm %s9, %s4254
          %s4257 = sshll.u32 [#allocation5], 4
          %s4258 = int_to_ptr.vmem [resolvable:$true] %s4257
          %4260 = dma.vmem_to_hbm [thread:$0]  %s4258, 32, %s4255, [#allocation6]
        $region91: #{tpu_custom_call.1} parent=74 // pred_fallthru
          _
        // Predicated region
        $region92: #{tpu_custom_call.1} parent=74 // pred_check
          %p4261 = pneg %p259
        $region93: #{tpu_custom_call.1} parent=74 // pred_check_branch
          %4263 = sbr.rel (%p4261) target = $region95
        $region94: #{tpu_custom_call.1} parent=74 // pred_region
          %4264 = dma.done [#allocation6], 32
        $region95: #{tpu_custom_call.1} parent=74 // pred_fallthru
          _
      $region75: #{tpu_custom_call.1} parent=5 // pred_fallthru
        _
      %p4265 = scmp.le.s32.totalorder 2, %s18
      // Predicated region
      $region96: #{tpu_custom_call.1} parent=5 // pred_check
        %p4266 = pneg %p4265
      $region97: #{tpu_custom_call.1} parent=5 // pred_check_branch
        %4268 = sbr.rel (%p4266) target = $region99
      $region98: #{tpu_custom_call.1} parent=5 // pred_region
        %s4269 = ssub.s32 %s18, 2
      $region99: #{tpu_custom_call.1} parent=5 // pred_fallthru
        _
    $region6: #{tpu_custom_call.1} parent=1 // loop_footer
      %s22 = sadd.s32 1, %s18
    $region7: #{tpu_custom_call.1} parent=1 // loop_footer_branch
      %17 = sbr.rel target = $region3
    $region8: #{tpu_custom_call.1} parent=1 // loop_exit
      _
    %4270 = vsyncpa [#allocation6], 1
    %s4271 = scalar_lea.sflag [#allocation6], 1
    %4272 = vsyncpa %s4271, 1

</llo_original>
